<compile_context>
chip_gen: v6e
topology: v6e:2x2x1
jax: 0.10.0
libtpu: 0.0.40
codegen_flags: <defaults>
</compile_context>

<pallas_src>
import functools
import math

import jax
import jax.numpy as jnp
from jax.experimental import pallas as pl
from jax.experimental.pallas import tpu as pltpu


def _layernorm(h, gamma, beta, eps=1e-5):
    # Fused single-pass statistics: var = E[x^2] - E[x]^2 (halves XLU reductions).
    n = h.shape[-1]
    inv_n = 1.0 / n
    s1 = jnp.sum(h, axis=-1, keepdims=True)
    s2 = jnp.sum(h * h, axis=-1, keepdims=True)
    mu = s1 * inv_n
    var = s2 * inv_n - mu * mu
    return (h - mu) * jax.lax.rsqrt(var + eps) * gamma + beta


def _gelu_tanh(x):
    # nn.GELU(approximate='tanh')
    c = math.sqrt(2.0 / math.pi)
    return 0.5 * x * (1.0 + jnp.tanh(c * (x + 0.044715 * x * x * x)))


def gpt_block_kernel(n_head, bb, T, hg, tq, fc_chunk,
                     x_ref,
                     ln1_g_ref, ln1_b_ref,
                     w_qkv_ref, b_qkv_ref,
                     w_attn_proj_ref, b_attn_proj_ref,
                     ln2_g_ref, ln2_b_ref,
                     w_fc_ref, b_fc_ref,
                     w_mlp_proj_ref, b_mlp_proj_ref,
                     o_ref,
                     qkv_scr, y_scr):
    R, C = x_ref.shape
    H = n_head
    D = C // H
    Dg = hg * D                       # lane width of a head group (128 at GPT scale)
    n_groups = H // hg
    n_qt = T // tq
    scale = 1.0 / math.sqrt(D)

    x = x_ref[...].astype(jnp.float32)                       # [R, C] rows, f32

    # ---------------- attention branch ----------------
    h = _layernorm(x, ln1_g_ref[0], ln1_b_ref[0])            # f32 stats
    qkv = (jnp.dot(h.astype(jnp.bfloat16), w_qkv_ref[...],
                   preferred_element_type=jnp.float32)
           + b_qkv_ref[0])                                   # [R, 3C] f32 (bias in f32)
    qkv_scr[...] = qkv.astype(jnp.bfloat16)                  # bf16 scratch for MXU reads

    # Hoisted iotas (JAX does not CSE broadcast_in_dim inside the loop).
    row = jax.lax.broadcasted_iota(jnp.int32, (tq, T), 0)
    col = jax.lax.broadcasted_iota(jnp.int32, (tq, T), 1)

    n_inner = n_groups * n_qt
    n_iters = bb * n_inner

    def attn_body(it, carry):
        # Decompose iteration index; fall back to static 0 for size-1 axes so
        # small configs use fully static (compile-time) slice offsets.
        b = it // n_inner if bb > 1 else 0
        rem = it % n_inner if bb > 1 else it
        g = rem // n_qt if n_groups > 1 else 0
        qi = rem % n_qt if n_qt > 1 else 0

        r0 = b * T
        rq = b * T + qi * tq
        c0 = g * Dg
        q0 = qi * tq
        if not isinstance(r0, int):
            r0 = pl.multiple_of(r0, T)
        if not isinstance(rq, int):
            rq = pl.multiple_of(rq, tq)
        if not isinstance(c0, int):
            c0 = pl.multiple_of(c0, Dg)

        # Lane-dense slabs for a whole head group (bf16, already MXU-ready).
        q_slab = qkv_scr[pl.ds(rq, tq), pl.ds(c0, Dg)]           # [tq, Dg]
        k_slab = qkv_scr[pl.ds(r0, T), pl.ds(C + c0, Dg)]        # [T,  Dg]
        v_slab = qkv_scr[pl.ds(r0, T), pl.ds(2 * C + c0, Dg)]    # [T,  Dg]

        causal = col <= (row + q0)                               # [tq, T]

        ys = []
        for hh in range(hg):                                     # small static loop
            qh = q_slab[:, hh * D:(hh + 1) * D]
            kh = k_slab[:, hh * D:(hh + 1) * D]
            vh = v_slab[:, hh * D:(hh + 1) * D]
            # q @ k.T via transposed-RHS contraction (no XLU transpose).
            s = jax.lax.dot_general(
                qh, kh, (((1,), (1,)), ((), ())),
                preferred_element_type=jnp.float32) * scale      # [tq, T] f32
            s = jnp.where(causal, s, -jnp.inf)
            s = s - jnp.max(s, axis=-1, keepdims=True)           # f32 softmax
            p = jnp.exp(s)
            # TODO(synk): on v6e/v7x a bf16 exp/GELU path would halve EUP time;
            # kept f32 for cross-generation numerics (v5e has no bf16 EUP).
            p = p * pl.reciprocal(jnp.sum(p, axis=-1, keepdims=True), approx=True)
            ys.append(jnp.dot(p.astype(jnp.bfloat16), vh,
                              preferred_element_type=jnp.float32))   # [tq, D] f32
        y_grp = ys[0] if hg == 1 else jnp.concatenate(ys, axis=-1)  # [tq, Dg]
        # Single lane-dense store for the whole head group.
        y_scr[pl.ds(rq, tq), pl.ds(c0, Dg)] = y_grp.astype(jnp.bfloat16)
        return carry

    jax.lax.fori_loop(0, n_iters, attn_body, 0, unroll=(n_iters <= 8))

    attn_out = (jnp.dot(y_scr[...], w_attn_proj_ref[...],
                        preferred_element_type=jnp.float32)
                + b_attn_proj_ref[0])
    x1 = x + attn_out                                         # residual 1 (f32)

    # ---------------- MLP branch (hidden dim chunked) ----------------
    h2 = _layernorm(x1, ln2_g_ref[0], ln2_b_ref[0])
    h2b = h2.astype(jnp.bfloat16)
    hidden = w_fc_ref.shape[1]
    n_chunks = hidden // fc_chunk
    mlp_acc = jnp.zeros_like(x1)                              # [R, C] f32
    for j in range(n_chunks):                                 # small static loop (<= 3)
        lo = j * fc_chunk
        hi = lo + fc_chunk
        fcj = (jnp.dot(h2b, w_fc_ref[:, lo:hi],
                       preferred_element_type=jnp.float32)
               + b_fc_ref[0, lo:hi])                          # [R, fc_chunk] f32
        fcj = _gelu_tanh(fcj)                                 # f32 GELU
        mlp_acc = mlp_acc + jnp.dot(fcj.astype(jnp.bfloat16),
                                    w_mlp_proj_ref[lo:hi, :],
                                    preferred_element_type=jnp.float32)

    o_ref[...] = (x1 + mlp_acc + b_mlp_proj_ref[0]).astype(o_ref.dtype)  # residual 2


def _estimate_vmem_bytes(R, C, T, tq, fc_chunk, Dg):
    f32, bf16 = 4, 2
    io = 2 * (R * C * f32) * 2                                   # in + out, double-buffered
    weights = (3 * C * C + C * C + 4 * C * C + 4 * C * C) * bf16  # single-buffered bf16
    vecs = (2 * C + 3 * C + C + 2 * C + 4 * C + C) * f32          # LN params + biases
    scratch = R * 3 * C * bf16 + R * C * bf16                    # qkv + y scratch
    attn = 3 * tq * T * f32 + 3 * T * max(Dg, 128) * bf16        # score/p tiles + slabs
    mlp = R * fc_chunk * (f32 + bf16) + 3 * R * C * f32          # fc chunk + h2/x1/acc
    return io + weights + vecs + scratch + attn + mlp


def gpt_block(x, params, n_head, rows_per_step=None):
    B, T, C = x.shape
    assert C % n_head == 0
    D = C // n_head

    # --- generation-aware budgets ---
    try:
        vmem_cap = int(pltpu.get_tpu_info().vmem_capacity_bytes)
    except Exception:
        vmem_cap = 64 * 1024 * 1024        # conservative (v7x per-TensorCore)

    if rows_per_step is None:
        rows_per_step = 1024 if vmem_cap >= (100 << 20) else 512

    # Keep >= 2 grid steps when possible so a 2-TC chip (v7x) shards the
    # "parallel" grid axis across both cores.
    max_bb = B if B < 2 else max(1, B // 2)
    bb = max(1, min(max_bb, max(1, rows_per_step // T)))
    while B % bb:
        bb -= 1
    R = bb * T

    # Head grouping -> 128-lane-dense slabs / stores where possible.
    hg = max(1, min(n_head, 128 // D)) if D < 128 else 1
    while n_head % hg:
        hg -= 1
    Dg = hg * D

    # Flash-style q tiling: bounds the per-head score tile to [tq, T].
    tq = T
    if T > 256:
        for cand in (256, 128, 64, 32, 16, 8):
            if T % cand == 0:
                tq = cand
                break

    # MLP hidden-dim chunking.
    hidden = 4 * C
    fc_chunk = hidden
    if hidden > 2048:
        for cand in (2048, 1536, 1024, 512, 256):
            if hidden % cand == 0:
                fc_chunk = cand
                break

    # Weights to bf16 (halves weight DMA/VMEM); biases & LN stay f32.
    # TODO(synk): optional fp8 weight storage for the v7x MXU fp8 path.
    w_qkv = params['w_qkv'].astype(jnp.bfloat16)
    w_attn_proj = params['w_attn_proj'].astype(jnp.bfloat16)
    w_fc = params['w_fc'].astype(jnp.bfloat16)
    w_mlp_proj = params['w_mlp_proj'].astype(jnp.bfloat16)

    param_list = [
        params['ln1_g'], params['ln1_b'],
        w_qkv, params['b_qkv'],
        w_attn_proj, params['b_attn_proj'],
        params['ln2_g'], params['ln2_b'],
        w_fc, params['b_fc'],
        w_mlp_proj, params['b_mlp_proj'],
    ]

    vmem_need = _estimate_vmem_bytes(R, C, T, tq, fc_chunk, Dg)
    vmem_limit = max(32 << 20, min(int(1.3 * vmem_need), int(0.8 * vmem_cap)))

    kernel = functools.partial(gpt_block_kernel, n_head, bb, T, hg, tq, fc_chunk)

    def build(single_buffer_weights):
        def const_spec(shape):
            nd = len(shape)
            if single_buffer_weights:
                # Grid-constant weights: single-buffered (no duplicate VMEM copy).
                return pl.BlockSpec(shape, lambda i: (0,) * nd,
                                    pipeline_mode=pl.Buffered(1))
            return pl.BlockSpec(shape, lambda i: (0,) * nd)

        in_specs = [pl.BlockSpec((R, C), lambda i: (i, 0))]
        in_specs += [const_spec(p.shape) for p in param_list]

        return pl.pallas_call(
            kernel,
            out_shape=jax.ShapeDtypeStruct((B * T, C), x.dtype),
            grid=(B // bb,),
            in_specs=in_specs,
            out_specs=pl.BlockSpec((R, C), lambda i: (i, 0)),
            scratch_shapes=[pltpu.VMEM((R, 3 * C), jnp.bfloat16),   # qkv (bf16)
                            pltpu.VMEM((R, C), jnp.bfloat16)],      # attn out (bf16)
            input_output_aliases={0: 0},   # donates the flattened-x buffer
            compiler_params=pltpu.CompilerParams(
                dimension_semantics=("parallel",),
                vmem_limit_bytes=vmem_limit),
        )

    try:
        out = build(True)(x.reshape(B * T, C), *param_list)
    except Exception:
        # Portability guard: fall back to default (double-buffered) weight specs
        # on jax versions where pipeline_mode=pl.Buffered(1) is not supported
        # for pallas_call BlockSpecs.
        out = build(False)(x.reshape(B * T, C), *param_list)

    return out.reshape(B, T, C)


def gpt_block_ref(x, params, n_head):
    """Pure-JAX f32 reference matching the PyTorch Block forward."""
    B, T, C = x.shape
    H = n_head
    D = C // H
    x = x.astype(jnp.float32)

    def ln(h, g, b, eps=1e-5):
        mu = jnp.mean(h, axis=-1, keepdims=True)
        var = jnp.mean((h - mu) ** 2, axis=-1, keepdims=True)
        return (h - mu) * jax.lax.rsqrt(var + eps) * g + b

    h = ln(x, params['ln1_g'][0], params['ln1_b'][0])
    qkv = h @ params['w_qkv'] + params['b_qkv'][0]
    q, k, v = jnp.split(qkv, 3, axis=-1)
    q = q.reshape(B, T, H, D).transpose(0, 2, 1, 3)
    k = k.reshape(B, T, H, D).transpose(0, 2, 1, 3)
    v = v.reshape(B, T, H, D).transpose(0, 2, 1, 3)
    scores = jnp.einsum('bhtd,bhsd->bhts', q, k) / math.sqrt(D)
    mask = jnp.tril(jnp.ones((T, T), dtype=bool))
    scores = jnp.where(mask[None, None], scores, -jnp.inf)
    p = jax.nn.softmax(scores, axis=-1)
    y = jnp.einsum('bhts,bhsd->bhtd', p, v).transpose(0, 2, 1, 3).reshape(B, T, C)
    attn_out = y @ params['w_attn_proj'] + params['b_attn_proj'][0]
    x1 = x + attn_out

    h2 = ln(x1, params['ln2_g'][0], params['ln2_b'][0])
    fc = _gelu_tanh(h2 @ params['w_fc'] + params['b_fc'][0])
    mlp_out = fc @ params['w_mlp_proj'] + params['b_mlp_proj'][0]
    return x1 + mlp_out


def init_params(key, n_embd):
    ks = jax.random.split(key, 8)
    s = 0.02
    C = n_embd
    return {
        'ln1_g': jnp.ones((1, C), jnp.float32),
        'ln1_b': jnp.zeros((1, C), jnp.float32),
        'w_qkv': s * jax.random.normal(ks[0], (C, 3 * C), jnp.float32),
        'b_qkv': s * jax.random.normal(ks[1], (1, 3 * C), jnp.float32),
        'w_attn_proj': s * jax.random.normal(ks[2], (C, C), jnp.float32),
        'b_attn_proj': s * jax.random.normal(ks[3], (1, C), jnp.float32),
        'ln2_g': jnp.ones((1, C), jnp.float32),
        'ln2_b': jnp.zeros((1, C), jnp.float32),
        'w_fc': s * jax.random.normal(ks[4], (C, 4 * C), jnp.float32),
        'b_fc': s * jax.random.normal(ks[5], (1, 4 * C), jnp.float32),
        'w_mlp_proj': s * jax.random.normal(ks[6], (4 * C, C), jnp.float32),
        'b_mlp_proj': s * jax.random.normal(ks[7], (1, C), jnp.float32),
    }


if __name__ == "__main__":
    # small GPTConfig-like setup: n_embd=32, n_head=4, seq=8, batch=2
    B, T, C, n_head = 2, 8, 32, 4
    key = jax.random.PRNGKey(0)
    kx, kp = jax.random.split(key)
    x = jax.random.normal(kx, (B, T, C), jnp.float32)
    params = init_params(kp, C)

    # Reference first (the kernel donates its flattened-input buffer).
    ref = gpt_block_ref(x, params, n_head)

    out = gpt_block(x, params, n_head)
    out = jax.block_until_ready(out)

    assert out.shape == (B, T, C)
    err = jnp.max(jnp.abs(out - ref))
    # bf16 MXU operands + approx reciprocal -> compare to the f32 reference
    # with a bf16-appropriate tolerance.
    assert jnp.allclose(out, ref, atol=3e-2, rtol=3e-2), f"max err {err}"
    print("KERNEL_OK")
</pallas_src>

<mosaic_0001>
module attributes {stable_mosaic.version = 11 : i64} {
  func.func @gpt_block_kernel(%arg0: i32, %arg1: memref<8x32xf32, #tpu.memory_space<vmem>>, %arg2: memref<1x32xf32, #tpu.memory_space<vmem>>, %arg3: memref<1x32xf32, #tpu.memory_space<vmem>>, %arg4: memref<32x96xbf16, #tpu.memory_space<vmem>>, %arg5: memref<1x96xf32, #tpu.memory_space<vmem>>, %arg6: memref<32x32xbf16, #tpu.memory_space<vmem>>, %arg7: memref<1x32xf32, #tpu.memory_space<vmem>>, %arg8: memref<1x32xf32, #tpu.memory_space<vmem>>, %arg9: memref<1x32xf32, #tpu.memory_space<vmem>>, %arg10: memref<32x128xbf16, #tpu.memory_space<vmem>>, %arg11: memref<1x128xf32, #tpu.memory_space<vmem>>, %arg12: memref<128x32xbf16, #tpu.memory_space<vmem>>, %arg13: memref<1x32xf32, #tpu.memory_space<vmem>>, %arg14: memref<8x32xf32, #tpu.memory_space<vmem>>, %arg15: memref<8x96xbf16, #tpu.memory_space<vmem>>, %arg16: memref<8x32xbf16, #tpu.memory_space<vmem>>) attributes {dimension_semantics = [#tpu.dimension_semantics<parallel>], iteration_bounds = array<i64: 2>, scalar_prefetch = 0 : i64, scratch_operands = 2 : i64, tpu.core_type = #tpu.core_type<tc>, window_params = [{transform_indices = @transform_0, window_bounds = array<i64: 8, 32>}, {pipeline_mode = #tpu.pipeline_mode<synchronous>, transform_indices = @transform_1, window_bounds = array<i64: 1, 32>}, {pipeline_mode = #tpu.pipeline_mode<synchronous>, transform_indices = @transform_2, window_bounds = array<i64: 1, 32>}, {pipeline_mode = #tpu.pipeline_mode<synchronous>, transform_indices = @transform_3, window_bounds = array<i64: 32, 96>}, {pipeline_mode = #tpu.pipeline_mode<synchronous>, transform_indices = @transform_4, window_bounds = array<i64: 1, 96>}, {pipeline_mode = #tpu.pipeline_mode<synchronous>, transform_indices = @transform_5, window_bounds = array<i64: 32, 32>}, {pipeline_mode = #tpu.pipeline_mode<synchronous>, transform_indices = @transform_6, window_bounds = array<i64: 1, 32>}, {pipeline_mode = #tpu.pipeline_mode<synchronous>, transform_indices = @transform_7, window_bounds = array<i64: 1, 32>}, {pipeline_mode = #tpu.pipeline_mode<synchronous>, transform_indices = @transform_8, window_bounds = array<i64: 1, 32>}, {pipeline_mode = #tpu.pipeline_mode<synchronous>, transform_indices = @transform_9, window_bounds = array<i64: 32, 128>}, {pipeline_mode = #tpu.pipeline_mode<synchronous>, transform_indices = @transform_10, window_bounds = array<i64: 1, 128>}, {pipeline_mode = #tpu.pipeline_mode<synchronous>, transform_indices = @transform_11, window_bounds = array<i64: 128, 32>}, {pipeline_mode = #tpu.pipeline_mode<synchronous>, transform_indices = @transform_12, window_bounds = array<i64: 1, 32>}, {transform_indices = @transform_13, window_bounds = array<i64: 8, 32>}]} {
    %c0 = arith.constant 0 : index
    %c0_0 = arith.constant 0 : index
    %0 = vector.load %arg1[%c0, %c0_0] : memref<8x32xf32, #tpu.memory_space<vmem>>, vector<8x32xf32>
    %c0_1 = arith.constant 0 : index
    %c0_2 = arith.constant 0 : index
    %1 = vector.load %arg2[%c0_1, %c0_2] : memref<1x32xf32, #tpu.memory_space<vmem>>, vector<1x32xf32>
    %2 = vector.shape_cast %1 : vector<1x32xf32> to vector<32xf32>
    %c0_3 = arith.constant 0 : index
    %c0_4 = arith.constant 0 : index
    %3 = vector.load %arg3[%c0_3, %c0_4] : memref<1x32xf32, #tpu.memory_space<vmem>>, vector<1x32xf32>
    %4 = vector.shape_cast %3 : vector<1x32xf32> to vector<32xf32>
    %cst = arith.constant dense<0.000000e+00> : vector<8xf32>
    %5 = vector.multi_reduction <add>, %0, %cst [1] : vector<8x32xf32> to vector<8xf32>
    %6 = vector.shape_cast %5 : vector<8xf32> to vector<8x1xf32>
    %7 = arith.mulf %0, %0 : vector<8x32xf32>
    %cst_5 = arith.constant dense<0.000000e+00> : vector<8xf32>
    %8 = vector.multi_reduction <add>, %7, %cst_5 [1] : vector<8x32xf32> to vector<8xf32>
    %9 = vector.shape_cast %8 : vector<8xf32> to vector<8x1xf32>
    %cst_6 = arith.constant 3.125000e-02 : f32
    %10 = vector.broadcast %cst_6 : f32 to vector<8x1xf32>
    %11 = arith.mulf %6, %10 : vector<8x1xf32>
    %cst_7 = arith.constant 3.125000e-02 : f32
    %12 = vector.broadcast %cst_7 : f32 to vector<8x1xf32>
    %13 = arith.mulf %9, %12 : vector<8x1xf32>
    %14 = arith.mulf %11, %11 : vector<8x1xf32>
    %15 = arith.subf %13, %14 : vector<8x1xf32>
    %16 = vector.broadcast %11 : vector<8x1xf32> to vector<8x32xf32>
    %17 = arith.subf %0, %16 : vector<8x32xf32>
    %cst_8 = arith.constant 9.99999974E-6 : f32
    %18 = vector.broadcast %cst_8 : f32 to vector<8x1xf32>
    %19 = arith.addf %15, %18 : vector<8x1xf32>
    %20 = math.rsqrt %19 : vector<8x1xf32>
    %21 = vector.broadcast %20 : vector<8x1xf32> to vector<8x32xf32>
    %22 = arith.mulf %17, %21 : vector<8x32xf32>
    %23 = vector.shape_cast %2 : vector<32xf32> to vector<1x32xf32>
    %24 = vector.broadcast %23 : vector<1x32xf32> to vector<8x32xf32>
    %25 = arith.mulf %22, %24 : vector<8x32xf32>
    %26 = vector.shape_cast %4 : vector<32xf32> to vector<1x32xf32>
    %27 = vector.broadcast %26 : vector<1x32xf32> to vector<8x32xf32>
    %28 = arith.addf %25, %27 : vector<8x32xf32>
    %29 = arith.truncf %28 : vector<8x32xf32> to vector<8x32xbf16>
    %c0_9 = arith.constant 0 : index
    %c0_10 = arith.constant 0 : index
    %30 = vector.load %arg4[%c0_9, %c0_10] : memref<32x96xbf16, #tpu.memory_space<vmem>>, vector<32x96xbf16>
    %cst_11 = arith.constant dense<0.000000e+00> : vector<8x96xf32>
    %31 = tpu.matmul %29, %30, %cst_11 {dimension_numbers = #tpu.dot_dimension_numbers<[1], [0], [0], [1], [0, 0, 1, 1], [], []>} : vector<8x32xbf16>, vector<32x96xbf16>, vector<8x96xf32> -> vector<8x96xf32>
    %c0_12 = arith.constant 0 : index
    %c0_13 = arith.constant 0 : index
    %32 = vector.load %arg5[%c0_12, %c0_13] : memref<1x96xf32, #tpu.memory_space<vmem>>, vector<1x96xf32>
    %33 = vector.shape_cast %32 : vector<1x96xf32> to vector<96xf32>
    %34 = vector.shape_cast %33 : vector<96xf32> to vector<1x96xf32>
    %35 = vector.broadcast %34 : vector<1x96xf32> to vector<8x96xf32>
    %36 = arith.addf %31, %35 : vector<8x96xf32>
    %37 = arith.truncf %36 : vector<8x96xf32> to vector<8x96xbf16>
    %c0_14 = arith.constant 0 : index
    %c0_15 = arith.constant 0 : index
    %38 = vector.load %arg15[%c0_14, %c0_15] : memref<8x96xbf16, #tpu.memory_space<vmem>>, vector<8x96xbf16>
    tpu.vector_store %arg15[%c0_14, %c0_15], %37 {strides = array<i32>} : memref<8x96xbf16, #tpu.memory_space<vmem>>, vector<8x96xbf16>,
    %39 = tpu.iota {dimensions = array<i32: 0>} : vector<8x8xi32>
    %40 = tpu.iota {dimensions = array<i32: 1>} : vector<8x8xi32>
    %c0_i32 = arith.constant 0 : i32
    %c0_16 = arith.constant 0 : index
    %c0_17 = arith.constant 0 : index
    %41 = vector.load %arg15[%c0_16, %c0_17] : memref<8x96xbf16, #tpu.memory_space<vmem>>, vector<8x32xbf16>
    %c0_18 = arith.constant 0 : index
    %c32 = arith.constant 32 : index
    %42 = vector.load %arg15[%c0_18, %c32] : memref<8x96xbf16, #tpu.memory_space<vmem>>, vector<8x32xbf16>
    %c0_19 = arith.constant 0 : index
    %c64 = arith.constant 64 : index
    %43 = vector.load %arg15[%c0_19, %c64] : memref<8x96xbf16, #tpu.memory_space<vmem>>, vector<8x32xbf16>
    %c0_i32_20 = arith.constant 0 : i32
    %44 = vector.broadcast %c0_i32_20 : i32 to vector<8x8xi32>
    %45 = arith.addi %39, %44 : vector<8x8xi32>
    %46 = arith.cmpi sle, %40, %45 : vector<8x8xi32>
    %47 = vector.extract_strided_slice %41 {offsets = [0, 0], sizes = [8, 8], strides = [1, 1]} : vector<8x32xbf16> to vector<8x8xbf16>
    %48 = vector.extract_strided_slice %42 {offsets = [0, 0], sizes = [8, 8], strides = [1, 1]} : vector<8x32xbf16> to vector<8x8xbf16>
    %49 = vector.extract_strided_slice %43 {offsets = [0, 0], sizes = [8, 8], strides = [1, 1]} : vector<8x32xbf16> to vector<8x8xbf16>
    %cst_21 = arith.constant dense<0.000000e+00> : vector<8x8xf32>
    %50 = tpu.matmul %47, %48, %cst_21 {dimension_numbers = #tpu.dot_dimension_numbers<[1], [1], [0], [0], [0, 0, 1, 0], [], []>} : vector<8x8xbf16>, vector<8x8xbf16>, vector<8x8xf32> -> vector<8x8xf32>
    %cst_22 = arith.constant 0.353553385 : f32
    %51 = vector.broadcast %cst_22 : f32 to vector<8x8xf32>
    %52 = arith.mulf %50, %51 : vector<8x8xf32>
    %cst_23 = arith.constant 0xFF800000 : f32
    %53 = vector.broadcast %cst_23 : f32 to vector<8x8xf32>
    %54 = arith.select %46, %52, %53 : vector<8x8xi1>, vector<8x8xf32>
    %cst_24 = arith.constant dense<0xFF800000> : vector<8xf32>
    %55 = vector.multi_reduction <maximumf>, %54, %cst_24 [1] : vector<8x8xf32> to vector<8xf32>
    %56 = vector.shape_cast %55 : vector<8xf32> to vector<8x1xf32>
    %57 = vector.broadcast %56 : vector<8x1xf32> to vector<8x8xf32>
    %58 = arith.subf %54, %57 : vector<8x8xf32>
    %59 = math.exp %58 : vector<8x8xf32>
    %cst_25 = arith.constant dense<0.000000e+00> : vector<8xf32>
    %60 = vector.multi_reduction <add>, %59, %cst_25 [1] : vector<8x8xf32> to vector<8xf32>
    %61 = vector.shape_cast %60 : vector<8xf32> to vector<8x1xf32>
    %62 = tpu.reciprocal %61 {approx = true} : vector<8x1xf32> -> vector<8x1xf32>
    %63 = vector.broadcast %62 : vector<8x1xf32> to vector<8x8xf32>
    %64 = arith.mulf %59, %63 : vector<8x8xf32>
    %65 = arith.truncf %64 : vector<8x8xf32> to vector<8x8xbf16>
    %cst_26 = arith.constant dense<0.000000e+00> : vector<8x8xf32>
    %66 = tpu.matmul %65, %49, %cst_26 {dimension_numbers = #tpu.dot_dimension_numbers<[1], [0], [0], [1], [0, 0, 1, 1], [], []>} : vector<8x8xbf16>, vector<8x8xbf16>, vector<8x8xf32> -> vector<8x8xf32>
    %67 = vector.extract_strided_slice %41 {offsets = [0, 8], sizes = [8, 8], strides = [1, 1]} : vector<8x32xbf16> to vector<8x8xbf16>
    %68 = vector.extract_strided_slice %42 {offsets = [0, 8], sizes = [8, 8], strides = [1, 1]} : vector<8x32xbf16> to vector<8x8xbf16>
    %69 = vector.extract_strided_slice %43 {offsets = [0, 8], sizes = [8, 8], strides = [1, 1]} : vector<8x32xbf16> to vector<8x8xbf16>
    %cst_27 = arith.constant dense<0.000000e+00> : vector<8x8xf32>
    %70 = tpu.matmul %67, %68, %cst_27 {dimension_numbers = #tpu.dot_dimension_numbers<[1], [1], [0], [0], [0, 0, 1, 0], [], []>} : vector<8x8xbf16>, vector<8x8xbf16>, vector<8x8xf32> -> vector<8x8xf32>
    %cst_28 = arith.constant 0.353553385 : f32
    %71 = vector.broadcast %cst_28 : f32 to vector<8x8xf32>
    %72 = arith.mulf %70, %71 : vector<8x8xf32>
    %cst_29 = arith.constant 0xFF800000 : f32
    %73 = vector.broadcast %cst_29 : f32 to vector<8x8xf32>
    %74 = arith.select %46, %72, %73 : vector<8x8xi1>, vector<8x8xf32>
    %cst_30 = arith.constant dense<0xFF800000> : vector<8xf32>
    %75 = vector.multi_reduction <maximumf>, %74, %cst_30 [1] : vector<8x8xf32> to vector<8xf32>
    %76 = vector.shape_cast %75 : vector<8xf32> to vector<8x1xf32>
    %77 = vector.broadcast %76 : vector<8x1xf32> to vector<8x8xf32>
    %78 = arith.subf %74, %77 : vector<8x8xf32>
    %79 = math.exp %78 : vector<8x8xf32>
    %cst_31 = arith.constant dense<0.000000e+00> : vector<8xf32>
    %80 = vector.multi_reduction <add>, %79, %cst_31 [1] : vector<8x8xf32> to vector<8xf32>
    %81 = vector.shape_cast %80 : vector<8xf32> to vector<8x1xf32>
    %82 = tpu.reciprocal %81 {approx = true} : vector<8x1xf32> -> vector<8x1xf32>
    %83 = vector.broadcast %82 : vector<8x1xf32> to vector<8x8xf32>
    %84 = arith.mulf %79, %83 : vector<8x8xf32>
    %85 = arith.truncf %84 : vector<8x8xf32> to vector<8x8xbf16>
    %cst_32 = arith.constant dense<0.000000e+00> : vector<8x8xf32>
    %86 = tpu.matmul %85, %69, %cst_32 {dimension_numbers = #tpu.dot_dimension_numbers<[1], [0], [0], [1], [0, 0, 1, 1], [], []>} : vector<8x8xbf16>, vector<8x8xbf16>, vector<8x8xf32> -> vector<8x8xf32>
    %87 = vector.extract_strided_slice %41 {offsets = [0, 16], sizes = [8, 8], strides = [1, 1]} : vector<8x32xbf16> to vector<8x8xbf16>
    %88 = vector.extract_strided_slice %42 {offsets = [0, 16], sizes = [8, 8], strides = [1, 1]} : vector<8x32xbf16> to vector<8x8xbf16>
    %89 = vector.extract_strided_slice %43 {offsets = [0, 16], sizes = [8, 8], strides = [1, 1]} : vector<8x32xbf16> to vector<8x8xbf16>
    %cst_33 = arith.constant dense<0.000000e+00> : vector<8x8xf32>
    %90 = tpu.matmul %87, %88, %cst_33 {dimension_numbers = #tpu.dot_dimension_numbers<[1], [1], [0], [0], [0, 0, 1, 0], [], []>} : vector<8x8xbf16>, vector<8x8xbf16>, vector<8x8xf32> -> vector<8x8xf32>
    %cst_34 = arith.constant 0.353553385 : f32
    %91 = vector.broadcast %cst_34 : f32 to vector<8x8xf32>
    %92 = arith.mulf %90, %91 : vector<8x8xf32>
    %cst_35 = arith.constant 0xFF800000 : f32
    %93 = vector.broadcast %cst_35 : f32 to vector<8x8xf32>
    %94 = arith.select %46, %92, %93 : vector<8x8xi1>, vector<8x8xf32>
    %cst_36 = arith.constant dense<0xFF800000> : vector<8xf32>
    %95 = vector.multi_reduction <maximumf>, %94, %cst_36 [1] : vector<8x8xf32> to vector<8xf32>
    %96 = vector.shape_cast %95 : vector<8xf32> to vector<8x1xf32>
    %97 = vector.broadcast %96 : vector<8x1xf32> to vector<8x8xf32>
    %98 = arith.subf %94, %97 : vector<8x8xf32>
    %99 = math.exp %98 : vector<8x8xf32>
    %cst_37 = arith.constant dense<0.000000e+00> : vector<8xf32>
    %100 = vector.multi_reduction <add>, %99, %cst_37 [1] : vector<8x8xf32> to vector<8xf32>
    %101 = vector.shape_cast %100 : vector<8xf32> to vector<8x1xf32>
    %102 = tpu.reciprocal %101 {approx = true} : vector<8x1xf32> -> vector<8x1xf32>
    %103 = vector.broadcast %102 : vector<8x1xf32> to vector<8x8xf32>
    %104 = arith.mulf %99, %103 : vector<8x8xf32>
    %105 = arith.truncf %104 : vector<8x8xf32> to vector<8x8xbf16>
    %cst_38 = arith.constant dense<0.000000e+00> : vector<8x8xf32>
    %106 = tpu.matmul %105, %89, %cst_38 {dimension_numbers = #tpu.dot_dimension_numbers<[1], [0], [0], [1], [0, 0, 1, 1], [], []>} : vector<8x8xbf16>, vector<8x8xbf16>, vector<8x8xf32> -> vector<8x8xf32>
    %107 = vector.extract_strided_slice %41 {offsets = [0, 24], sizes = [8, 8], strides = [1, 1]} : vector<8x32xbf16> to vector<8x8xbf16>
    %108 = vector.extract_strided_slice %42 {offsets = [0, 24], sizes = [8, 8], strides = [1, 1]} : vector<8x32xbf16> to vector<8x8xbf16>
    %109 = vector.extract_strided_slice %43 {offsets = [0, 24], sizes = [8, 8], strides = [1, 1]} : vector<8x32xbf16> to vector<8x8xbf16>
    %cst_39 = arith.constant dense<0.000000e+00> : vector<8x8xf32>
    %110 = tpu.matmul %107, %108, %cst_39 {dimension_numbers = #tpu.dot_dimension_numbers<[1], [1], [0], [0], [0, 0, 1, 0], [], []>} : vector<8x8xbf16>, vector<8x8xbf16>, vector<8x8xf32> -> vector<8x8xf32>
    %cst_40 = arith.constant 0.353553385 : f32
    %111 = vector.broadcast %cst_40 : f32 to vector<8x8xf32>
    %112 = arith.mulf %110, %111 : vector<8x8xf32>
    %cst_41 = arith.constant 0xFF800000 : f32
    %113 = vector.broadcast %cst_41 : f32 to vector<8x8xf32>
    %114 = arith.select %46, %112, %113 : vector<8x8xi1>, vector<8x8xf32>
    %cst_42 = arith.constant dense<0xFF800000> : vector<8xf32>
    %115 = vector.multi_reduction <maximumf>, %114, %cst_42 [1] : vector<8x8xf32> to vector<8xf32>
    %116 = vector.shape_cast %115 : vector<8xf32> to vector<8x1xf32>
    %117 = vector.broadcast %116 : vector<8x1xf32> to vector<8x8xf32>
    %118 = arith.subf %114, %117 : vector<8x8xf32>
    %119 = math.exp %118 : vector<8x8xf32>
    %cst_43 = arith.constant dense<0.000000e+00> : vector<8xf32>
    %120 = vector.multi_reduction <add>, %119, %cst_43 [1] : vector<8x8xf32> to vector<8xf32>
    %121 = vector.shape_cast %120 : vector<8xf32> to vector<8x1xf32>
    %122 = tpu.reciprocal %121 {approx = true} : vector<8x1xf32> -> vector<8x1xf32>
    %123 = vector.broadcast %122 : vector<8x1xf32> to vector<8x8xf32>
    %124 = arith.mulf %119, %123 : vector<8x8xf32>
    %125 = arith.truncf %124 : vector<8x8xf32> to vector<8x8xbf16>
    %cst_44 = arith.constant dense<0.000000e+00> : vector<8x8xf32>
    %126 = tpu.matmul %125, %109, %cst_44 {dimension_numbers = #tpu.dot_dimension_numbers<[1], [0], [0], [1], [0, 0, 1, 1], [], []>} : vector<8x8xbf16>, vector<8x8xbf16>, vector<8x8xf32> -> vector<8x8xf32>
    %127 = tpu.concatenate %66, %86, %106, %126 in 1 : vector<8x8xf32>, vector<8x8xf32>, vector<8x8xf32>, vector<8x8xf32> -> vector<8x32xf32>
    %128 = arith.truncf %127 : vector<8x32xf32> to vector<8x32xbf16>
    %c0_45 = arith.constant 0 : index
    %c0_46 = arith.constant 0 : index
    %129 = vector.load %arg16[%c0_45, %c0_46] : memref<8x32xbf16, #tpu.memory_space<vmem>>, vector<8x32xbf16>
    tpu.vector_store %arg16[%c0_45, %c0_46], %128 {strides = array<i32>} : memref<8x32xbf16, #tpu.memory_space<vmem>>, vector<8x32xbf16>,
    %c0_47 = arith.constant 0 : index
    %c0_48 = arith.constant 0 : index
    %130 = vector.load %arg16[%c0_47, %c0_48] : memref<8x32xbf16, #tpu.memory_space<vmem>>, vector<8x32xbf16>
    %c0_49 = arith.constant 0 : index
    %c0_50 = arith.constant 0 : index
    %131 = vector.load %arg6[%c0_49, %c0_50] : memref<32x32xbf16, #tpu.memory_space<vmem>>, vector<32x32xbf16>
    %cst_51 = arith.constant dense<0.000000e+00> : vector<8x32xf32>
    %132 = tpu.matmul %130, %131, %cst_51 {dimension_numbers = #tpu.dot_dimension_numbers<[1], [0], [0], [1], [0, 0, 1, 1], [], []>} : vector<8x32xbf16>, vector<32x32xbf16>, vector<8x32xf32> -> vector<8x32xf32>
    %c0_52 = arith.constant 0 : index
    %c0_53 = arith.constant 0 : index
    %133 = vector.load %arg7[%c0_52, %c0_53] : memref<1x32xf32, #tpu.memory_space<vmem>>, vector<1x32xf32>
    %134 = vector.shape_cast %133 : vector<1x32xf32> to vector<32xf32>
    %135 = vector.shape_cast %134 : vector<32xf32> to vector<1x32xf32>
    %136 = vector.broadcast %135 : vector<1x32xf32> to vector<8x32xf32>
    %137 = arith.addf %132, %136 : vector<8x32xf32>
    %138 = arith.addf %0, %137 : vector<8x32xf32>
    %c0_54 = arith.constant 0 : index
    %c0_55 = arith.constant 0 : index
    %139 = vector.load %arg8[%c0_54, %c0_55] : memref<1x32xf32, #tpu.memory_space<vmem>>, vector<1x32xf32>
    %140 = vector.shape_cast %139 : vector<1x32xf32> to vector<32xf32>
    %c0_56 = arith.constant 0 : index
    %c0_57 = arith.constant 0 : index
    %141 = vector.load %arg9[%c0_56, %c0_57] : memref<1x32xf32, #tpu.memory_space<vmem>>, vector<1x32xf32>
    %142 = vector.shape_cast %141 : vector<1x32xf32> to vector<32xf32>
    %cst_58 = arith.constant dense<0.000000e+00> : vector<8xf32>
    %143 = vector.multi_reduction <add>, %138, %cst_58 [1] : vector<8x32xf32> to vector<8xf32>
    %144 = vector.shape_cast %143 : vector<8xf32> to vector<8x1xf32>
    %145 = arith.mulf %138, %138 : vector<8x32xf32>
    %cst_59 = arith.constant dense<0.000000e+00> : vector<8xf32>
    %146 = vector.multi_reduction <add>, %145, %cst_59 [1] : vector<8x32xf32> to vector<8xf32>
    %147 = vector.shape_cast %146 : vector<8xf32> to vector<8x1xf32>
    %cst_60 = arith.constant 3.125000e-02 : f32
    %148 = vector.broadcast %cst_60 : f32 to vector<8x1xf32>
    %149 = arith.mulf %144, %148 : vector<8x1xf32>
    %cst_61 = arith.constant 3.125000e-02 : f32
    %150 = vector.broadcast %cst_61 : f32 to vector<8x1xf32>
    %151 = arith.mulf %147, %150 : vector<8x1xf32>
    %152 = arith.mulf %149, %149 : vector<8x1xf32>
    %153 = arith.subf %151, %152 : vector<8x1xf32>
    %154 = vector.broadcast %149 : vector<8x1xf32> to vector<8x32xf32>
    %155 = arith.subf %138, %154 : vector<8x32xf32>
    %cst_62 = arith.constant 9.99999974E-6 : f32
    %156 = vector.broadcast %cst_62 : f32 to vector<8x1xf32>
    %157 = arith.addf %153, %156 : vector<8x1xf32>
    %158 = math.rsqrt %157 : vector<8x1xf32>
    %159 = vector.broadcast %158 : vector<8x1xf32> to vector<8x32xf32>
    %160 = arith.mulf %155, %159 : vector<8x32xf32>
    %161 = vector.shape_cast %140 : vector<32xf32> to vector<1x32xf32>
    %162 = vector.broadcast %161 : vector<1x32xf32> to vector<8x32xf32>
    %163 = arith.mulf %160, %162 : vector<8x32xf32>
    %164 = vector.shape_cast %142 : vector<32xf32> to vector<1x32xf32>
    %165 = vector.broadcast %164 : vector<1x32xf32> to vector<8x32xf32>
    %166 = arith.addf %163, %165 : vector<8x32xf32>
    %167 = arith.truncf %166 : vector<8x32xf32> to vector<8x32xbf16>
    %cst_63 = arith.constant 0.000000e+00 : f32
    %168 = vector.broadcast %cst_63 : f32 to vector<8x32xf32>
    %c0_64 = arith.constant 0 : index
    %c0_65 = arith.constant 0 : index
    %169 = vector.load %arg10[%c0_64, %c0_65] : memref<32x128xbf16, #tpu.memory_space<vmem>>, vector<32x128xbf16>
    %cst_66 = arith.constant dense<0.000000e+00> : vector<8x128xf32>
    %170 = tpu.matmul %167, %169, %cst_66 {dimension_numbers = #tpu.dot_dimension_numbers<[1], [0], [0], [1], [0, 0, 1, 1], [], []>} : vector<8x32xbf16>, vector<32x128xbf16>, vector<8x128xf32> -> vector<8x128xf32>
    %c0_67 = arith.constant 0 : index
    %c0_68 = arith.constant 0 : index
    %171 = vector.load %arg11[%c0_67, %c0_68] : memref<1x128xf32, #tpu.memory_space<vmem>>, vector<1x128xf32>
    %172 = vector.shape_cast %171 : vector<1x128xf32> to vector<128xf32>
    %173 = vector.shape_cast %172 : vector<128xf32> to vector<1x128xf32>
    %174 = vector.broadcast %173 : vector<1x128xf32> to vector<8x128xf32>
    %175 = arith.addf %170, %174 : vector<8x128xf32>
    %cst_69 = arith.constant 5.000000e-01 : f32
    %176 = vector.broadcast %cst_69 : f32 to vector<8x128xf32>
    %177 = arith.mulf %176, %175 : vector<8x128xf32>
    %cst_70 = arith.constant 4.471500e-02 : f32
    %178 = vector.broadcast %cst_70 : f32 to vector<8x128xf32>
    %179 = arith.mulf %178, %175 : vector<8x128xf32>
    %180 = arith.mulf %179, %175 : vector<8x128xf32>
    %181 = arith.mulf %180, %175 : vector<8x128xf32>
    %182 = arith.addf %175, %181 : vector<8x128xf32>
    %cst_71 = arith.constant 0.797884583 : f32
    %183 = vector.broadcast %cst_71 : f32 to vector<8x128xf32>
    %184 = arith.mulf %183, %182 : vector<8x128xf32>
    %185 = math.tanh %184 : vector<8x128xf32>
    %cst_72 = arith.constant 1.000000e+00 : f32
    %186 = vector.broadcast %cst_72 : f32 to vector<8x128xf32>
    %187 = arith.addf %186, %185 : vector<8x128xf32>
    %188 = arith.mulf %177, %187 : vector<8x128xf32>
    %189 = arith.truncf %188 : vector<8x128xf32> to vector<8x128xbf16>
    %c0_73 = arith.constant 0 : index
    %c0_74 = arith.constant 0 : index
    %190 = vector.load %arg12[%c0_73, %c0_74] : memref<128x32xbf16, #tpu.memory_space<vmem>>, vector<128x32xbf16>
    %cst_75 = arith.constant dense<0.000000e+00> : vector<8x32xf32>
    %191 = tpu.matmul %189, %190, %cst_75 {dimension_numbers = #tpu.dot_dimension_numbers<[1], [0], [0], [1], [0, 0, 1, 1], [], []>} : vector<8x128xbf16>, vector<128x32xbf16>, vector<8x32xf32> -> vector<8x32xf32>
    %192 = arith.addf %168, %191 : vector<8x32xf32>
    %193 = arith.addf %138, %192 : vector<8x32xf32>
    %c0_76 = arith.constant 0 : index
    %c0_77 = arith.constant 0 : index
    %194 = vector.load %arg13[%c0_76, %c0_77] : memref<1x32xf32, #tpu.memory_space<vmem>>, vector<1x32xf32>
    %195 = vector.shape_cast %194 : vector<1x32xf32> to vector<32xf32>
    %196 = vector.shape_cast %195 : vector<32xf32> to vector<1x32xf32>
    %197 = vector.broadcast %196 : vector<1x32xf32> to vector<8x32xf32>
    %198 = arith.addf %193, %197 : vector<8x32xf32>
    %c0_78 = arith.constant 0 : index
    %c0_79 = arith.constant 0 : index
    %199 = vector.load %arg14[%c0_78, %c0_79] : memref<8x32xf32, #tpu.memory_space<vmem>>, vector<8x32xf32>
    tpu.vector_store %arg14[%c0_78, %c0_79], %198 {strides = array<i32>} : memref<8x32xf32, #tpu.memory_space<vmem>>, vector<8x32xf32>,
    return
  }
  func.func @transform_0(%arg0: i32) -> (i32, i32) {
    %c0_i32 = arith.constant 0 : i32
    %c0_i32_0 = arith.constant 0 : i32
    return %arg0, %c0_i32 : i32, i32
  }
  func.func @transform_1(%arg0: i32) -> (i32, i32) {
    %c0_i32 = arith.constant 0 : i32
    %c0_i32_0 = arith.constant 0 : i32
    %c0_i32_1 = arith.constant 0 : i32
    return %c0_i32, %c0_i32_0 : i32, i32
  }
  func.func @transform_2(%arg0: i32) -> (i32, i32) {
    %c0_i32 = arith.constant 0 : i32
    %c0_i32_0 = arith.constant 0 : i32
    %c0_i32_1 = arith.constant 0 : i32
    return %c0_i32, %c0_i32_0 : i32, i32
  }
  func.func @transform_3(%arg0: i32) -> (i32, i32) {
    %c0_i32 = arith.constant 0 : i32
    %c0_i32_0 = arith.constant 0 : i32
    %c0_i32_1 = arith.constant 0 : i32
    return %c0_i32, %c0_i32_0 : i32, i32
  }
  func.func @transform_4(%arg0: i32) -> (i32, i32) {
    %c0_i32 = arith.constant 0 : i32
    %c0_i32_0 = arith.constant 0 : i32
    %c0_i32_1 = arith.constant 0 : i32
    return %c0_i32, %c0_i32_0 : i32, i32
  }
  func.func @transform_5(%arg0: i32) -> (i32, i32) {
    %c0_i32 = arith.constant 0 : i32
    %c0_i32_0 = arith.constant 0 : i32
    %c0_i32_1 = arith.constant 0 : i32
    return %c0_i32, %c0_i32_0 : i32, i32
  }
  func.func @transform_6(%arg0: i32) -> (i32, i32) {
    %c0_i32 = arith.constant 0 : i32
    %c0_i32_0 = arith.constant 0 : i32
    %c0_i32_1 = arith.constant 0 : i32
    return %c0_i32, %c0_i32_0 : i32, i32
  }
  func.func @transform_7(%arg0: i32) -> (i32, i32) {
    %c0_i32 = arith.constant 0 : i32
    %c0_i32_0 = arith.constant 0 : i32
    %c0_i32_1 = arith.constant 0 : i32
    return %c0_i32, %c0_i32_0 : i32, i32
  }
  func.func @transform_8(%arg0: i32) -> (i32, i32) {
    %c0_i32 = arith.constant 0 : i32
    %c0_i32_0 = arith.constant 0 : i32
    %c0_i32_1 = arith.constant 0 : i32
    return %c0_i32, %c0_i32_0 : i32, i32
  }
  func.func @transform_9(%arg0: i32) -> (i32, i32) {
    %c0_i32 = arith.constant 0 : i32
    %c0_i32_0 = arith.constant 0 : i32
    %c0_i32_1 = arith.constant 0 : i32
    return %c0_i32, %c0_i32_0 : i32, i32
  }
  func.func @transform_10(%arg0: i32) -> (i32, i32) {
    %c0_i32 = arith.constant 0 : i32
    %c0_i32_0 = arith.constant 0 : i32
    %c0_i32_1 = arith.constant 0 : i32
    return %c0_i32, %c0_i32_0 : i32, i32
  }
  func.func @transform_11(%arg0: i32) -> (i32, i32) {
    %c0_i32 = arith.constant 0 : i32
    %c0_i32_0 = arith.constant 0 : i32
    %c0_i32_1 = arith.constant 0 : i32
    return %c0_i32, %c0_i32_0 : i32, i32
  }
  func.func @transform_12(%arg0: i32) -> (i32, i32) {
    %c0_i32 = arith.constant 0 : i32
    %c0_i32_0 = arith.constant 0 : i32
    %c0_i32_1 = arith.constant 0 : i32
    return %c0_i32, %c0_i32_0 : i32, i32
  }
  func.func @transform_13(%arg0: i32) -> (i32, i32) {
    %c0_i32 = arith.constant 0 : i32
    %c0_i32_0 = arith.constant 0 : i32
    return %arg0, %c0_i32 : i32, i32
  }
}

module attributes {stable_mosaic.version = 11 : i64} {
  func.func @gpt_block_kernel(%arg0: i32, %arg1: memref<8x32xf32, #tpu.memory_space<vmem>>, %arg2: memref<1x32xf32, #tpu.memory_space<vmem>>, %arg3: memref<1x32xf32, #tpu.memory_space<vmem>>, %arg4: memref<32x96xbf16, #tpu.memory_space<vmem>>, %arg5: memref<1x96xf32, #tpu.memory_space<vmem>>, %arg6: memref<32x32xbf16, #tpu.memory_space<vmem>>, %arg7: memref<1x32xf32, #tpu.memory_space<vmem>>, %arg8: memref<1x32xf32, #tpu.memory_space<vmem>>, %arg9: memref<1x32xf32, #tpu.memory_space<vmem>>, %arg10: memref<32x128xbf16, #tpu.memory_space<vmem>>, %arg11: memref<1x128xf32, #tpu.memory_space<vmem>>, %arg12: memref<128x32xbf16, #tpu.memory_space<vmem>>, %arg13: memref<1x32xf32, #tpu.memory_space<vmem>>, %arg14: memref<8x32xf32, #tpu.memory_space<vmem>>, %arg15: memref<8x96xbf16, #tpu.memory_space<vmem>>, %arg16: memref<8x32xbf16, #tpu.memory_space<vmem>>) attributes {dimension_semantics = [#tpu.dimension_semantics<parallel>], iteration_bounds = array<i64: 2>, scalar_prefetch = 0 : i64, scratch_operands = 2 : i64, tpu.core_type = #tpu.core_type<tc>, window_params = [{transform_indices = @transform_0, window_bounds = array<i64: 8, 32>}, {pipeline_mode = #tpu.pipeline_mode<synchronous>, transform_indices = @transform_1, window_bounds = array<i64: 1, 32>}, {pipeline_mode = #tpu.pipeline_mode<synchronous>, transform_indices = @transform_2, window_bounds = array<i64: 1, 32>}, {pipeline_mode = #tpu.pipeline_mode<synchronous>, transform_indices = @transform_3, window_bounds = array<i64: 32, 96>}, {pipeline_mode = #tpu.pipeline_mode<synchronous>, transform_indices = @transform_4, window_bounds = array<i64: 1, 96>}, {pipeline_mode = #tpu.pipeline_mode<synchronous>, transform_indices = @transform_5, window_bounds = array<i64: 32, 32>}, {pipeline_mode = #tpu.pipeline_mode<synchronous>, transform_indices = @transform_6, window_bounds = array<i64: 1, 32>}, {pipeline_mode = #tpu.pipeline_mode<synchronous>, transform_indices = @transform_7, window_bounds = array<i64: 1, 32>}, {pipeline_mode = #tpu.pipeline_mode<synchronous>, transform_indices = @transform_8, window_bounds = array<i64: 1, 32>}, {pipeline_mode = #tpu.pipeline_mode<synchronous>, transform_indices = @transform_9, window_bounds = array<i64: 32, 128>}, {pipeline_mode = #tpu.pipeline_mode<synchronous>, transform_indices = @transform_10, window_bounds = array<i64: 1, 128>}, {pipeline_mode = #tpu.pipeline_mode<synchronous>, transform_indices = @transform_11, window_bounds = array<i64: 128, 32>}, {pipeline_mode = #tpu.pipeline_mode<synchronous>, transform_indices = @transform_12, window_bounds = array<i64: 1, 32>}, {transform_indices = @transform_13, window_bounds = array<i64: 8, 32>}]} {
    %c0 = arith.constant 0 : index
    %c0_0 = arith.constant 0 : index
    %0 = vector.load %arg1[%c0, %c0_0] : memref<8x32xf32, #tpu.memory_space<vmem>>, vector<8x32xf32>
    %c0_1 = arith.constant 0 : index
    %c0_2 = arith.constant 0 : index
    %1 = vector.load %arg2[%c0_1, %c0_2] : memref<1x32xf32, #tpu.memory_space<vmem>>, vector<1x32xf32>
    %2 = vector.shape_cast %1 : vector<1x32xf32> to vector<32xf32>
    %c0_3 = arith.constant 0 : index
    %c0_4 = arith.constant 0 : index
    %3 = vector.load %arg3[%c0_3, %c0_4] : memref<1x32xf32, #tpu.memory_space<vmem>>, vector<1x32xf32>
    %4 = vector.shape_cast %3 : vector<1x32xf32> to vector<32xf32>
    %cst = arith.constant dense<0.000000e+00> : vector<8xf32>
    %5 = vector.multi_reduction <add>, %0, %cst [1] : vector<8x32xf32> to vector<8xf32>
    %6 = vector.shape_cast %5 : vector<8xf32> to vector<8x1xf32>
    %7 = arith.mulf %0, %0 : vector<8x32xf32>
    %cst_5 = arith.constant dense<0.000000e+00> : vector<8xf32>
    %8 = vector.multi_reduction <add>, %7, %cst_5 [1] : vector<8x32xf32> to vector<8xf32>
    %9 = vector.shape_cast %8 : vector<8xf32> to vector<8x1xf32>
    %cst_6 = arith.constant 3.125000e-02 : f32
    %10 = vector.broadcast %cst_6 : f32 to vector<8x1xf32>
    %11 = arith.mulf %6, %10 : vector<8x1xf32>
    %cst_7 = arith.constant 3.125000e-02 : f32
    %12 = vector.broadcast %cst_7 : f32 to vector<8x1xf32>
    %13 = arith.mulf %9, %12 : vector<8x1xf32>
    %14 = arith.mulf %11, %11 : vector<8x1xf32>
    %15 = arith.subf %13, %14 : vector<8x1xf32>
    %16 = vector.broadcast %11 : vector<8x1xf32> to vector<8x32xf32>
    %17 = arith.subf %0, %16 : vector<8x32xf32>
    %cst_8 = arith.constant 9.99999974E-6 : f32
    %18 = vector.broadcast %cst_8 : f32 to vector<8x1xf32>
    %19 = arith.addf %15, %18 : vector<8x1xf32>
    %20 = math.rsqrt %19 : vector<8x1xf32>
    %21 = vector.broadcast %20 : vector<8x1xf32> to vector<8x32xf32>
    %22 = arith.mulf %17, %21 : vector<8x32xf32>
    %23 = vector.shape_cast %2 : vector<32xf32> to vector<1x32xf32>
    %24 = vector.broadcast %23 : vector<1x32xf32> to vector<8x32xf32>
    %25 = arith.mulf %22, %24 : vector<8x32xf32>
    %26 = vector.shape_cast %4 : vector<32xf32> to vector<1x32xf32>
    %27 = vector.broadcast %26 : vector<1x32xf32> to vector<8x32xf32>
    %28 = arith.addf %25, %27 : vector<8x32xf32>
    %29 = arith.truncf %28 : vector<8x32xf32> to vector<8x32xbf16>
    %c0_9 = arith.constant 0 : index
    %c0_10 = arith.constant 0 : index
    %30 = vector.load %arg4[%c0_9, %c0_10] : memref<32x96xbf16, #tpu.memory_space<vmem>>, vector<32x96xbf16>
    %cst_11 = arith.constant dense<0.000000e+00> : vector<8x96xf32>
    %31 = tpu.matmul %29, %30, %cst_11 {dimension_numbers = #tpu.dot_dimension_numbers<[1], [0], [0], [1], [0, 0, 1, 1], [], []>} : vector<8x32xbf16>, vector<32x96xbf16>, vector<8x96xf32> -> vector<8x96xf32>
    %c0_12 = arith.constant 0 : index
    %c0_13 = arith.constant 0 : index
    %32 = vector.load %arg5[%c0_12, %c0_13] : memref<1x96xf32, #tpu.memory_space<vmem>>, vector<1x96xf32>
    %33 = vector.shape_cast %32 : vector<1x96xf32> to vector<96xf32>
    %34 = vector.shape_cast %33 : vector<96xf32> to vector<1x96xf32>
    %35 = vector.broadcast %34 : vector<1x96xf32> to vector<8x96xf32>
    %36 = arith.addf %31, %35 : vector<8x96xf32>
    %37 = arith.truncf %36 : vector<8x96xf32> to vector<8x96xbf16>
    %c0_14 = arith.constant 0 : index
    %c0_15 = arith.constant 0 : index
    %38 = vector.load %arg15[%c0_14, %c0_15] : memref<8x96xbf16, #tpu.memory_space<vmem>>, vector<8x96xbf16>
    tpu.vector_store %arg15[%c0_14, %c0_15], %37 {strides = array<i32>} : memref<8x96xbf16, #tpu.memory_space<vmem>>, vector<8x96xbf16>,
    %39 = tpu.iota {dimensions = array<i32: 0>} : vector<8x8xi32>
    %40 = tpu.iota {dimensions = array<i32: 1>} : vector<8x8xi32>
    %c0_i32 = arith.constant 0 : i32
    %c0_16 = arith.constant 0 : index
    %c0_17 = arith.constant 0 : index
    %41 = vector.load %arg15[%c0_16, %c0_17] : memref<8x96xbf16, #tpu.memory_space<vmem>>, vector<8x32xbf16>
    %c0_18 = arith.constant 0 : index
    %c32 = arith.constant 32 : index
    %42 = vector.load %arg15[%c0_18, %c32] : memref<8x96xbf16, #tpu.memory_space<vmem>>, vector<8x32xbf16>
    %c0_19 = arith.constant 0 : index
    %c64 = arith.constant 64 : index
    %43 = vector.load %arg15[%c0_19, %c64] : memref<8x96xbf16, #tpu.memory_space<vmem>>, vector<8x32xbf16>
    %c0_i32_20 = arith.constant 0 : i32
    %44 = vector.broadcast %c0_i32_20 : i32 to vector<8x8xi32>
    %45 = arith.addi %39, %44 : vector<8x8xi32>
    %46 = arith.cmpi sle, %40, %45 : vector<8x8xi32>
    %47 = vector.extract_strided_slice %41 {offsets = [0, 0], sizes = [8, 8], strides = [1, 1]} : vector<8x32xbf16> to vector<8x8xbf16>
    %48 = vector.extract_strided_slice %42 {offsets = [0, 0], sizes = [8, 8], strides = [1, 1]} : vector<8x32xbf16> to vector<8x8xbf16>
    %49 = vector.extract_strided_slice %43 {offsets = [0, 0], sizes = [8, 8], strides = [1, 1]} : vector<8x32xbf16> to vector<8x8xbf16>
    %cst_21 = arith.constant dense<0.000000e+00> : vector<8x8xf32>
    %50 = tpu.matmul %47, %48, %cst_21 {dimension_numbers = #tpu.dot_dimension_numbers<[1], [1], [0], [0], [0, 0, 1, 0], [], []>} : vector<8x8xbf16>, vector<8x8xbf16>, vector<8x8xf32> -> vector<8x8xf32>
    %cst_22 = arith.constant 0.353553385 : f32
    %51 = vector.broadcast %cst_22 : f32 to vector<8x8xf32>
    %52 = arith.mulf %50, %51 : vector<8x8xf32>
    %cst_23 = arith.constant 0xFF800000 : f32
    %53 = vector.broadcast %cst_23 : f32 to vector<8x8xf32>
    %54 = arith.select %46, %52, %53 : vector<8x8xi1>, vector<8x8xf32>
    %cst_24 = arith.constant dense<0xFF800000> : vector<8xf32>
    %55 = vector.multi_reduction <maximumf>, %54, %cst_24 [1] : vector<8x8xf32> to vector<8xf32>
    %56 = vector.shape_cast %55 : vector<8xf32> to vector<8x1xf32>
    %57 = vector.broadcast %56 : vector<8x1xf32> to vector<8x8xf32>
    %58 = arith.subf %54, %57 : vector<8x8xf32>
    %59 = math.exp %58 : vector<8x8xf32>
    %cst_25 = arith.constant dense<0.000000e+00> : vector<8xf32>
    %60 = vector.multi_reduction <add>, %59, %cst_25 [1] : vector<8x8xf32> to vector<8xf32>
    %61 = vector.shape_cast %60 : vector<8xf32> to vector<8x1xf32>
    %62 = tpu.reciprocal %61 {approx = true} : vector<8x1xf32> -> vector<8x1xf32>
    %63 = vector.broadcast %62 : vector<8x1xf32> to vector<8x8xf32>
    %64 = arith.mulf %59, %63 : vector<8x8xf32>
    %65 = arith.truncf %64 : vector<8x8xf32> to vector<8x8xbf16>
    %cst_26 = arith.constant dense<0.000000e+00> : vector<8x8xf32>
    %66 = tpu.matmul %65, %49, %cst_26 {dimension_numbers = #tpu.dot_dimension_numbers<[1], [0], [0], [1], [0, 0, 1, 1], [], []>} : vector<8x8xbf16>, vector<8x8xbf16>, vector<8x8xf32> -> vector<8x8xf32>
    %67 = vector.extract_strided_slice %41 {offsets = [0, 8], sizes = [8, 8], strides = [1, 1]} : vector<8x32xbf16> to vector<8x8xbf16>
    %68 = vector.extract_strided_slice %42 {offsets = [0, 8], sizes = [8, 8], strides = [1, 1]} : vector<8x32xbf16> to vector<8x8xbf16>
    %69 = vector.extract_strided_slice %43 {offsets = [0, 8], sizes = [8, 8], strides = [1, 1]} : vector<8x32xbf16> to vector<8x8xbf16>
    %cst_27 = arith.constant dense<0.000000e+00> : vector<8x8xf32>
    %70 = tpu.matmul %67, %68, %cst_27 {dimension_numbers = #tpu.dot_dimension_numbers<[1], [1], [0], [0], [0, 0, 1, 0], [], []>} : vector<8x8xbf16>, vector<8x8xbf16>, vector<8x8xf32> -> vector<8x8xf32>
    %cst_28 = arith.constant 0.353553385 : f32
    %71 = vector.broadcast %cst_28 : f32 to vector<8x8xf32>
    %72 = arith.mulf %70, %71 : vector<8x8xf32>
    %cst_29 = arith.constant 0xFF800000 : f32
    %73 = vector.broadcast %cst_29 : f32 to vector<8x8xf32>
    %74 = arith.select %46, %72, %73 : vector<8x8xi1>, vector<8x8xf32>
    %cst_30 = arith.constant dense<0xFF800000> : vector<8xf32>
    %75 = vector.multi_reduction <maximumf>, %74, %cst_30 [1] : vector<8x8xf32> to vector<8xf32>
    %76 = vector.shape_cast %75 : vector<8xf32> to vector<8x1xf32>
    %77 = vector.broadcast %76 : vector<8x1xf32> to vector<8x8xf32>
    %78 = arith.subf %74, %77 : vector<8x8xf32>
    %79 = math.exp %78 : vector<8x8xf32>
    %cst_31 = arith.constant dense<0.000000e+00> : vector<8xf32>
    %80 = vector.multi_reduction <add>, %79, %cst_31 [1] : vector<8x8xf32> to vector<8xf32>
    %81 = vector.shape_cast %80 : vector<8xf32> to vector<8x1xf32>
    %82 = tpu.reciprocal %81 {approx = true} : vector<8x1xf32> -> vector<8x1xf32>
    %83 = vector.broadcast %82 : vector<8x1xf32> to vector<8x8xf32>
    %84 = arith.mulf %79, %83 : vector<8x8xf32>
    %85 = arith.truncf %84 : vector<8x8xf32> to vector<8x8xbf16>
    %cst_32 = arith.constant dense<0.000000e+00> : vector<8x8xf32>
    %86 = tpu.matmul %85, %69, %cst_32 {dimension_numbers = #tpu.dot_dimension_numbers<[1], [0], [0], [1], [0, 0, 1, 1], [], []>} : vector<8x8xbf16>, vector<8x8xbf16>, vector<8x8xf32> -> vector<8x8xf32>
    %87 = vector.extract_strided_slice %41 {offsets = [0, 16], sizes = [8, 8], strides = [1, 1]} : vector<8x32xbf16> to vector<8x8xbf16>
    %88 = vector.extract_strided_slice %42 {offsets = [0, 16], sizes = [8, 8], strides = [1, 1]} : vector<8x32xbf16> to vector<8x8xbf16>
    %89 = vector.extract_strided_slice %43 {offsets = [0, 16], sizes = [8, 8], strides = [1, 1]} : vector<8x32xbf16> to vector<8x8xbf16>
    %cst_33 = arith.constant dense<0.000000e+00> : vector<8x8xf32>
    %90 = tpu.matmul %87, %88, %cst_33 {dimension_numbers = #tpu.dot_dimension_numbers<[1], [1], [0], [0], [0, 0, 1, 0], [], []>} : vector<8x8xbf16>, vector<8x8xbf16>, vector<8x8xf32> -> vector<8x8xf32>
    %cst_34 = arith.constant 0.353553385 : f32
    %91 = vector.broadcast %cst_34 : f32 to vector<8x8xf32>
    %92 = arith.mulf %90, %91 : vector<8x8xf32>
    %cst_35 = arith.constant 0xFF800000 : f32
    %93 = vector.broadcast %cst_35 : f32 to vector<8x8xf32>
    %94 = arith.select %46, %92, %93 : vector<8x8xi1>, vector<8x8xf32>
    %cst_36 = arith.constant dense<0xFF800000> : vector<8xf32>
    %95 = vector.multi_reduction <maximumf>, %94, %cst_36 [1] : vector<8x8xf32> to vector<8xf32>
    %96 = vector.shape_cast %95 : vector<8xf32> to vector<8x1xf32>
    %97 = vector.broadcast %96 : vector<8x1xf32> to vector<8x8xf32>
    %98 = arith.subf %94, %97 : vector<8x8xf32>
    %99 = math.exp %98 : vector<8x8xf32>
    %cst_37 = arith.constant dense<0.000000e+00> : vector<8xf32>
    %100 = vector.multi_reduction <add>, %99, %cst_37 [1] : vector<8x8xf32> to vector<8xf32>
    %101 = vector.shape_cast %100 : vector<8xf32> to vector<8x1xf32>
    %102 = tpu.reciprocal %101 {approx = true} : vector<8x1xf32> -> vector<8x1xf32>
    %103 = vector.broadcast %102 : vector<8x1xf32> to vector<8x8xf32>
    %104 = arith.mulf %99, %103 : vector<8x8xf32>
    %105 = arith.truncf %104 : vector<8x8xf32> to vector<8x8xbf16>
    %cst_38 = arith.constant dense<0.000000e+00> : vector<8x8xf32>
    %106 = tpu.matmul %105, %89, %cst_38 {dimension_numbers = #tpu.dot_dimension_numbers<[1], [0], [0], [1], [0, 0, 1, 1], [], []>} : vector<8x8xbf16>, vector<8x8xbf16>, vector<8x8xf32> -> vector<8x8xf32>
    %107 = vector.extract_strided_slice %41 {offsets = [0, 24], sizes = [8, 8], strides = [1, 1]} : vector<8x32xbf16> to vector<8x8xbf16>
    %108 = vector.extract_strided_slice %42 {offsets = [0, 24], sizes = [8, 8], strides = [1, 1]} : vector<8x32xbf16> to vector<8x8xbf16>
    %109 = vector.extract_strided_slice %43 {offsets = [0, 24], sizes = [8, 8], strides = [1, 1]} : vector<8x32xbf16> to vector<8x8xbf16>
    %cst_39 = arith.constant dense<0.000000e+00> : vector<8x8xf32>
    %110 = tpu.matmul %107, %108, %cst_39 {dimension_numbers = #tpu.dot_dimension_numbers<[1], [1], [0], [0], [0, 0, 1, 0], [], []>} : vector<8x8xbf16>, vector<8x8xbf16>, vector<8x8xf32> -> vector<8x8xf32>
    %cst_40 = arith.constant 0.353553385 : f32
    %111 = vector.broadcast %cst_40 : f32 to vector<8x8xf32>
    %112 = arith.mulf %110, %111 : vector<8x8xf32>
    %cst_41 = arith.constant 0xFF800000 : f32
    %113 = vector.broadcast %cst_41 : f32 to vector<8x8xf32>
    %114 = arith.select %46, %112, %113 : vector<8x8xi1>, vector<8x8xf32>
    %cst_42 = arith.constant dense<0xFF800000> : vector<8xf32>
    %115 = vector.multi_reduction <maximumf>, %114, %cst_42 [1] : vector<8x8xf32> to vector<8xf32>
    %116 = vector.shape_cast %115 : vector<8xf32> to vector<8x1xf32>
    %117 = vector.broadcast %116 : vector<8x1xf32> to vector<8x8xf32>
    %118 = arith.subf %114, %117 : vector<8x8xf32>
    %119 = math.exp %118 : vector<8x8xf32>
    %cst_43 = arith.constant dense<0.000000e+00> : vector<8xf32>
    %120 = vector.multi_reduction <add>, %119, %cst_43 [1] : vector<8x8xf32> to vector<8xf32>
    %121 = vector.shape_cast %120 : vector<8xf32> to vector<8x1xf32>
    %122 = tpu.reciprocal %121 {approx = true} : vector<8x1xf32> -> vector<8x1xf32>
    %123 = vector.broadcast %122 : vector<8x1xf32> to vector<8x8xf32>
    %124 = arith.mulf %119, %123 : vector<8x8xf32>
    %125 = arith.truncf %124 : vector<8x8xf32> to vector<8x8xbf16>
    %cst_44 = arith.constant dense<0.000000e+00> : vector<8x8xf32>
    %126 = tpu.matmul %125, %109, %cst_44 {dimension_numbers = #tpu.dot_dimension_numbers<[1], [0], [0], [1], [0, 0, 1, 1], [], []>} : vector<8x8xbf16>, vector<8x8xbf16>, vector<8x8xf32> -> vector<8x8xf32>
    %127 = tpu.concatenate %66, %86, %106, %126 in 1 : vector<8x8xf32>, vector<8x8xf32>, vector<8x8xf32>, vector<8x8xf32> -> vector<8x32xf32>
    %128 = arith.truncf %127 : vector<8x32xf32> to vector<8x32xbf16>
    %c0_45 = arith.constant 0 : index
    %c0_46 = arith.constant 0 : index
    %129 = vector.load %arg16[%c0_45, %c0_46] : memref<8x32xbf16, #tpu.memory_space<vmem>>, vector<8x32xbf16>
    tpu.vector_store %arg16[%c0_45, %c0_46], %128 {strides = array<i32>} : memref<8x32xbf16, #tpu.memory_space<vmem>>, vector<8x32xbf16>,
    %c0_47 = arith.constant 0 : index
    %c0_48 = arith.constant 0 : index
    %130 = vector.load %arg16[%c0_47, %c0_48] : memref<8x32xbf16, #tpu.memory_space<vmem>>, vector<8x32xbf16>
    %c0_49 = arith.constant 0 : index
    %c0_50 = arith.constant 0 : index
    %131 = vector.load %arg6[%c0_49, %c0_50] : memref<32x32xbf16, #tpu.memory_space<vmem>>, vector<32x32xbf16>
    %cst_51 = arith.constant dense<0.000000e+00> : vector<8x32xf32>
    %132 = tpu.matmul %130, %131, %cst_51 {dimension_numbers = #tpu.dot_dimension_numbers<[1], [0], [0], [1], [0, 0, 1, 1], [], []>} : vector<8x32xbf16>, vector<32x32xbf16>, vector<8x32xf32> -> vector<8x32xf32>
    %c0_52 = arith.constant 0 : index
    %c0_53 = arith.constant 0 : index
    %133 = vector.load %arg7[%c0_52, %c0_53] : memref<1x32xf32, #tpu.memory_space<vmem>>, vector<1x32xf32>
    %134 = vector.shape_cast %133 : vector<1x32xf32> to vector<32xf32>
    %135 = vector.shape_cast %134 : vector<32xf32> to vector<1x32xf32>
    %136 = vector.broadcast %135 : vector<1x32xf32> to vector<8x32xf32>
    %137 = arith.addf %132, %136 : vector<8x32xf32>
    %138 = arith.addf %0, %137 : vector<8x32xf32>
    %c0_54 = arith.constant 0 : index
    %c0_55 = arith.constant 0 : index
    %139 = vector.load %arg8[%c0_54, %c0_55] : memref<1x32xf32, #tpu.memory_space<vmem>>, vector<1x32xf32>
    %140 = vector.shape_cast %139 : vector<1x32xf32> to vector<32xf32>
    %c0_56 = arith.constant 0 : index
    %c0_57 = arith.constant 0 : index
    %141 = vector.load %arg9[%c0_56, %c0_57] : memref<1x32xf32, #tpu.memory_space<vmem>>, vector<1x32xf32>
    %142 = vector.shape_cast %141 : vector<1x32xf32> to vector<32xf32>
    %cst_58 = arith.constant dense<0.000000e+00> : vector<8xf32>
    %143 = vector.multi_reduction <add>, %138, %cst_58 [1] : vector<8x32xf32> to vector<8xf32>
    %144 = vector.shape_cast %143 : vector<8xf32> to vector<8x1xf32>
    %145 = arith.mulf %138, %138 : vector<8x32xf32>
    %cst_59 = arith.constant dense<0.000000e+00> : vector<8xf32>
    %146 = vector.multi_reduction <add>, %145, %cst_59 [1] : vector<8x32xf32> to vector<8xf32>
    %147 = vector.shape_cast %146 : vector<8xf32> to vector<8x1xf32>
    %cst_60 = arith.constant 3.125000e-02 : f32
    %148 = vector.broadcast %cst_60 : f32 to vector<8x1xf32>
    %149 = arith.mulf %144, %148 : vector<8x1xf32>
    %cst_61 = arith.constant 3.125000e-02 : f32
    %150 = vector.broadcast %cst_61 : f32 to vector<8x1xf32>
    %151 = arith.mulf %147, %150 : vector<8x1xf32>
    %152 = arith.mulf %149, %149 : vector<8x1xf32>
    %153 = arith.subf %151, %152 : vector<8x1xf32>
    %154 = vector.broadcast %149 : vector<8x1xf32> to vector<8x32xf32>
    %155 = arith.subf %138, %154 : vector<8x32xf32>
    %cst_62 = arith.constant 9.99999974E-6 : f32
    %156 = vector.broadcast %cst_62 : f32 to vector<8x1xf32>
    %157 = arith.addf %153, %156 : vector<8x1xf32>
    %158 = math.rsqrt %157 : vector<8x1xf32>
    %159 = vector.broadcast %158 : vector<8x1xf32> to vector<8x32xf32>
    %160 = arith.mulf %155, %159 : vector<8x32xf32>
    %161 = vector.shape_cast %140 : vector<32xf32> to vector<1x32xf32>
    %162 = vector.broadcast %161 : vector<1x32xf32> to vector<8x32xf32>
    %163 = arith.mulf %160, %162 : vector<8x32xf32>
    %164 = vector.shape_cast %142 : vector<32xf32> to vector<1x32xf32>
    %165 = vector.broadcast %164 : vector<1x32xf32> to vector<8x32xf32>
    %166 = arith.addf %163, %165 : vector<8x32xf32>
    %167 = arith.truncf %166 : vector<8x32xf32> to vector<8x32xbf16>
    %cst_63 = arith.constant 0.000000e+00 : f32
    %168 = vector.broadcast %cst_63 : f32 to vector<8x32xf32>
    %c0_64 = arith.constant 0 : index
    %c0_65 = arith.constant 0 : index
    %169 = vector.load %arg10[%c0_64, %c0_65] : memref<32x128xbf16, #tpu.memory_space<vmem>>, vector<32x128xbf16>
    %cst_66 = arith.constant dense<0.000000e+00> : vector<8x128xf32>
    %170 = tpu.matmul %167, %169, %cst_66 {dimension_numbers = #tpu.dot_dimension_numbers<[1], [0], [0], [1], [0, 0, 1, 1], [], []>} : vector<8x32xbf16>, vector<32x128xbf16>, vector<8x128xf32> -> vector<8x128xf32>
    %c0_67 = arith.constant 0 : index
    %c0_68 = arith.constant 0 : index
    %171 = vector.load %arg11[%c0_67, %c0_68] : memref<1x128xf32, #tpu.memory_space<vmem>>, vector<1x128xf32>
    %172 = vector.shape_cast %171 : vector<1x128xf32> to vector<128xf32>
    %173 = vector.shape_cast %172 : vector<128xf32> to vector<1x128xf32>
    %174 = vector.broadcast %173 : vector<1x128xf32> to vector<8x128xf32>
    %175 = arith.addf %170, %174 : vector<8x128xf32>
    %cst_69 = arith.constant 5.000000e-01 : f32
    %176 = vector.broadcast %cst_69 : f32 to vector<8x128xf32>
    %177 = arith.mulf %176, %175 : vector<8x128xf32>
    %cst_70 = arith.constant 4.471500e-02 : f32
    %178 = vector.broadcast %cst_70 : f32 to vector<8x128xf32>
    %179 = arith.mulf %178, %175 : vector<8x128xf32>
    %180 = arith.mulf %179, %175 : vector<8x128xf32>
    %181 = arith.mulf %180, %175 : vector<8x128xf32>
    %182 = arith.addf %175, %181 : vector<8x128xf32>
    %cst_71 = arith.constant 0.797884583 : f32
    %183 = vector.broadcast %cst_71 : f32 to vector<8x128xf32>
    %184 = arith.mulf %183, %182 : vector<8x128xf32>
    %185 = math.tanh %184 : vector<8x128xf32>
    %cst_72 = arith.constant 1.000000e+00 : f32
    %186 = vector.broadcast %cst_72 : f32 to vector<8x128xf32>
    %187 = arith.addf %186, %185 : vector<8x128xf32>
    %188 = arith.mulf %177, %187 : vector<8x128xf32>
    %189 = arith.truncf %188 : vector<8x128xf32> to vector<8x128xbf16>
    %c0_73 = arith.constant 0 : index
    %c0_74 = arith.constant 0 : index
    %190 = vector.load %arg12[%c0_73, %c0_74] : memref<128x32xbf16, #tpu.memory_space<vmem>>, vector<128x32xbf16>
    %cst_75 = arith.constant dense<0.000000e+00> : vector<8x32xf32>
    %191 = tpu.matmul %189, %190, %cst_75 {dimension_numbers = #tpu.dot_dimension_numbers<[1], [0], [0], [1], [0, 0, 1, 1], [], []>} : vector<8x128xbf16>, vector<128x32xbf16>, vector<8x32xf32> -> vector<8x32xf32>
    %192 = arith.addf %168, %191 : vector<8x32xf32>
    %193 = arith.addf %138, %192 : vector<8x32xf32>
    %c0_76 = arith.constant 0 : index
    %c0_77 = arith.constant 0 : index
    %194 = vector.load %arg13[%c0_76, %c0_77] : memref<1x32xf32, #tpu.memory_space<vmem>>, vector<1x32xf32>
    %195 = vector.shape_cast %194 : vector<1x32xf32> to vector<32xf32>
    %196 = vector.shape_cast %195 : vector<32xf32> to vector<1x32xf32>
    %197 = vector.broadcast %196 : vector<1x32xf32> to vector<8x32xf32>
    %198 = arith.addf %193, %197 : vector<8x32xf32>
    %c0_78 = arith.constant 0 : index
    %c0_79 = arith.constant 0 : index
    %199 = vector.load %arg14[%c0_78, %c0_79] : memref<8x32xf32, #tpu.memory_space<vmem>>, vector<8x32xf32>
    tpu.vector_store %arg14[%c0_78, %c0_79], %198 {strides = array<i32>} : memref<8x32xf32, #tpu.memory_space<vmem>>, vector<8x32xf32>,
    return
  }
  func.func @transform_0(%arg0: i32) -> (i32, i32) {
    %c0_i32 = arith.constant 0 : i32
    %c0_i32_0 = arith.constant 0 : i32
    return %arg0, %c0_i32 : i32, i32
  }
  func.func @transform_1(%arg0: i32) -> (i32, i32) {
    %c0_i32 = arith.constant 0 : i32
    %c0_i32_0 = arith.constant 0 : i32
    %c0_i32_1 = arith.constant 0 : i32
    return %c0_i32, %c0_i32_0 : i32, i32
  }
  func.func @transform_2(%arg0: i32) -> (i32, i32) {
    %c0_i32 = arith.constant 0 : i32
    %c0_i32_0 = arith.constant 0 : i32
    %c0_i32_1 = arith.constant 0 : i32
    return %c0_i32, %c0_i32_0 : i32, i32
  }
  func.func @transform_3(%arg0: i32) -> (i32, i32) {
    %c0_i32 = arith.constant 0 : i32
    %c0_i32_0 = arith.constant 0 : i32
    %c0_i32_1 = arith.constant 0 : i32
    return %c0_i32, %c0_i32_0 : i32, i32
  }
  func.func @transform_4(%arg0: i32) -> (i32, i32) {
    %c0_i32 = arith.constant 0 : i32
    %c0_i32_0 = arith.constant 0 : i32
    %c0_i32_1 = arith.constant 0 : i32
    return %c0_i32, %c0_i32_0 : i32, i32
  }
  func.func @transform_5(%arg0: i32) -> (i32, i32) {
    %c0_i32 = arith.constant 0 : i32
    %c0_i32_0 = arith.constant 0 : i32
    %c0_i32_1 = arith.constant 0 : i32
    return %c0_i32, %c0_i32_0 : i32, i32
  }
  func.func @transform_6(%arg0: i32) -> (i32, i32) {
    %c0_i32 = arith.constant 0 : i32
    %c0_i32_0 = arith.constant 0 : i32
    %c0_i32_1 = arith.constant 0 : i32
    return %c0_i32, %c0_i32_0 : i32, i32
  }
  func.func @transform_7(%arg0: i32) -> (i32, i32) {
    %c0_i32 = arith.constant 0 : i32
    %c0_i32_0 = arith.constant 0 : i32
    %c0_i32_1 = arith.constant 0 : i32
    return %c0_i32, %c0_i32_0 : i32, i32
  }
  func.func @transform_8(%arg0: i32) -> (i32, i32) {
    %c0_i32 = arith.constant 0 : i32
    %c0_i32_0 = arith.constant 0 : i32
    %c0_i32_1 = arith.constant 0 : i32
    return %c0_i32, %c0_i32_0 : i32, i32
  }
  func.func @transform_9(%arg0: i32) -> (i32, i32) {
    %c0_i32 = arith.constant 0 : i32
    %c0_i32_0 = arith.constant 0 : i32
    %c0_i32_1 = arith.constant 0 : i32
    return %c0_i32, %c0_i32_0 : i32, i32
  }
  func.func @transform_10(%arg0: i32) -> (i32, i32) {
    %c0_i32 = arith.constant 0 : i32
    %c0_i32_0 = arith.constant 0 : i32
    %c0_i32_1 = arith.constant 0 : i32
    return %c0_i32, %c0_i32_0 : i32, i32
  }
  func.func @transform_11(%arg0: i32) -> (i32, i32) {
    %c0_i32 = arith.constant 0 : i32
    %c0_i32_0 = arith.constant 0 : i32
    %c0_i32_1 = arith.constant 0 : i32
    return %c0_i32, %c0_i32_0 : i32, i32
  }
  func.func @transform_12(%arg0: i32) -> (i32, i32) {
    %c0_i32 = arith.constant 0 : i32
    %c0_i32_0 = arith.constant 0 : i32
    %c0_i32_1 = arith.constant 0 : i32
    return %c0_i32, %c0_i32_0 : i32, i32
  }
  func.func @transform_13(%arg0: i32) -> (i32, i32) {
    %c0_i32 = arith.constant 0 : i32
    %c0_i32_0 = arith.constant 0 : i32
    return %arg0, %c0_i32 : i32, i32
  }
}

</mosaic_0001>

<llo_original>
// kernel: tpu_custom_call.1
$region0: #{tpu_custom_call.1}
  #allocation0 [shape = 'u32[]', space=smem, size = 0x4, offset = 0x4, fixed_abs, tag = 'smem constant byte address 0x4 - core index']
  #allocation1 [shape = 'u32[144,128]{1,0:T(1,128)}', space=vmem, size = 0x12000, scoped, tag = 'internal scratch']
  #allocation2 [shape = 'bf16[8,96]{1,0:T(8,128)(2,1)}', space=vmem, size = 0x800, scoped, tag = 'scratch operand']
  #allocation3 [shape = 'bf16[8,32]{1,0:T(8,128)(2,1)}', space=vmem, size = 0x800, scoped, tag = 'scratch operand']
  %s0 = inlined_call_operand.hbm [shape: f32[16,32], index: 0, kind: input, shape index: {}, may-alias: {0,13}]
  %s1 = inlined_call_operand.vmem [shape: f32[1,32], index: 1, kind: input, shape index: {}]
  %s2 = inlined_call_operand.vmem [shape: f32[1,32], index: 2, kind: input, shape index: {}]
  %s3 = inlined_call_operand.vmem [shape: bf16[32,96], index: 3, kind: input, shape index: {}]
  %s4 = inlined_call_operand.vmem [shape: f32[1,96], index: 4, kind: input, shape index: {}]
  %s5 = inlined_call_operand.vmem [shape: bf16[32,32], index: 5, kind: input, shape index: {}]
  %s6 = inlined_call_operand.vmem [shape: f32[1,32], index: 6, kind: input, shape index: {}]
  %s7 = inlined_call_operand.vmem [shape: f32[1,32], index: 7, kind: input, shape index: {}]
  %s8 = inlined_call_operand.vmem [shape: f32[1,32], index: 8, kind: input, shape index: {}]
  %s9 = inlined_call_operand.vmem [shape: bf16[32,128], index: 9, kind: input, shape index: {}]
  %s10 = inlined_call_operand.vmem [shape: f32[1,128], index: 10, kind: input, shape index: {}]
  %s11 = inlined_call_operand.vmem [shape: bf16[128,32], index: 11, kind: input, shape index: {}]
  %s12 = inlined_call_operand.vmem [shape: f32[1,32], index: 12, kind: input, shape index: {}]
  %s13 = inlined_call_operand.hbm [shape: f32[16,32], index: 13, kind: output, shape index: {}, may-alias: {0,13}]
  %s14 = sld [smem:[#allocation0]]
  $region89: #{tpu_custom_call.1} parent=0
    _
  %s16 = ssub.s32 1, %s14
  %s17 = scalar_select 0, %s16, %s14
  $region1: #{tpu_custom_call.1} parent=0
    #allocation4 [shape = 'u8[8192]{0}', space=vmem, size = 0x2000, scoped, tag = 'input window, operand 0']
    #allocation5 [shape = 's32[2]{0}', space=sflag, size = 0x8, scoped, tag = 'scoped memory for tpu_custom_call.1']
    #allocation6 [shape = 's32[2]{0}', space=sflag, size = 0x8, scoped, tag = 'scoped memory for tpu_custom_call.1']
    #allocation7 [shape = 'u8[8192]{0}', space=vmem, size = 0x2000, scoped, tag = 'output window, operand 0']
    %18 = vsyncpa [#allocation5], 0
    %s19 = scalar_lea.sflag [#allocation5], 1
    %20 = vsyncpa %s19, 0
    %21 = vsyncpa [#allocation6], 0
    %s22 = scalar_lea.sflag [#allocation6], 1
    %23 = vsyncpa %s22, 0
    loop: start=0, step=1, limit=4
    $region2: #{tpu_custom_call.1} parent=1 // loop_pre_header
      _
    $region3: #{tpu_custom_call.1} parent=1 // loop_header
      %s25 = sphi 0, %s29
      %p26 = scmp.ge.s32.totalorder %s25, 4
      %s35 = sphi 0, %s37
      %s38 = sphi 0, %s35
      %s39 = sphi 0, %s38
      %s55 = sphi 0, %s39
      %s59 = sphi 0, %s59
      %s61 = sphi 0, %s59
      %s62 = sphi 0, %s61
      %s76 = sphi 0, %s62
      %s80 = sphi 0, %s80
      %s82 = sphi 0, %s80
      %s83 = sphi 0, %s82
      %s97 = sphi 0, %s83
      %s101 = sphi 0, %s101
      %s103 = sphi 0, %s101
      %s104 = sphi 0, %s103
      %s118 = sphi 0, %s104
      %s122 = sphi 0, %s122
      %s124 = sphi 0, %s122
      %s125 = sphi 0, %s124
      %s139 = sphi 0, %s125
      %s143 = sphi 0, %s143
      %s145 = sphi 0, %s143
      %s146 = sphi 0, %s145
      %s160 = sphi 0, %s146
      %s164 = sphi 0, %s164
      %s166 = sphi 0, %s164
      %s167 = sphi 0, %s166
      %s181 = sphi 0, %s167
      %s185 = sphi 0, %s185
      %s187 = sphi 0, %s185
      %s188 = sphi 0, %s187
      %s202 = sphi 0, %s188
      %s206 = sphi 0, %s206
      %s208 = sphi 0, %s206
      %s209 = sphi 0, %s208
      %s223 = sphi 0, %s209
      %s227 = sphi 0, %s227
      %s229 = sphi 0, %s227
      %s230 = sphi 0, %s229
      %s244 = sphi 0, %s230
      %s248 = sphi 0, %s248
      %s250 = sphi 0, %s248
      %s251 = sphi 0, %s250
      %s265 = sphi 0, %s251
      %s269 = sphi 0, %s269
      %s271 = sphi 0, %s269
      %s272 = sphi 0, %s271
      %s286 = sphi 0, %s272
      %s290 = sphi 0, %s290
      %s292 = sphi 0, %s290
      %s293 = sphi 0, %s292
      %s307 = sphi 0, %s293
      %s313 = sphi 0, %s315
      %s316 = sphi 0, %s313
      %s317 = sphi 0, %s316
      %s333 = sphi 0, %s317
    $region4: #{tpu_custom_call.1} parent=1 // loop_header_branch
      %28 = sbr.rel (%p26) target = $region8
    $region5: #{tpu_custom_call.1} parent=1 // loop_body
      %s30 = ssub.s32 %s25, 1
      %s31 = ssub.s32 %s25, 2
      %s32 = sadd.s32 %s25, 1
      %s33 = ssub.s32 %s25, %s32
      %p34 = scmp.eq.s32.totalorder %s33, 0
      %s36 = sadd.s32 %s35, 1
      %s37 = scalar_select %p34, %s35, %s36
      %p40 = pneg %p34
      %p41 = scmp.eq.s32.totalorder %s25, 1
      %p42 = por %p40, %p41
      %p43 = scmp.ne.s32.totalorder %s35, %s38
      %p44 = scmp.eq.s32.totalorder %s25, 0
      %p45 = por %p43, %p44
      %p46 = scmp.ne.s32.totalorder %s35, %s38
      %p47 = scmp.eq.s32.totalorder %s30, 1
      %p48 = por %p46, %p47
      %p49 = scmp.ne.s32.totalorder %s38, %s39
      %p50 = scmp.eq.s32.totalorder %s30, 0
      %p51 = por %p49, %p50
      %p52 = scmp.ne.s32.totalorder %s38, %s39
      %p53 = scmp.eq.s32.totalorder %s31, 1
      %p54 = por %p52, %p53
      %p56 = scmp.ne.s32.totalorder %s39, %s55
      %p57 = scmp.eq.s32.totalorder %s31, 0
      %p58 = por %p56, %p57
      %s60 = sadd.s32 %s59, 1
      %p63 = scmp.eq.s32.totalorder %s25, 1
      %p64 = scmp.ne.s32.totalorder %s59, %s61
      %p65 = scmp.eq.s32.totalorder %s25, 0
      %p66 = por %p64, %p65
      %p67 = scmp.ne.s32.totalorder %s59, %s61
      %p68 = scmp.eq.s32.totalorder %s30, 1
      %p69 = por %p67, %p68
      %p70 = scmp.ne.s32.totalorder %s61, %s62
      %p71 = scmp.eq.s32.totalorder %s30, 0
      %p72 = por %p70, %p71
      %p73 = scmp.ne.s32.totalorder %s61, %s62
      %p74 = scmp.eq.s32.totalorder %s31, 1
      %p75 = por %p73, %p74
      %p77 = scmp.ne.s32.totalorder %s62, %s76
      %p78 = scmp.eq.s32.totalorder %s31, 0
      %p79 = por %p77, %p78
      %s81 = sadd.s32 %s80, 1
      %p84 = scmp.eq.s32.totalorder %s25, 1
      %p85 = scmp.ne.s32.totalorder %s80, %s82
      %p86 = scmp.eq.s32.totalorder %s25, 0
      %p87 = por %p85, %p86
      %p88 = scmp.ne.s32.totalorder %s80, %s82
      %p89 = scmp.eq.s32.totalorder %s30, 1
      %p90 = por %p88, %p89
      %p91 = scmp.ne.s32.totalorder %s82, %s83
      %p92 = scmp.eq.s32.totalorder %s30, 0
      %p93 = por %p91, %p92
      %p94 = scmp.ne.s32.totalorder %s82, %s83
      %p95 = scmp.eq.s32.totalorder %s31, 1
      %p96 = por %p94, %p95
      %p98 = scmp.ne.s32.totalorder %s83, %s97
      %p99 = scmp.eq.s32.totalorder %s31, 0
      %p100 = por %p98, %p99
      %s102 = sadd.s32 %s101, 1
      %p105 = scmp.eq.s32.totalorder %s25, 1
      %p106 = scmp.ne.s32.totalorder %s101, %s103
      %p107 = scmp.eq.s32.totalorder %s25, 0
      %p108 = por %p106, %p107
      %p109 = scmp.ne.s32.totalorder %s101, %s103
      %p110 = scmp.eq.s32.totalorder %s30, 1
      %p111 = por %p109, %p110
      %p112 = scmp.ne.s32.totalorder %s103, %s104
      %p113 = scmp.eq.s32.totalorder %s30, 0
      %p114 = por %p112, %p113
      %p115 = scmp.ne.s32.totalorder %s103, %s104
      %p116 = scmp.eq.s32.totalorder %s31, 1
      %p117 = por %p115, %p116
      %p119 = scmp.ne.s32.totalorder %s104, %s118
      %p120 = scmp.eq.s32.totalorder %s31, 0
      %p121 = por %p119, %p120
      %s123 = sadd.s32 %s122, 1
      %p126 = scmp.eq.s32.totalorder %s25, 1
      %p127 = scmp.ne.s32.totalorder %s122, %s124
      %p128 = scmp.eq.s32.totalorder %s25, 0
      %p129 = por %p127, %p128
      %p130 = scmp.ne.s32.totalorder %s122, %s124
      %p131 = scmp.eq.s32.totalorder %s30, 1
      %p132 = por %p130, %p131
      %p133 = scmp.ne.s32.totalorder %s124, %s125
      %p134 = scmp.eq.s32.totalorder %s30, 0
      %p135 = por %p133, %p134
      %p136 = scmp.ne.s32.totalorder %s124, %s125
      %p137 = scmp.eq.s32.totalorder %s31, 1
      %p138 = por %p136, %p137
      %p140 = scmp.ne.s32.totalorder %s125, %s139
      %p141 = scmp.eq.s32.totalorder %s31, 0
      %p142 = por %p140, %p141
      %s144 = sadd.s32 %s143, 1
      %p147 = scmp.eq.s32.totalorder %s25, 1
      %p148 = scmp.ne.s32.totalorder %s143, %s145
      %p149 = scmp.eq.s32.totalorder %s25, 0
      %p150 = por %p148, %p149
      %p151 = scmp.ne.s32.totalorder %s143, %s145
      %p152 = scmp.eq.s32.totalorder %s30, 1
      %p153 = por %p151, %p152
      %p154 = scmp.ne.s32.totalorder %s145, %s146
      %p155 = scmp.eq.s32.totalorder %s30, 0
      %p156 = por %p154, %p155
      %p157 = scmp.ne.s32.totalorder %s145, %s146
      %p158 = scmp.eq.s32.totalorder %s31, 1
      %p159 = por %p157, %p158
      %p161 = scmp.ne.s32.totalorder %s146, %s160
      %p162 = scmp.eq.s32.totalorder %s31, 0
      %p163 = por %p161, %p162
      %s165 = sadd.s32 %s164, 1
      %p168 = scmp.eq.s32.totalorder %s25, 1
      %p169 = scmp.ne.s32.totalorder %s164, %s166
      %p170 = scmp.eq.s32.totalorder %s25, 0
      %p171 = por %p169, %p170
      %p172 = scmp.ne.s32.totalorder %s164, %s166
      %p173 = scmp.eq.s32.totalorder %s30, 1
      %p174 = por %p172, %p173
      %p175 = scmp.ne.s32.totalorder %s166, %s167
      %p176 = scmp.eq.s32.totalorder %s30, 0
      %p177 = por %p175, %p176
      %p178 = scmp.ne.s32.totalorder %s166, %s167
      %p179 = scmp.eq.s32.totalorder %s31, 1
      %p180 = por %p178, %p179
      %p182 = scmp.ne.s32.totalorder %s167, %s181
      %p183 = scmp.eq.s32.totalorder %s31, 0
      %p184 = por %p182, %p183
      %s186 = sadd.s32 %s185, 1
      %p189 = scmp.eq.s32.totalorder %s25, 1
      %p190 = scmp.ne.s32.totalorder %s185, %s187
      %p191 = scmp.eq.s32.totalorder %s25, 0
      %p192 = por %p190, %p191
      %p193 = scmp.ne.s32.totalorder %s185, %s187
      %p194 = scmp.eq.s32.totalorder %s30, 1
      %p195 = por %p193, %p194
      %p196 = scmp.ne.s32.totalorder %s187, %s188
      %p197 = scmp.eq.s32.totalorder %s30, 0
      %p198 = por %p196, %p197
      %p199 = scmp.ne.s32.totalorder %s187, %s188
      %p200 = scmp.eq.s32.totalorder %s31, 1
      %p201 = por %p199, %p200
      %p203 = scmp.ne.s32.totalorder %s188, %s202
      %p204 = scmp.eq.s32.totalorder %s31, 0
      %p205 = por %p203, %p204
      %s207 = sadd.s32 %s206, 1
      %p210 = scmp.eq.s32.totalorder %s25, 1
      %p211 = scmp.ne.s32.totalorder %s206, %s208
      %p212 = scmp.eq.s32.totalorder %s25, 0
      %p213 = por %p211, %p212
      %p214 = scmp.ne.s32.totalorder %s206, %s208
      %p215 = scmp.eq.s32.totalorder %s30, 1
      %p216 = por %p214, %p215
      %p217 = scmp.ne.s32.totalorder %s208, %s209
      %p218 = scmp.eq.s32.totalorder %s30, 0
      %p219 = por %p217, %p218
      %p220 = scmp.ne.s32.totalorder %s208, %s209
      %p221 = scmp.eq.s32.totalorder %s31, 1
      %p222 = por %p220, %p221
      %p224 = scmp.ne.s32.totalorder %s209, %s223
      %p225 = scmp.eq.s32.totalorder %s31, 0
      %p226 = por %p224, %p225
      %s228 = sadd.s32 %s227, 1
      %p231 = scmp.eq.s32.totalorder %s25, 1
      %p232 = scmp.ne.s32.totalorder %s227, %s229
      %p233 = scmp.eq.s32.totalorder %s25, 0
      %p234 = por %p232, %p233
      %p235 = scmp.ne.s32.totalorder %s227, %s229
      %p236 = scmp.eq.s32.totalorder %s30, 1
      %p237 = por %p235, %p236
      %p238 = scmp.ne.s32.totalorder %s229, %s230
      %p239 = scmp.eq.s32.totalorder %s30, 0
      %p240 = por %p238, %p239
      %p241 = scmp.ne.s32.totalorder %s229, %s230
      %p242 = scmp.eq.s32.totalorder %s31, 1
      %p243 = por %p241, %p242
      %p245 = scmp.ne.s32.totalorder %s230, %s244
      %p246 = scmp.eq.s32.totalorder %s31, 0
      %p247 = por %p245, %p246
      %s249 = sadd.s32 %s248, 1
      %p252 = scmp.eq.s32.totalorder %s25, 1
      %p253 = scmp.ne.s32.totalorder %s248, %s250
      %p254 = scmp.eq.s32.totalorder %s25, 0
      %p255 = por %p253, %p254
      %p256 = scmp.ne.s32.totalorder %s248, %s250
      %p257 = scmp.eq.s32.totalorder %s30, 1
      %p258 = por %p256, %p257
      %p259 = scmp.ne.s32.totalorder %s250, %s251
      %p260 = scmp.eq.s32.totalorder %s30, 0
      %p261 = por %p259, %p260
      %p262 = scmp.ne.s32.totalorder %s250, %s251
      %p263 = scmp.eq.s32.totalorder %s31, 1
      %p264 = por %p262, %p263
      %p266 = scmp.ne.s32.totalorder %s251, %s265
      %p267 = scmp.eq.s32.totalorder %s31, 0
      %p268 = por %p266, %p267
      %s270 = sadd.s32 %s269, 1
      %p273 = scmp.eq.s32.totalorder %s25, 1
      %p274 = scmp.ne.s32.totalorder %s269, %s271
      %p275 = scmp.eq.s32.totalorder %s25, 0
      %p276 = por %p274, %p275
      %p277 = scmp.ne.s32.totalorder %s269, %s271
      %p278 = scmp.eq.s32.totalorder %s30, 1
      %p279 = por %p277, %p278
      %p280 = scmp.ne.s32.totalorder %s271, %s272
      %p281 = scmp.eq.s32.totalorder %s30, 0
      %p282 = por %p280, %p281
      %p283 = scmp.ne.s32.totalorder %s271, %s272
      %p284 = scmp.eq.s32.totalorder %s31, 1
      %p285 = por %p283, %p284
      %p287 = scmp.ne.s32.totalorder %s272, %s286
      %p288 = scmp.eq.s32.totalorder %s31, 0
      %p289 = por %p287, %p288
      %s291 = sadd.s32 %s290, 1
      %p294 = scmp.eq.s32.totalorder %s25, 1
      %p295 = scmp.ne.s32.totalorder %s290, %s292
      %p296 = scmp.eq.s32.totalorder %s25, 0
      %p297 = por %p295, %p296
      %p298 = scmp.ne.s32.totalorder %s290, %s292
      %p299 = scmp.eq.s32.totalorder %s30, 1
      %p300 = por %p298, %p299
      %p301 = scmp.ne.s32.totalorder %s292, %s293
      %p302 = scmp.eq.s32.totalorder %s30, 0
      %p303 = por %p301, %p302
      %p304 = scmp.ne.s32.totalorder %s292, %s293
      %p305 = scmp.eq.s32.totalorder %s31, 1
      %p306 = por %p304, %p305
      %p308 = scmp.ne.s32.totalorder %s293, %s307
      %p309 = scmp.eq.s32.totalorder %s31, 0
      %p310 = por %p308, %p309
      %s311 = ssub.s32 %s25, %s32
      %p312 = scmp.eq.s32.totalorder %s311, 0
      %s314 = sadd.s32 %s313, 1
      %s315 = scalar_select %p312, %s313, %s314
      %p318 = pneg %p312
      %p319 = scmp.eq.s32.totalorder %s25, 1
      %p320 = por %p318, %p319
      %p321 = scmp.ne.s32.totalorder %s313, %s316
      %p322 = scmp.eq.s32.totalorder %s25, 0
      %p323 = por %p321, %p322
      %p324 = scmp.ne.s32.totalorder %s313, %s316
      %p325 = scmp.eq.s32.totalorder %s30, 1
      %p326 = por %p324, %p325
      %p327 = scmp.ne.s32.totalorder %s316, %s317
      %p328 = scmp.eq.s32.totalorder %s30, 0
      %p329 = por %p327, %p328
      %p330 = scmp.ne.s32.totalorder %s316, %s317
      %p331 = scmp.eq.s32.totalorder %s31, 1
      %p332 = por %p330, %p331
      %p334 = scmp.ne.s32.totalorder %s317, %s333
      %p335 = scmp.eq.s32.totalorder %s31, 0
      %p336 = por %p334, %p335
      %p337 = scmp.le.s32.totalorder 1, %s25
      %p338 = scmp.lt.s32.totalorder %s25, 3
      %p339 = pnand %p337, %p338
      %p340 = pneg %p339
      // Predicated region
      $region9: #{tpu_custom_call.1} parent=5 // pred_check
        _
      $region10: #{tpu_custom_call.1} parent=5 // pred_check_branch
        %342 = sbr.rel (%p339) target = $region12
      $region11: #{tpu_custom_call.1} parent=5 // pred_region
        %s343 = ssub.s32 %s25, 1
        // Predicated region
        $region13: #{tpu_custom_call.1} parent=11 // pred_check
          %p344 = pneg %p72
        $region14: #{tpu_custom_call.1} parent=11 // pred_check_branch
          %346 = sbr.rel (%p344) target = $region16
        $region15: #{tpu_custom_call.1} parent=11 // pred_region
          _
        $region16: #{tpu_custom_call.1} parent=11 // pred_fallthru
          _
        // Predicated region
        $region17: #{tpu_custom_call.1} parent=11 // pred_check
          %p347 = pneg %p93
        $region18: #{tpu_custom_call.1} parent=11 // pred_check_branch
          %349 = sbr.rel (%p347) target = $region20
        $region19: #{tpu_custom_call.1} parent=11 // pred_region
          _
        $region20: #{tpu_custom_call.1} parent=11 // pred_fallthru
          _
        // Predicated region
        $region21: #{tpu_custom_call.1} parent=11 // pred_check
          %p350 = pneg %p114
        $region22: #{tpu_custom_call.1} parent=11 // pred_check_branch
          %352 = sbr.rel (%p350) target = $region24
        $region23: #{tpu_custom_call.1} parent=11 // pred_region
          _
        $region24: #{tpu_custom_call.1} parent=11 // pred_fallthru
          _
        // Predicated region
        $region25: #{tpu_custom_call.1} parent=11 // pred_check
          %p353 = pneg %p135
        $region26: #{tpu_custom_call.1} parent=11 // pred_check_branch
          %355 = sbr.rel (%p353) target = $region28
        $region27: #{tpu_custom_call.1} parent=11 // pred_region
          _
        $region28: #{tpu_custom_call.1} parent=11 // pred_fallthru
          _
        // Predicated region
        $region29: #{tpu_custom_call.1} parent=11 // pred_check
          %p356 = pneg %p156
        $region30: #{tpu_custom_call.1} parent=11 // pred_check_branch
          %358 = sbr.rel (%p356) target = $region32
        $region31: #{tpu_custom_call.1} parent=11 // pred_region
          _
        $region32: #{tpu_custom_call.1} parent=11 // pred_fallthru
          _
        // Predicated region
        $region33: #{tpu_custom_call.1} parent=11 // pred_check
          %p359 = pneg %p177
        $region34: #{tpu_custom_call.1} parent=11 // pred_check_branch
          %361 = sbr.rel (%p359) target = $region36
        $region35: #{tpu_custom_call.1} parent=11 // pred_region
          _
        $region36: #{tpu_custom_call.1} parent=11 // pred_fallthru
          _
        // Predicated region
        $region37: #{tpu_custom_call.1} parent=11 // pred_check
          %p362 = pneg %p198
        $region38: #{tpu_custom_call.1} parent=11 // pred_check_branch
          %364 = sbr.rel (%p362) target = $region40
        $region39: #{tpu_custom_call.1} parent=11 // pred_region
          _
        $region40: #{tpu_custom_call.1} parent=11 // pred_fallthru
          _
        // Predicated region
        $region41: #{tpu_custom_call.1} parent=11 // pred_check
          %p365 = pneg %p219
        $region42: #{tpu_custom_call.1} parent=11 // pred_check_branch
          %367 = sbr.rel (%p365) target = $region44
        $region43: #{tpu_custom_call.1} parent=11 // pred_region
          _
        $region44: #{tpu_custom_call.1} parent=11 // pred_fallthru
          _
        // Predicated region
        $region45: #{tpu_custom_call.1} parent=11 // pred_check
          %p368 = pneg %p240
        $region46: #{tpu_custom_call.1} parent=11 // pred_check_branch
          %370 = sbr.rel (%p368) target = $region48
        $region47: #{tpu_custom_call.1} parent=11 // pred_region
          _
        $region48: #{tpu_custom_call.1} parent=11 // pred_fallthru
          _
        // Predicated region
        $region49: #{tpu_custom_call.1} parent=11 // pred_check
          %p371 = pneg %p261
        $region50: #{tpu_custom_call.1} parent=11 // pred_check_branch
          %373 = sbr.rel (%p371) target = $region52
        $region51: #{tpu_custom_call.1} parent=11 // pred_region
          _
        $region52: #{tpu_custom_call.1} parent=11 // pred_fallthru
          _
        // Predicated region
        $region53: #{tpu_custom_call.1} parent=11 // pred_check
          %p374 = pneg %p282
        $region54: #{tpu_custom_call.1} parent=11 // pred_check_branch
          %376 = sbr.rel (%p374) target = $region56
        $region55: #{tpu_custom_call.1} parent=11 // pred_region
          _
        $region56: #{tpu_custom_call.1} parent=11 // pred_fallthru
          _
        // Predicated region
        $region57: #{tpu_custom_call.1} parent=11 // pred_check
          %p377 = pneg %p303
        $region58: #{tpu_custom_call.1} parent=11 // pred_check_branch
          %379 = sbr.rel (%p377) target = $region60
        $region59: #{tpu_custom_call.1} parent=11 // pred_region
          _
        $region60: #{tpu_custom_call.1} parent=11 // pred_fallthru
          _
      $region12: #{tpu_custom_call.1} parent=5 // pred_fallthru
        _
      %p380 = scmp.lt.s32.totalorder %s25, 2
      // Predicated region
      $region61: #{tpu_custom_call.1} parent=5 // pred_check
        %p381 = pneg %p380
      $region62: #{tpu_custom_call.1} parent=5 // pred_check_branch
        %383 = sbr.rel (%p381) target = $region64
      $region63: #{tpu_custom_call.1} parent=5 // pred_region
        // Predicated region
        $region65: #{tpu_custom_call.1} parent=63 // pred_check
          %p384 = pneg %p45
        $region66: #{tpu_custom_call.1} parent=63 // pred_check_branch
          %386 = sbr.rel (%p384) target = $region68
        $region67: #{tpu_custom_call.1} parent=63 // pred_region
          %s387 = sand.u32 %s35, 1
          %s388 = scalar_lea.sflag [#allocation5], %s387
          %s389 = sand.u32 %s35, 1
          %s390 = smul.addr %s389, 8
          %s391 = scalar_lea.vmem [#allocation4], %s390
          %s393 = ssub.s32 128, 128
          %394 = vsyncadd %s388, %s393
          %s395 = smul.addr %s25, 128
          %s396 = scalar_lea.hbm %s0, %s395
          %s398 = sshll.u32 %s391, 4
          %s399 = int_to_ptr.vmem [resolvable:$true] %s398
          %401 = dma.hbm_to_vmem [thread:$0]  %s396, 128, %s399, %s388
        $region68: #{tpu_custom_call.1} parent=63 // pred_fallthru
          _
      $region64: #{tpu_custom_call.1} parent=5 // pred_fallthru
        _
      %p402 = scmp.le.s32.totalorder 1, %s25
      %p403 = scmp.lt.s32.totalorder %s25, 3
      %p404 = pnand %p402, %p403
      %p405 = pneg %p404
      // Predicated region
      $region69: #{tpu_custom_call.1} parent=5 // pred_check
        _
      $region70: #{tpu_custom_call.1} parent=5 // pred_check_branch
        %407 = sbr.rel (%p404) target = $region72
      $region71: #{tpu_custom_call.1} parent=5 // pred_region
        %s408 = ssub.s32 %s25, 1
        %s409 = sand.u32 %s38, 1
        %s410 = scalar_lea.sflag [#allocation5], %s409
        %s411 = sand.u32 %s38, 1
        %s412 = smul.addr %s411, 8
        %s413 = scalar_lea.vmem [#allocation4], %s412
        // Predicated region
        $region73: #{tpu_custom_call.1} parent=71 // pred_check
          %p414 = pneg %p51
        $region74: #{tpu_custom_call.1} parent=71 // pred_check_branch
          %416 = sbr.rel (%p414) target = $region76
        $region75: #{tpu_custom_call.1} parent=71 // pred_region
          %417 = dma.done %s410, 128
        $region76: #{tpu_custom_call.1} parent=71 // pred_fallthru
          _
        %s418 = sand.u32 %s38, 1
        %s419 = scalar_lea.sflag [#allocation5], %s418
        %s420 = sand.u32 %s38, 1
        %s421 = smul.addr %s420, 8
        %s422 = scalar_lea.vmem [#allocation4], %s421
        %p423 = pneg %p51
        %p424 = pneg %p48
        %p425 = pneg %p72
        %p426 = pneg %p69
        %p427 = pneg %p93
        %p428 = pneg %p90
        %p429 = pneg %p114
        %p430 = pneg %p111
        %p431 = pneg %p135
        %p432 = pneg %p132
        %p433 = pneg %p156
        %p434 = pneg %p153
        %p435 = pneg %p177
        %p436 = pneg %p174
        %p437 = pneg %p198
        %p438 = pneg %p195
        %p439 = pneg %p219
        %p440 = pneg %p216
        %p441 = pneg %p240
        %p442 = pneg %p237
        %p443 = pneg %p261
        %p444 = pneg %p258
        %p445 = pneg %p282
        %p446 = pneg %p279
        %p447 = pneg %p303
        %p448 = pneg %p300
        %p449 = pneg %p329
        %p450 = pneg %p326
        %s451 = sand.u32 %s316, 1
        %s452 = scalar_lea.sflag [#allocation6], %s451
        %s453 = sand.u32 %s316, 1
        %s454 = smul.addr %s453, 8
        %s455 = scalar_lea.vmem [#allocation7], %s454
        %v457 = vld [vmem:[%s413] sm:$0xff]
        %v458 = vld [vmem:[%s1] sm:$0x1]
        %v459 = vld [vmem:[%s2] sm:$0x1]
        %vm460 = vcmask 261120
        %v461 = vsel %vm460, %v457, 0.0
        %462 = vadd.xlane.f32.xlu0 %v461
        %v463 = vpop.xlane.xlu0 %462
        %v464 = vmul.f32 %v457, %v457
        %v465 = vsel %vm460, %v464, 0.0
        %466 = vadd.xlane.f32.xlu0 %v465
        %v467 = vpop.xlane.xlu0 %466
        %v468 = vmul.f32 %v463, 0.03125
        %v469 = vmul.f32 %v467, 0.03125
        %v470 = vmul.f32 %v468, %v468
        %v471 = vsub.f32 %v469, %v470
        %v472 = vsub.f32 %v457, %v468
        %v473 = vadd.f32 %v471, 1e-05
        %v474 = vrsqrt.pop %v473
        %v475 = vmul.f32 %v472, %v474
        %v477 = vlaneseq
        %v478 = vshrl.u32 %v477, 7
        %v479 = vsub.s32 0, %v478
        %v480 = vrot.slane %v458, %v479
        %v482 = vmul.f32 %v475, %v480
        %v484 = vlaneseq
        %v485 = vshrl.u32 %v484, 7
        %v486 = vsub.s32 0, %v485
        %v487 = vrot.slane %v459, %v486
        %v489 = vadd.f32 %v482, %v487
        %v490 = vpack.c.bf16 %v489, %v489
        %v491 = vld [vmem:[%s3] sm:$0xf]
        %v492 = vld [vmem:[%s3 + $0x4] sm:$0xf]
        %v493 = vld [vmem:[%s3 + $0x8] sm:$0xf]
        %v494 = vld [vmem:[%s3 + $0xc] sm:$0xf]
        %v495 = vld [vmem:[%s4] sm:$0x1]
        %v497 = vlaneseq
        %v498 = vshrl.u32 %v497, 7
        %v499 = vsub.s32 0, %v498
        %v500 = vrot.slane %v495, %v499
        %v506 = vunpack.c.l.b16 %v491
        %v507 = vunpack.c.l.b16 %v492
        %v508 = vunpack.c.l.b16 %v493
        %v509 = vunpack.c.l.b16 %v494
        %v510 = vpack.c.b16 %v507, %v506
        %v511 = vpack.c.b16 %v509, %v508
        %v515 = vsel %vm460, %v490, 0
        %517 = vmatprep.subr.bf16.mxu0 0
        %518 = vmatpush1.bf16.msra.mxu0 0
        %519 = vmatprep.subr.bf16.mxu0 0
        %520 = vmatpush1.bf16.msra.mxu0 0
        %521 = vmatprep.subr.bf16.mxu0 0
        %522 = vmatpush1.bf16.msra.mxu0 0
        %523 = vmatprep.subr.bf16.mxu0 0
        %524 = vmatpush1.bf16.msra.mxu0 0
        %525 = vmatprep.subr.bf16.mxu0 0
        %526 = vmatpush1.bf16.msra.mxu0 0
        %527 = vmatprep.subr.bf16.mxu0 0
        %528 = vmatpush1.bf16.msra.mxu0 0
        %529 = vmatprep.subr.bf16.mxu0 0
        %530 = vmatpush1.bf16.msra.mxu0 %v511
        %531 = vmatprep.subr.bf16.mxu0 0
        %532 = vmatpush1.bf16.msra.mxu0 %v510
        %533 = vmatprep.subr.bf16.mxu0 0
        %534 = vmatpush2.bf16.msra.mxu0 0
        %535 = vmatprep.subr.bf16.mxu0 0
        %536 = vmatpush2.bf16.msra.mxu0 0
        %537 = vmatprep.subr.bf16.mxu0 0
        %538 = vmatpush2.bf16.msra.mxu0 0
        %539 = vmatprep.subr.bf16.mxu0 0
        %540 = vmatpush2.bf16.msra.mxu0 0
        %541 = vmatprep.subr.bf16.mxu0 0
        %542 = vmatpush2.bf16.msra.mxu0 0
        %543 = vmatprep.subr.bf16.mxu0 0
        %544 = vmatpush2.bf16.msra.mxu0 0
        %545 = vmatprep.subr.bf16.mxu0 0
        %546 = vmatpush2.bf16.msra.mxu0 0
        %547 = vmatprep.subr.bf16.mxu0 0
        %548 = vmatpush2.bf16.msra.mxu0 0
        %549 = vmatprep.mubr.bf16.mxu0 0
        %550 = vmatmul.mubr.bf16.gmra.mxu0 %v515
        %v551 = vpop.f32.mrf.mxu0
        %v552 = vadd.f32 %v500, %v551
        %v553 = vpop.f32.mrf.mxu0
        %v554 = vpop.f32.mrf.mxu0
        %v555 = vpop.f32.mrf.mxu0
        %556 = vdwg.mxu0
        %v557 = vpack.c.bf16 %v552, %v552
        %vm558 = vcmask 781312
        %559 = vst.msk [vmem:[#allocation2] sm:$0xf] %vm558, %v557
        %v560 = vlaneseq
        %v561 = vshrl.u32 %v560, 7
        %v562 = vlaneseq
        %v563 = vand.u32 %v562, 127
        %v564 = vld [vmem:[#allocation2] sm:$0xf]
        %vm565 = vcmp.le.s32.totalorder %v563, %v561
        %v567 = vunpack.c.l.b16 %v564
        %v568 = vpack.c.b16 %v567, %v567
        %569 = vrot.lane.b32.xlu0 %v568, 96
        %v570 = vpop.permute.xlu0 %569
        %vm571 = vcmask 64512
        %v573 = vsel %vm571, %v564, 0
        %v576 = vsel %vm571, %v570, 0
        %578 = vmatprep.subr.bf16.mxu0 0
        %579 = vmatpush1.bf16.xpose.msra.mxu0 0
        %580 = vmatprep.subr.bf16.mxu0 0
        %581 = vmatpush1.bf16.xpose.msra.mxu0 0
        %582 = vmatprep.subr.bf16.mxu0 0
        %583 = vmatpush1.bf16.xpose.msra.mxu0 0
        %584 = vmatprep.subr.bf16.mxu0 0
        %585 = vmatpush1.bf16.xpose.msra.mxu0 0
        %586 = vmatprep.subr.bf16.mxu0 0
        %587 = vmatpush1.bf16.xpose.msra.mxu0 0
        %588 = vmatprep.subr.bf16.mxu0 0
        %589 = vmatpush1.bf16.xpose.msra.mxu0 0
        %590 = vmatprep.subr.bf16.mxu0 0
        %591 = vmatpush1.bf16.xpose.msra.mxu0 0
        %592 = vmatprep.subr.bf16.mxu0 0
        %593 = vmatpush1.bf16.xpose.msra.mxu0 %v576
        %594 = vmatprep.subr.bf16.mxu0 0
        %595 = vmatpush2.bf16.xpose.msra.mxu0 0
        %596 = vmatprep.subr.bf16.mxu0 0
        %597 = vmatpush2.bf16.xpose.msra.mxu0 0
        %598 = vmatprep.subr.bf16.mxu0 0
        %599 = vmatpush2.bf16.xpose.msra.mxu0 0
        %600 = vmatprep.subr.bf16.mxu0 0
        %601 = vmatpush2.bf16.xpose.msra.mxu0 0
        %602 = vmatprep.subr.bf16.mxu0 0
        %603 = vmatpush2.bf16.xpose.msra.mxu0 0
        %604 = vmatprep.subr.bf16.mxu0 0
        %605 = vmatpush2.bf16.xpose.msra.mxu0 0
        %606 = vmatprep.subr.bf16.mxu0 0
        %607 = vmatpush2.bf16.xpose.msra.mxu0 0
        %608 = vmatprep.subr.bf16.mxu0 0
        %609 = vmatpush2.bf16.xpose.msra.mxu0 0
        %610 = vmatprep.mubr.bf16.mxu0 0
        %611 = vmatmul.mubr.bf16.gmra.mxu0 %v573
        %v612 = vpop.f32.mrf.mxu0
        %v613 = vadd.f32 0.0, %v612
        %v614 = vpop.f32.mrf.mxu0
        %v615 = vpop.f32.mrf.mxu0
        %v616 = vpop.f32.mrf.mxu0
        %617 = vdwg.mxu0
        %v618 = vmul.f32 %v613, 0.35355338
        %v619 = vsel %vm565, %v618, -inf
        %v620 = vsel %vm571, %v619, -inf
        %621 = vmax.xlane.f32.xlu0 %v620
        %v622 = vpop.xlane.xlu0 %621
        %v623 = vsub.f32 %v619, %v622
        %v624 = vmul.f32 %v623, 1.442695
        %v625 = vpow.pop %v624
        %v626 = vsel %vm571, %v625, 0.0
        %627 = vadd.xlane.f32.xlu0 %v626
        %v628 = vpop.xlane.xlu0 %627
        %v629 = vrcp.pop %v628
        %v630 = vmul.f32 %v625, %v629
        %v631 = vpack.c.bf16 %v630, %v630
        %632 = vrot.lane.b32.xlu0 %v568, 64
        %v633 = vpop.permute.xlu0 %632
        %v635 = vsel %vm571, %v631, 0
        %vm637 = vcmask 1043456
        %v639 = vsel %vm637, %v633, 0
        %641 = vmatprep.subr.bf16.mxu0 0
        %642 = vmatpush1.bf16.msra.mxu0 0
        %643 = vmatprep.subr.bf16.mxu0 0
        %644 = vmatpush1.bf16.msra.mxu0 0
        %645 = vmatprep.subr.bf16.mxu0 0
        %646 = vmatpush1.bf16.msra.mxu0 0
        %647 = vmatprep.subr.bf16.mxu0 0
        %648 = vmatpush1.bf16.msra.mxu0 0
        %649 = vmatprep.subr.bf16.mxu0 0
        %650 = vmatpush1.bf16.msra.mxu0 0
        %651 = vmatprep.subr.bf16.mxu0 0
        %652 = vmatpush1.bf16.msra.mxu0 0
        %653 = vmatprep.subr.bf16.mxu0 0
        %654 = vmatpush1.bf16.msra.mxu0 0
        %655 = vmatprep.subr.bf16.mxu0 0
        %656 = vmatpush1.bf16.msra.mxu0 %v639
        %657 = vmatprep.subr.bf16.mxu0 0
        %658 = vmatpush2.bf16.msra.mxu0 0
        %659 = vmatprep.subr.bf16.mxu0 0
        %660 = vmatpush2.bf16.msra.mxu0 0
        %661 = vmatprep.subr.bf16.mxu0 0
        %662 = vmatpush2.bf16.msra.mxu0 0
        %663 = vmatprep.subr.bf16.mxu0 0
        %664 = vmatpush2.bf16.msra.mxu0 0
        %665 = vmatprep.subr.bf16.mxu0 0
        %666 = vmatpush2.bf16.msra.mxu0 0
        %667 = vmatprep.subr.bf16.mxu0 0
        %668 = vmatpush2.bf16.msra.mxu0 0
        %669 = vmatprep.subr.bf16.mxu0 0
        %670 = vmatpush2.bf16.msra.mxu0 0
        %671 = vmatprep.subr.bf16.mxu0 0
        %672 = vmatpush2.bf16.msra.mxu0 0
        %673 = vmatprep.mubr.bf16.mxu0 0
        %674 = vmatmul.mubr.bf16.gmra.mxu0 %v635
        %v675 = vpop.f32.mrf.mxu0
        %v676 = vadd.f32 0.0, %v675
        %v677 = vpop.f32.mrf.mxu0
        %v678 = vpop.f32.mrf.mxu0
        %v679 = vpop.f32.mrf.mxu0
        %680 = vdwg.mxu0
        %681 = vrot.lane.b32.xlu0 %v568, 120
        %v682 = vpop.permute.xlu0 %681
        %683 = vrot.lane.b32.xlu0 %v568, 88
        %v684 = vpop.permute.xlu0 %683
        %v686 = vsel %vm571, %v682, 0
        %v689 = vsel %vm571, %v684, 0
        %691 = vmatprep.subr.bf16.mxu0 0
        %692 = vmatpush1.bf16.xpose.msra.mxu0 0
        %693 = vmatprep.subr.bf16.mxu0 0
        %694 = vmatpush1.bf16.xpose.msra.mxu0 0
        %695 = vmatprep.subr.bf16.mxu0 0
        %696 = vmatpush1.bf16.xpose.msra.mxu0 0
        %697 = vmatprep.subr.bf16.mxu0 0
        %698 = vmatpush1.bf16.xpose.msra.mxu0 0
        %699 = vmatprep.subr.bf16.mxu0 0
        %700 = vmatpush1.bf16.xpose.msra.mxu0 0
        %701 = vmatprep.subr.bf16.mxu0 0
        %702 = vmatpush1.bf16.xpose.msra.mxu0 0
        %703 = vmatprep.subr.bf16.mxu0 0
        %704 = vmatpush1.bf16.xpose.msra.mxu0 0
        %705 = vmatprep.subr.bf16.mxu0 0
        %706 = vmatpush1.bf16.xpose.msra.mxu0 %v689
        %707 = vmatprep.subr.bf16.mxu0 0
        %708 = vmatpush2.bf16.xpose.msra.mxu0 0
        %709 = vmatprep.subr.bf16.mxu0 0
        %710 = vmatpush2.bf16.xpose.msra.mxu0 0
        %711 = vmatprep.subr.bf16.mxu0 0
        %712 = vmatpush2.bf16.xpose.msra.mxu0 0
        %713 = vmatprep.subr.bf16.mxu0 0
        %714 = vmatpush2.bf16.xpose.msra.mxu0 0
        %715 = vmatprep.subr.bf16.mxu0 0
        %716 = vmatpush2.bf16.xpose.msra.mxu0 0
        %717 = vmatprep.subr.bf16.mxu0 0
        %718 = vmatpush2.bf16.xpose.msra.mxu0 0
        %719 = vmatprep.subr.bf16.mxu0 0
        %720 = vmatpush2.bf16.xpose.msra.mxu0 0
        %721 = vmatprep.subr.bf16.mxu0 0
        %722 = vmatpush2.bf16.xpose.msra.mxu0 0
        %723 = vmatprep.mubr.bf16.mxu0 0
        %724 = vmatmul.mubr.bf16.gmra.mxu0 %v686
        %v725 = vpop.f32.mrf.mxu0
        %v726 = vadd.f32 0.0, %v725
        %v727 = vpop.f32.mrf.mxu0
        %v728 = vpop.f32.mrf.mxu0
        %v729 = vpop.f32.mrf.mxu0
        %730 = vdwg.mxu0
        %v731 = vmul.f32 %v726, 0.35355338
        %v732 = vsel %vm565, %v731, -inf
        %v733 = vsel %vm571, %v732, -inf
        %734 = vmax.xlane.f32.xlu0 %v733
        %v735 = vpop.xlane.xlu0 %734
        %v736 = vsub.f32 %v732, %v735
        %v737 = vmul.f32 %v736, 1.442695
        %v738 = vpow.pop %v737
        %v739 = vsel %vm571, %v738, 0.0
        %740 = vadd.xlane.f32.xlu0 %v739
        %v741 = vpop.xlane.xlu0 %740
        %v742 = vrcp.pop %v741
        %v743 = vmul.f32 %v738, %v742
        %v744 = vpack.c.bf16 %v743, %v743
        %745 = vrot.lane.b32.xlu0 %v568, 56
        %v746 = vpop.permute.xlu0 %745
        %v748 = vsel %vm571, %v744, 0
        %v751 = vsel %vm637, %v746, 0
        %753 = vmatprep.subr.bf16.mxu0 0
        %754 = vmatpush1.bf16.msra.mxu0 0
        %755 = vmatprep.subr.bf16.mxu0 0
        %756 = vmatpush1.bf16.msra.mxu0 0
        %757 = vmatprep.subr.bf16.mxu0 0
        %758 = vmatpush1.bf16.msra.mxu0 0
        %759 = vmatprep.subr.bf16.mxu0 0
        %760 = vmatpush1.bf16.msra.mxu0 0
        %761 = vmatprep.subr.bf16.mxu0 0
        %762 = vmatpush1.bf16.msra.mxu0 0
        %763 = vmatprep.subr.bf16.mxu0 0
        %764 = vmatpush1.bf16.msra.mxu0 0
        %765 = vmatprep.subr.bf16.mxu0 0
        %766 = vmatpush1.bf16.msra.mxu0 0
        %767 = vmatprep.subr.bf16.mxu0 0
        %768 = vmatpush1.bf16.msra.mxu0 %v751
        %769 = vmatprep.subr.bf16.mxu0 0
        %770 = vmatpush2.bf16.msra.mxu0 0
        %771 = vmatprep.subr.bf16.mxu0 0
        %772 = vmatpush2.bf16.msra.mxu0 0
        %773 = vmatprep.subr.bf16.mxu0 0
        %774 = vmatpush2.bf16.msra.mxu0 0
        %775 = vmatprep.subr.bf16.mxu0 0
        %776 = vmatpush2.bf16.msra.mxu0 0
        %777 = vmatprep.subr.bf16.mxu0 0
        %778 = vmatpush2.bf16.msra.mxu0 0
        %779 = vmatprep.subr.bf16.mxu0 0
        %780 = vmatpush2.bf16.msra.mxu0 0
        %781 = vmatprep.subr.bf16.mxu0 0
        %782 = vmatpush2.bf16.msra.mxu0 0
        %783 = vmatprep.subr.bf16.mxu0 0
        %784 = vmatpush2.bf16.msra.mxu0 0
        %785 = vmatprep.mubr.bf16.mxu0 0
        %786 = vmatmul.mubr.bf16.gmra.mxu0 %v748
        %v787 = vpop.f32.mrf.mxu0
        %v788 = vadd.f32 0.0, %v787
        %v789 = vpop.f32.mrf.mxu0
        %v790 = vpop.f32.mrf.mxu0
        %v791 = vpop.f32.mrf.mxu0
        %792 = vdwg.mxu0
        %793 = vrot.lane.b32.xlu0 %v568, 112
        %v794 = vpop.permute.xlu0 %793
        %795 = vrot.lane.b32.xlu0 %v568, 80
        %v796 = vpop.permute.xlu0 %795
        %v798 = vsel %vm571, %v794, 0
        %v801 = vsel %vm571, %v796, 0
        %803 = vmatprep.subr.bf16.mxu0 0
        %804 = vmatpush1.bf16.xpose.msra.mxu0 0
        %805 = vmatprep.subr.bf16.mxu0 0
        %806 = vmatpush1.bf16.xpose.msra.mxu0 0
        %807 = vmatprep.subr.bf16.mxu0 0
        %808 = vmatpush1.bf16.xpose.msra.mxu0 0
        %809 = vmatprep.subr.bf16.mxu0 0
        %810 = vmatpush1.bf16.xpose.msra.mxu0 0
        %811 = vmatprep.subr.bf16.mxu0 0
        %812 = vmatpush1.bf16.xpose.msra.mxu0 0
        %813 = vmatprep.subr.bf16.mxu0 0
        %814 = vmatpush1.bf16.xpose.msra.mxu0 0
        %815 = vmatprep.subr.bf16.mxu0 0
        %816 = vmatpush1.bf16.xpose.msra.mxu0 0
        %817 = vmatprep.subr.bf16.mxu0 0
        %818 = vmatpush1.bf16.xpose.msra.mxu0 %v801
        %819 = vmatprep.subr.bf16.mxu0 0
        %820 = vmatpush2.bf16.xpose.msra.mxu0 0
        %821 = vmatprep.subr.bf16.mxu0 0
        %822 = vmatpush2.bf16.xpose.msra.mxu0 0
        %823 = vmatprep.subr.bf16.mxu0 0
        %824 = vmatpush2.bf16.xpose.msra.mxu0 0
        %825 = vmatprep.subr.bf16.mxu0 0
        %826 = vmatpush2.bf16.xpose.msra.mxu0 0
        %827 = vmatprep.subr.bf16.mxu0 0
        %828 = vmatpush2.bf16.xpose.msra.mxu0 0
        %829 = vmatprep.subr.bf16.mxu0 0
        %830 = vmatpush2.bf16.xpose.msra.mxu0 0
        %831 = vmatprep.subr.bf16.mxu0 0
        %832 = vmatpush2.bf16.xpose.msra.mxu0 0
        %833 = vmatprep.subr.bf16.mxu0 0
        %834 = vmatpush2.bf16.xpose.msra.mxu0 0
        %835 = vmatprep.mubr.bf16.mxu0 0
        %836 = vmatmul.mubr.bf16.gmra.mxu0 %v798
        %v837 = vpop.f32.mrf.mxu0
        %v838 = vadd.f32 0.0, %v837
        %v839 = vpop.f32.mrf.mxu0
        %v840 = vpop.f32.mrf.mxu0
        %v841 = vpop.f32.mrf.mxu0
        %842 = vdwg.mxu0
        %v843 = vmul.f32 %v838, 0.35355338
        %v844 = vsel %vm565, %v843, -inf
        %v845 = vsel %vm571, %v844, -inf
        %846 = vmax.xlane.f32.xlu0 %v845
        %v847 = vpop.xlane.xlu0 %846
        %v848 = vsub.f32 %v844, %v847
        %v849 = vmul.f32 %v848, 1.442695
        %v850 = vpow.pop %v849
        %v851 = vsel %vm571, %v850, 0.0
        %852 = vadd.xlane.f32.xlu0 %v851
        %v853 = vpop.xlane.xlu0 %852
        %v854 = vrcp.pop %v853
        %v855 = vmul.f32 %v850, %v854
        %v856 = vpack.c.bf16 %v855, %v855
        %857 = vrot.lane.b32.xlu0 %v568, 48
        %v858 = vpop.permute.xlu0 %857
        %v860 = vsel %vm571, %v856, 0
        %v863 = vsel %vm637, %v858, 0
        %865 = vmatprep.subr.bf16.mxu0 0
        %866 = vmatpush1.bf16.msra.mxu0 0
        %867 = vmatprep.subr.bf16.mxu0 0
        %868 = vmatpush1.bf16.msra.mxu0 0
        %869 = vmatprep.subr.bf16.mxu0 0
        %870 = vmatpush1.bf16.msra.mxu0 0
        %871 = vmatprep.subr.bf16.mxu0 0
        %872 = vmatpush1.bf16.msra.mxu0 0
        %873 = vmatprep.subr.bf16.mxu0 0
        %874 = vmatpush1.bf16.msra.mxu0 0
        %875 = vmatprep.subr.bf16.mxu0 0
        %876 = vmatpush1.bf16.msra.mxu0 0
        %877 = vmatprep.subr.bf16.mxu0 0
        %878 = vmatpush1.bf16.msra.mxu0 0
        %879 = vmatprep.subr.bf16.mxu0 0
        %880 = vmatpush1.bf16.msra.mxu0 %v863
        %881 = vmatprep.subr.bf16.mxu0 0
        %882 = vmatpush2.bf16.msra.mxu0 0
        %883 = vmatprep.subr.bf16.mxu0 0
        %884 = vmatpush2.bf16.msra.mxu0 0
        %885 = vmatprep.subr.bf16.mxu0 0
        %886 = vmatpush2.bf16.msra.mxu0 0
        %887 = vmatprep.subr.bf16.mxu0 0
        %888 = vmatpush2.bf16.msra.mxu0 0
        %889 = vmatprep.subr.bf16.mxu0 0
        %890 = vmatpush2.bf16.msra.mxu0 0
        %891 = vmatprep.subr.bf16.mxu0 0
        %892 = vmatpush2.bf16.msra.mxu0 0
        %893 = vmatprep.subr.bf16.mxu0 0
        %894 = vmatpush2.bf16.msra.mxu0 0
        %895 = vmatprep.subr.bf16.mxu0 0
        %896 = vmatpush2.bf16.msra.mxu0 0
        %897 = vmatprep.mubr.bf16.mxu0 0
        %898 = vmatmul.mubr.bf16.gmra.mxu0 %v860
        %v899 = vpop.f32.mrf.mxu0
        %v900 = vadd.f32 0.0, %v899
        %v901 = vpop.f32.mrf.mxu0
        %v902 = vpop.f32.mrf.mxu0
        %v903 = vpop.f32.mrf.mxu0
        %904 = vdwg.mxu0
        %905 = vrot.lane.b32.xlu0 %v568, 104
        %v906 = vpop.permute.xlu0 %905
        %907 = vrot.lane.b32.xlu0 %v568, 72
        %v908 = vpop.permute.xlu0 %907
        %v910 = vsel %vm571, %v906, 0
        %v913 = vsel %vm571, %v908, 0
        %915 = vmatprep.subr.bf16.mxu0 0
        %916 = vmatpush1.bf16.xpose.msra.mxu0 0
        %917 = vmatprep.subr.bf16.mxu0 0
        %918 = vmatpush1.bf16.xpose.msra.mxu0 0
        %919 = vmatprep.subr.bf16.mxu0 0
        %920 = vmatpush1.bf16.xpose.msra.mxu0 0
        %921 = vmatprep.subr.bf16.mxu0 0
        %922 = vmatpush1.bf16.xpose.msra.mxu0 0
        %923 = vmatprep.subr.bf16.mxu0 0
        %924 = vmatpush1.bf16.xpose.msra.mxu0 0
        %925 = vmatprep.subr.bf16.mxu0 0
        %926 = vmatpush1.bf16.xpose.msra.mxu0 0
        %927 = vmatprep.subr.bf16.mxu0 0
        %928 = vmatpush1.bf16.xpose.msra.mxu0 0
        %929 = vmatprep.subr.bf16.mxu0 0
        %930 = vmatpush1.bf16.xpose.msra.mxu0 %v913
        %931 = vmatprep.subr.bf16.mxu0 0
        %932 = vmatpush2.bf16.xpose.msra.mxu0 0
        %933 = vmatprep.subr.bf16.mxu0 0
        %934 = vmatpush2.bf16.xpose.msra.mxu0 0
        %935 = vmatprep.subr.bf16.mxu0 0
        %936 = vmatpush2.bf16.xpose.msra.mxu0 0
        %937 = vmatprep.subr.bf16.mxu0 0
        %938 = vmatpush2.bf16.xpose.msra.mxu0 0
        %939 = vmatprep.subr.bf16.mxu0 0
        %940 = vmatpush2.bf16.xpose.msra.mxu0 0
        %941 = vmatprep.subr.bf16.mxu0 0
        %942 = vmatpush2.bf16.xpose.msra.mxu0 0
        %943 = vmatprep.subr.bf16.mxu0 0
        %944 = vmatpush2.bf16.xpose.msra.mxu0 0
        %945 = vmatprep.subr.bf16.mxu0 0
        %946 = vmatpush2.bf16.xpose.msra.mxu0 0
        %947 = vmatprep.mubr.bf16.mxu0 0
        %948 = vmatmul.mubr.bf16.gmra.mxu0 %v910
        %v949 = vpop.f32.mrf.mxu0
        %v950 = vadd.f32 0.0, %v949
        %v951 = vpop.f32.mrf.mxu0
        %v952 = vpop.f32.mrf.mxu0
        %v953 = vpop.f32.mrf.mxu0
        %954 = vdwg.mxu0
        %v955 = vmul.f32 %v950, 0.35355338
        %v956 = vsel %vm565, %v955, -inf
        %v957 = vsel %vm571, %v956, -inf
        %958 = vmax.xlane.f32.xlu0 %v957
        %v959 = vpop.xlane.xlu0 %958
        %v960 = vsub.f32 %v956, %v959
        %v961 = vmul.f32 %v960, 1.442695
        %v962 = vpow.pop %v961
        %v963 = vsel %vm571, %v962, 0.0
        %964 = vadd.xlane.f32.xlu0 %v963
        %v965 = vpop.xlane.xlu0 %964
        %v966 = vrcp.pop %v965
        %v967 = vmul.f32 %v962, %v966
        %v968 = vpack.c.bf16 %v967, %v967
        %969 = vrot.lane.b32.xlu0 %v568, 40
        %v970 = vpop.permute.xlu0 %969
        %v972 = vsel %vm571, %v968, 0
        %v975 = vsel %vm637, %v970, 0
        %977 = vmatprep.subr.bf16.mxu0 0
        %978 = vmatpush1.bf16.msra.mxu0 0
        %979 = vmatprep.subr.bf16.mxu0 0
        %980 = vmatpush1.bf16.msra.mxu0 0
        %981 = vmatprep.subr.bf16.mxu0 0
        %982 = vmatpush1.bf16.msra.mxu0 0
        %983 = vmatprep.subr.bf16.mxu0 0
        %984 = vmatpush1.bf16.msra.mxu0 0
        %985 = vmatprep.subr.bf16.mxu0 0
        %986 = vmatpush1.bf16.msra.mxu0 0
        %987 = vmatprep.subr.bf16.mxu0 0
        %988 = vmatpush1.bf16.msra.mxu0 0
        %989 = vmatprep.subr.bf16.mxu0 0
        %990 = vmatpush1.bf16.msra.mxu0 0
        %991 = vmatprep.subr.bf16.mxu0 0
        %992 = vmatpush1.bf16.msra.mxu0 %v975
        %993 = vmatprep.subr.bf16.mxu0 0
        %994 = vmatpush2.bf16.msra.mxu0 0
        %995 = vmatprep.subr.bf16.mxu0 0
        %996 = vmatpush2.bf16.msra.mxu0 0
        %997 = vmatprep.subr.bf16.mxu0 0
        %998 = vmatpush2.bf16.msra.mxu0 0
        %999 = vmatprep.subr.bf16.mxu0 0
        %1000 = vmatpush2.bf16.msra.mxu0 0
        %1001 = vmatprep.subr.bf16.mxu0 0
        %1002 = vmatpush2.bf16.msra.mxu0 0
        %1003 = vmatprep.subr.bf16.mxu0 0
        %1004 = vmatpush2.bf16.msra.mxu0 0
        %1005 = vmatprep.subr.bf16.mxu0 0
        %1006 = vmatpush2.bf16.msra.mxu0 0
        %1007 = vmatprep.subr.bf16.mxu0 0
        %1008 = vmatpush2.bf16.msra.mxu0 0
        %1009 = vmatprep.mubr.bf16.mxu0 0
        %1010 = vmatmul.mubr.bf16.gmra.mxu0 %v972
        %v1011 = vpop.f32.mrf.mxu0
        %v1012 = vadd.f32 0.0, %v1011
        %v1013 = vpop.f32.mrf.mxu0
        %v1014 = vpop.f32.mrf.mxu0
        %v1015 = vpop.f32.mrf.mxu0
        %1016 = vdwg.mxu0
        %1018 = vrot.lane.b32.xlu0 %v788, 8
        %v1019 = vpop.permute.xlu0 %1018
        %1022 = vrot.lane.b32.xlu0 %v900, 16
        %v1023 = vpop.permute.xlu0 %1022
        %1026 = vrot.lane.b32.xlu0 %v1012, 24
        %v1027 = vpop.permute.xlu0 %1026
        %v1029 = vsel %vm571, %v676, %v1019
        %vm1030 = vcmask 130048
        %v1031 = vsel %vm1030, %v1029, %v1023
        %vm1032 = vcmask 195584
        %v1033 = vsel %vm1032, %v1031, %v1027
        %v1034 = vpack.c.bf16 %v1033, %v1033
        %vm1035 = vcmask 257024
        %1036 = vst.msk [vmem:[#allocation3] sm:$0xf] %vm1035, %v1034
        %v1037 = vld [vmem:[#allocation3] sm:$0xf]
        %v1038 = vld [vmem:[%s5] sm:$0xf]
        %v1039 = vld [vmem:[%s5 + $0x4] sm:$0xf]
        %v1040 = vld [vmem:[%s5 + $0x8] sm:$0xf]
        %v1041 = vld [vmem:[%s5 + $0xc] sm:$0xf]
        %v1042 = vld [vmem:[%s6] sm:$0x1]
        %v1044 = vlaneseq
        %v1045 = vshrl.u32 %v1044, 7
        %v1046 = vsub.s32 0, %v1045
        %v1047 = vrot.slane %v1042, %v1046
        %v1053 = vunpack.c.l.b16 %v1038
        %v1054 = vunpack.c.l.b16 %v1039
        %v1055 = vunpack.c.l.b16 %v1040
        %v1056 = vunpack.c.l.b16 %v1041
        %v1057 = vpack.c.b16 %v1054, %v1053
        %v1058 = vpack.c.b16 %v1056, %v1055
        %v1062 = vsel %vm460, %v1037, 0
        %1064 = vmatprep.subr.bf16.mxu0 0
        %1065 = vmatpush1.bf16.msra.mxu0 0
        %1066 = vmatprep.subr.bf16.mxu0 0
        %1067 = vmatpush1.bf16.msra.mxu0 0
        %1068 = vmatprep.subr.bf16.mxu0 0
        %1069 = vmatpush1.bf16.msra.mxu0 0
        %1070 = vmatprep.subr.bf16.mxu0 0
        %1071 = vmatpush1.bf16.msra.mxu0 0
        %1072 = vmatprep.subr.bf16.mxu0 0
        %1073 = vmatpush1.bf16.msra.mxu0 0
        %1074 = vmatprep.subr.bf16.mxu0 0
        %1075 = vmatpush1.bf16.msra.mxu0 0
        %1076 = vmatprep.subr.bf16.mxu0 0
        %1077 = vmatpush1.bf16.msra.mxu0 %v1058
        %1078 = vmatprep.subr.bf16.mxu0 0
        %1079 = vmatpush1.bf16.msra.mxu0 %v1057
        %1080 = vmatprep.subr.bf16.mxu0 0
        %1081 = vmatpush2.bf16.msra.mxu0 0
        %1082 = vmatprep.subr.bf16.mxu0 0
        %1083 = vmatpush2.bf16.msra.mxu0 0
        %1084 = vmatprep.subr.bf16.mxu0 0
        %1085 = vmatpush2.bf16.msra.mxu0 0
        %1086 = vmatprep.subr.bf16.mxu0 0
        %1087 = vmatpush2.bf16.msra.mxu0 0
        %1088 = vmatprep.subr.bf16.mxu0 0
        %1089 = vmatpush2.bf16.msra.mxu0 0
        %1090 = vmatprep.subr.bf16.mxu0 0
        %1091 = vmatpush2.bf16.msra.mxu0 0
        %1092 = vmatprep.subr.bf16.mxu0 0
        %1093 = vmatpush2.bf16.msra.mxu0 0
        %1094 = vmatprep.subr.bf16.mxu0 0
        %1095 = vmatpush2.bf16.msra.mxu0 0
        %1096 = vmatprep.mubr.bf16.mxu0 0
        %1097 = vmatmul.mubr.bf16.gmra.mxu0 %v1062
        %v1098 = vpop.f32.mrf.mxu0
        %v1099 = vadd.f32 %v1047, %v1098
        %v1100 = vpop.f32.mrf.mxu0
        %v1101 = vpop.f32.mrf.mxu0
        %v1102 = vpop.f32.mrf.mxu0
        %1103 = vdwg.mxu0
        %v1104 = vadd.f32 %v457, %v1099
        %v1105 = vld [vmem:[%s7] sm:$0x1]
        %v1106 = vld [vmem:[%s8] sm:$0x1]
        %v1107 = vsel %vm460, %v1104, 0.0
        %1108 = vadd.xlane.f32.xlu0 %v1107
        %v1109 = vpop.xlane.xlu0 %1108
        %v1110 = vmul.f32 %v1104, %v1104
        %v1111 = vsel %vm460, %v1110, 0.0
        %1112 = vadd.xlane.f32.xlu0 %v1111
        %v1113 = vpop.xlane.xlu0 %1112
        %v1114 = vmul.f32 %v1109, 0.03125
        %v1115 = vmul.f32 %v1113, 0.03125
        %v1116 = vmul.f32 %v1114, %v1114
        %v1117 = vsub.f32 %v1115, %v1116
        %v1118 = vsub.f32 %v1104, %v1114
        %v1119 = vadd.f32 %v1117, 1e-05
        %v1120 = vrsqrt.pop %v1119
        %v1121 = vmul.f32 %v1118, %v1120
        %v1123 = vlaneseq
        %v1124 = vshrl.u32 %v1123, 7
        %v1125 = vsub.s32 0, %v1124
        %v1126 = vrot.slane %v1105, %v1125
        %v1128 = vmul.f32 %v1121, %v1126
        %v1130 = vlaneseq
        %v1131 = vshrl.u32 %v1130, 7
        %v1132 = vsub.s32 0, %v1131
        %v1133 = vrot.slane %v1106, %v1132
        %v1135 = vadd.f32 %v1128, %v1133
        %v1136 = vpack.c.bf16 %v1135, %v1135
        %v1137 = vld [vmem:[%s9] sm:$0xf]
        %v1138 = vld [vmem:[%s9 + $0x4] sm:$0xf]
        %v1139 = vld [vmem:[%s9 + $0x8] sm:$0xf]
        %v1140 = vld [vmem:[%s9 + $0xc] sm:$0xf]
        %v1141 = vld [vmem:[%s10] sm:$0x1]
        %v1143 = vlaneseq
        %v1144 = vshrl.u32 %v1143, 7
        %v1145 = vsub.s32 0, %v1144
        %v1146 = vrot.slane %v1141, %v1145
        %v1152 = vunpack.c.l.b16 %v1137
        %v1153 = vunpack.c.l.b16 %v1138
        %v1154 = vunpack.c.l.b16 %v1139
        %v1155 = vunpack.c.l.b16 %v1140
        %v1156 = vpack.c.b16 %v1153, %v1152
        %v1157 = vpack.c.b16 %v1155, %v1154
        %v1161 = vsel %vm460, %v1136, 0
        %1163 = vmatprep.subr.bf16.mxu0 0
        %1164 = vmatpush1.bf16.msra.mxu0 0
        %1165 = vmatprep.subr.bf16.mxu0 0
        %1166 = vmatpush1.bf16.msra.mxu0 0
        %1167 = vmatprep.subr.bf16.mxu0 0
        %1168 = vmatpush1.bf16.msra.mxu0 0
        %1169 = vmatprep.subr.bf16.mxu0 0
        %1170 = vmatpush1.bf16.msra.mxu0 0
        %1171 = vmatprep.subr.bf16.mxu0 0
        %1172 = vmatpush1.bf16.msra.mxu0 0
        %1173 = vmatprep.subr.bf16.mxu0 0
        %1174 = vmatpush1.bf16.msra.mxu0 0
        %1175 = vmatprep.subr.bf16.mxu0 0
        %1176 = vmatpush1.bf16.msra.mxu0 %v1157
        %1177 = vmatprep.subr.bf16.mxu0 0
        %1178 = vmatpush1.bf16.msra.mxu0 %v1156
        %1179 = vmatprep.subr.bf16.mxu0 0
        %1180 = vmatpush2.bf16.msra.mxu0 0
        %1181 = vmatprep.subr.bf16.mxu0 0
        %1182 = vmatpush2.bf16.msra.mxu0 0
        %1183 = vmatprep.subr.bf16.mxu0 0
        %1184 = vmatpush2.bf16.msra.mxu0 0
        %1185 = vmatprep.subr.bf16.mxu0 0
        %1186 = vmatpush2.bf16.msra.mxu0 0
        %1187 = vmatprep.subr.bf16.mxu0 0
        %1188 = vmatpush2.bf16.msra.mxu0 0
        %1189 = vmatprep.subr.bf16.mxu0 0
        %1190 = vmatpush2.bf16.msra.mxu0 0
        %1191 = vmatprep.subr.bf16.mxu0 0
        %1192 = vmatpush2.bf16.msra.mxu0 0
        %1193 = vmatprep.subr.bf16.mxu0 0
        %1194 = vmatpush2.bf16.msra.mxu0 0
        %1195 = vmatprep.mubr.bf16.mxu0 0
        %1196 = vmatmul.mubr.bf16.gmra.mxu0 %v1161
        %v1197 = vpop.f32.mrf.mxu0
        %v1198 = vadd.f32 %v1146, %v1197
        %v1199 = vpop.f32.mrf.mxu0
        %v1200 = vpop.f32.mrf.mxu0
        %v1201 = vpop.f32.mrf.mxu0
        %1202 = vdwg.mxu0
        %v1203 = vmul.f32 %v1198, 0.5
        %v1204 = vmul.f32 %v1198, 0.044715
        %v1205 = vmul.f32 %v1204, %v1198
        %v1206 = vmul.f32 %v1205, %v1198
        %v1207 = vadd.f32 %v1198, %v1206
        %v1208 = vmul.f32 %v1207, 0.7978846
        %v1209 = vtanh.pop %v1208
        %v1210 = vadd.f32 %v1209, 1.0
        %v1211 = vmul.f32 %v1203, %v1210
        %v1212 = vpack.c.bf16 %v1211, %v1211
        %v1213 = vld [vmem:[%s11] sm:$0xf]
        %v1214 = vld [vmem:[%s11 + $0x4] sm:$0xf]
        %v1215 = vld [vmem:[%s11 + $0x8] sm:$0xf]
        %v1216 = vld [vmem:[%s11 + $0xc] sm:$0xf]
        %v1217 = vld [vmem:[%s11 + $0x10] sm:$0xf]
        %v1218 = vld [vmem:[%s11 + $0x14] sm:$0xf]
        %v1219 = vld [vmem:[%s11 + $0x18] sm:$0xf]
        %v1220 = vld [vmem:[%s11 + $0x1c] sm:$0xf]
        %v1221 = vld [vmem:[%s11 + $0x20] sm:$0xf]
        %v1222 = vld [vmem:[%s11 + $0x24] sm:$0xf]
        %v1223 = vld [vmem:[%s11 + $0x28] sm:$0xf]
        %v1224 = vld [vmem:[%s11 + $0x2c] sm:$0xf]
        %v1225 = vld [vmem:[%s11 + $0x30] sm:$0xf]
        %v1226 = vld [vmem:[%s11 + $0x34] sm:$0xf]
        %v1227 = vld [vmem:[%s11 + $0x38] sm:$0xf]
        %v1228 = vld [vmem:[%s11 + $0x3c] sm:$0xf]
        %v1245 = vunpack.c.l.b16 %v1213
        %v1246 = vunpack.c.l.b16 %v1214
        %v1247 = vunpack.c.l.b16 %v1215
        %v1248 = vunpack.c.l.b16 %v1216
        %v1249 = vunpack.c.l.b16 %v1217
        %v1250 = vunpack.c.l.b16 %v1218
        %v1251 = vunpack.c.l.b16 %v1219
        %v1252 = vunpack.c.l.b16 %v1220
        %v1253 = vunpack.c.l.b16 %v1221
        %v1254 = vunpack.c.l.b16 %v1222
        %v1255 = vunpack.c.l.b16 %v1223
        %v1256 = vunpack.c.l.b16 %v1224
        %v1257 = vunpack.c.l.b16 %v1225
        %v1258 = vunpack.c.l.b16 %v1226
        %v1259 = vunpack.c.l.b16 %v1227
        %v1260 = vunpack.c.l.b16 %v1228
        %v1261 = vpack.c.b16 %v1246, %v1245
        %v1262 = vpack.c.b16 %v1248, %v1247
        %v1263 = vpack.c.b16 %v1250, %v1249
        %v1264 = vpack.c.b16 %v1252, %v1251
        %v1265 = vpack.c.b16 %v1254, %v1253
        %v1266 = vpack.c.b16 %v1256, %v1255
        %v1267 = vpack.c.b16 %v1258, %v1257
        %v1268 = vpack.c.b16 %v1260, %v1259
        %1277 = vmatprep.subr.bf16.mxu0 0
        %1278 = vmatpush1.bf16.msra.mxu0 %v1268
        %1279 = vmatprep.subr.bf16.mxu0 0
        %1280 = vmatpush1.bf16.msra.mxu0 %v1267
        %1281 = vmatprep.subr.bf16.mxu0 0
        %1282 = vmatpush1.bf16.msra.mxu0 %v1266
        %1283 = vmatprep.subr.bf16.mxu0 0
        %1284 = vmatpush1.bf16.msra.mxu0 %v1265
        %1285 = vmatprep.subr.bf16.mxu0 0
        %1286 = vmatpush1.bf16.msra.mxu0 %v1264
        %1287 = vmatprep.subr.bf16.mxu0 0
        %1288 = vmatpush1.bf16.msra.mxu0 %v1263
        %1289 = vmatprep.subr.bf16.mxu0 0
        %1290 = vmatpush1.bf16.msra.mxu0 %v1262
        %1291 = vmatprep.subr.bf16.mxu0 0
        %1292 = vmatpush1.bf16.msra.mxu0 %v1261
        %1293 = vmatprep.subr.bf16.mxu0 0
        %1294 = vmatpush2.bf16.msra.mxu0 0
        %1295 = vmatprep.subr.bf16.mxu0 0
        %1296 = vmatpush2.bf16.msra.mxu0 0
        %1297 = vmatprep.subr.bf16.mxu0 0
        %1298 = vmatpush2.bf16.msra.mxu0 0
        %1299 = vmatprep.subr.bf16.mxu0 0
        %1300 = vmatpush2.bf16.msra.mxu0 0
        %1301 = vmatprep.subr.bf16.mxu0 0
        %1302 = vmatpush2.bf16.msra.mxu0 0
        %1303 = vmatprep.subr.bf16.mxu0 0
        %1304 = vmatpush2.bf16.msra.mxu0 0
        %1305 = vmatprep.subr.bf16.mxu0 0
        %1306 = vmatpush2.bf16.msra.mxu0 0
        %1307 = vmatprep.subr.bf16.mxu0 0
        %1308 = vmatpush2.bf16.msra.mxu0 0
        %1309 = vmatprep.mubr.bf16.mxu0 0
        %1310 = vmatmul.mubr.bf16.gmra.mxu0 %v1212
        %v1311 = vpop.f32.mrf.mxu0
        %v1312 = vadd.f32 0.0, %v1311
        %v1313 = vpop.f32.mrf.mxu0
        %v1314 = vpop.f32.mrf.mxu0
        %v1315 = vpop.f32.mrf.mxu0
        %1316 = vdwg.mxu0
        %v1317 = vadd.f32 %v1104, %v1312
        %v1318 = vld [vmem:[%s12] sm:$0x1]
        %v1320 = vlaneseq
        %v1321 = vshrl.u32 %v1320, 7
        %v1322 = vsub.s32 0, %v1321
        %v1323 = vrot.slane %v1318, %v1322
        %v1325 = vadd.f32 %v1317, %v1323
        %1326 = vst.msk [vmem:[%s455] sm:$0xff] %vm460, %v1325
        %s1327 = sand.u32 %s316, 1
        %s1328 = scalar_lea.sflag [#allocation6], %s1327
        %s1329 = sand.u32 %s316, 1
        %s1330 = smul.addr %s1329, 8
        %s1331 = scalar_lea.vmem [#allocation7], %s1330
        // Predicated region
        $region77: #{tpu_custom_call.1} parent=71 // pred_check
          %p1332 = pneg %p326
        $region78: #{tpu_custom_call.1} parent=71 // pred_check_branch
          %1334 = sbr.rel (%p1332) target = $region80
        $region79: #{tpu_custom_call.1} parent=71 // pred_region
          %s1336 = ssub.s32 128, 128
          %1337 = vsyncadd %s1328, %s1336
          %s1338 = smul.addr %s30, 128
          %s1339 = scalar_lea.hbm %s13, %s1338
          %s1341 = sshll.u32 %s1331, 4
          %s1342 = int_to_ptr.vmem [resolvable:$true] %s1341
          %1344 = dma.vmem_to_hbm [thread:$0]  %s1342, 128, %s1339, %s1328
        $region80: #{tpu_custom_call.1} parent=71 // pred_fallthru
          _
      $region72: #{tpu_custom_call.1} parent=5 // pred_fallthru
        _
      %p1345 = scmp.le.s32.totalorder 2, %s25
      // Predicated region
      $region81: #{tpu_custom_call.1} parent=5 // pred_check
        %p1346 = pneg %p1345
      $region82: #{tpu_custom_call.1} parent=5 // pred_check_branch
        %1348 = sbr.rel (%p1346) target = $region84
      $region83: #{tpu_custom_call.1} parent=5 // pred_region
        %s1349 = ssub.s32 %s25, 2
        // Predicated region
        $region85: #{tpu_custom_call.1} parent=83 // pred_check
          %p1350 = pneg %p332
        $region86: #{tpu_custom_call.1} parent=83 // pred_check_branch
          %1352 = sbr.rel (%p1350) target = $region88
        $region87: #{tpu_custom_call.1} parent=83 // pred_region
          %s1353 = sand.u32 %s317, 1
          %s1354 = scalar_lea.sflag [#allocation6], %s1353
          %s1355 = sand.u32 %s317, 1
          %s1356 = smul.addr %s1355, 8
          %s1357 = scalar_lea.vmem [#allocation7], %s1356
          %1358 = dma.done %s1354, 128
        $region88: #{tpu_custom_call.1} parent=83 // pred_fallthru
          _
      $region84: #{tpu_custom_call.1} parent=5 // pred_fallthru
        _
    $region6: #{tpu_custom_call.1} parent=1 // loop_footer
      %s29 = sadd.s32 1, %s25
    $region7: #{tpu_custom_call.1} parent=1 // loop_footer_branch
      %24 = sbr.rel target = $region3
    $region8: #{tpu_custom_call.1} parent=1 // loop_exit
      _
    %1359 = vsyncpa [#allocation5], 1
    %s1360 = scalar_lea.sflag [#allocation5], 1
    %1361 = vsyncpa %s1360, 1
    %1362 = vsyncpa [#allocation6], 1
    %s1363 = scalar_lea.sflag [#allocation6], 1
    %1364 = vsyncpa %s1363, 1

// kernel: tpu_custom_call.1
$region0: #{tpu_custom_call.1}
  #allocation0 [shape = 'u32[]', space=smem, size = 0x4, offset = 0x4, fixed_abs, tag = 'smem constant byte address 0x4 - core index']
  #allocation1 [shape = 'u32[144,128]{1,0:T(1,128)}', space=vmem, size = 0x12000, scoped, tag = 'internal scratch']
  #allocation2 [shape = 'bf16[8,96]{1,0:T(8,128)(2,1)}', space=vmem, size = 0x800, scoped, tag = 'scratch operand']
  #allocation3 [shape = 'bf16[8,32]{1,0:T(8,128)(2,1)}', space=vmem, size = 0x800, scoped, tag = 'scratch operand']
  %s0 = inlined_call_operand.hbm [shape: f32[16,32], index: 0, kind: input, shape index: {}, may-alias: {0,13}]
  %s1 = inlined_call_operand.vmem [shape: f32[1,32], index: 1, kind: input, shape index: {}]
  %s2 = inlined_call_operand.vmem [shape: f32[1,32], index: 2, kind: input, shape index: {}]
  %s3 = inlined_call_operand.vmem [shape: bf16[32,96], index: 3, kind: input, shape index: {}]
  %s4 = inlined_call_operand.vmem [shape: f32[1,96], index: 4, kind: input, shape index: {}]
  %s5 = inlined_call_operand.vmem [shape: bf16[32,32], index: 5, kind: input, shape index: {}]
  %s6 = inlined_call_operand.vmem [shape: f32[1,32], index: 6, kind: input, shape index: {}]
  %s7 = inlined_call_operand.vmem [shape: f32[1,32], index: 7, kind: input, shape index: {}]
  %s8 = inlined_call_operand.vmem [shape: f32[1,32], index: 8, kind: input, shape index: {}]
  %s9 = inlined_call_operand.vmem [shape: bf16[32,128], index: 9, kind: input, shape index: {}]
  %s10 = inlined_call_operand.vmem [shape: f32[1,128], index: 10, kind: input, shape index: {}]
  %s11 = inlined_call_operand.vmem [shape: bf16[128,32], index: 11, kind: input, shape index: {}]
  %s12 = inlined_call_operand.vmem [shape: f32[1,32], index: 12, kind: input, shape index: {}]
  %s13 = inlined_call_operand.hbm [shape: f32[16,32], index: 13, kind: output, shape index: {}, may-alias: {0,13}]
  %s14 = sld [smem:[#allocation0]]
  $region89: #{tpu_custom_call.1} parent=0
    _
  %s16 = ssub.s32 1, %s14
  %s17 = scalar_select 0, %s16, %s14
  $region1: #{tpu_custom_call.1} parent=0
    #allocation4 [shape = 'u8[8192]{0}', space=vmem, size = 0x2000, scoped, tag = 'input window, operand 0']
    #allocation5 [shape = 's32[2]{0}', space=sflag, size = 0x8, scoped, tag = 'scoped memory for tpu_custom_call.1']
    #allocation6 [shape = 's32[2]{0}', space=sflag, size = 0x8, scoped, tag = 'scoped memory for tpu_custom_call.1']
    #allocation7 [shape = 'u8[8192]{0}', space=vmem, size = 0x2000, scoped, tag = 'output window, operand 0']
    %18 = vsyncpa [#allocation5], 0
    %s19 = scalar_lea.sflag [#allocation5], 1
    %20 = vsyncpa %s19, 0
    %21 = vsyncpa [#allocation6], 0
    %s22 = scalar_lea.sflag [#allocation6], 1
    %23 = vsyncpa %s22, 0
    loop: start=0, step=1, limit=4
    $region2: #{tpu_custom_call.1} parent=1 // loop_pre_header
      _
    $region3: #{tpu_custom_call.1} parent=1 // loop_header
      %s25 = sphi 0, %s29
      %p26 = scmp.ge.s32.totalorder %s25, 4
      %s35 = sphi 0, %s37
      %s38 = sphi 0, %s35
      %s39 = sphi 0, %s38
      %s55 = sphi 0, %s39
      %s59 = sphi 0, %s59
      %s61 = sphi 0, %s59
      %s62 = sphi 0, %s61
      %s76 = sphi 0, %s62
      %s80 = sphi 0, %s80
      %s82 = sphi 0, %s80
      %s83 = sphi 0, %s82
      %s97 = sphi 0, %s83
      %s101 = sphi 0, %s101
      %s103 = sphi 0, %s101
      %s104 = sphi 0, %s103
      %s118 = sphi 0, %s104
      %s122 = sphi 0, %s122
      %s124 = sphi 0, %s122
      %s125 = sphi 0, %s124
      %s139 = sphi 0, %s125
      %s143 = sphi 0, %s143
      %s145 = sphi 0, %s143
      %s146 = sphi 0, %s145
      %s160 = sphi 0, %s146
      %s164 = sphi 0, %s164
      %s166 = sphi 0, %s164
      %s167 = sphi 0, %s166
      %s181 = sphi 0, %s167
      %s185 = sphi 0, %s185
      %s187 = sphi 0, %s185
      %s188 = sphi 0, %s187
      %s202 = sphi 0, %s188
      %s206 = sphi 0, %s206
      %s208 = sphi 0, %s206
      %s209 = sphi 0, %s208
      %s223 = sphi 0, %s209
      %s227 = sphi 0, %s227
      %s229 = sphi 0, %s227
      %s230 = sphi 0, %s229
      %s244 = sphi 0, %s230
      %s248 = sphi 0, %s248
      %s250 = sphi 0, %s248
      %s251 = sphi 0, %s250
      %s265 = sphi 0, %s251
      %s269 = sphi 0, %s269
      %s271 = sphi 0, %s269
      %s272 = sphi 0, %s271
      %s286 = sphi 0, %s272
      %s290 = sphi 0, %s290
      %s292 = sphi 0, %s290
      %s293 = sphi 0, %s292
      %s307 = sphi 0, %s293
      %s313 = sphi 0, %s315
      %s316 = sphi 0, %s313
      %s317 = sphi 0, %s316
      %s333 = sphi 0, %s317
    $region4: #{tpu_custom_call.1} parent=1 // loop_header_branch
      %28 = sbr.rel (%p26) target = $region8
    $region5: #{tpu_custom_call.1} parent=1 // loop_body
      %s30 = ssub.s32 %s25, 1
      %s31 = ssub.s32 %s25, 2
      %s32 = sadd.s32 %s25, 1
      %s33 = ssub.s32 %s25, %s32
      %p34 = scmp.eq.s32.totalorder %s33, 0
      %s36 = sadd.s32 %s35, 1
      %s37 = scalar_select %p34, %s35, %s36
      %p40 = pneg %p34
      %p41 = scmp.eq.s32.totalorder %s25, 1
      %p42 = por %p40, %p41
      %p43 = scmp.ne.s32.totalorder %s35, %s38
      %p44 = scmp.eq.s32.totalorder %s25, 0
      %p45 = por %p43, %p44
      %p46 = scmp.ne.s32.totalorder %s35, %s38
      %p47 = scmp.eq.s32.totalorder %s30, 1
      %p48 = por %p46, %p47
      %p49 = scmp.ne.s32.totalorder %s38, %s39
      %p50 = scmp.eq.s32.totalorder %s30, 0
      %p51 = por %p49, %p50
      %p52 = scmp.ne.s32.totalorder %s38, %s39
      %p53 = scmp.eq.s32.totalorder %s31, 1
      %p54 = por %p52, %p53
      %p56 = scmp.ne.s32.totalorder %s39, %s55
      %p57 = scmp.eq.s32.totalorder %s31, 0
      %p58 = por %p56, %p57
      %s60 = sadd.s32 %s59, 1
      %p63 = scmp.eq.s32.totalorder %s25, 1
      %p64 = scmp.ne.s32.totalorder %s59, %s61
      %p65 = scmp.eq.s32.totalorder %s25, 0
      %p66 = por %p64, %p65
      %p67 = scmp.ne.s32.totalorder %s59, %s61
      %p68 = scmp.eq.s32.totalorder %s30, 1
      %p69 = por %p67, %p68
      %p70 = scmp.ne.s32.totalorder %s61, %s62
      %p71 = scmp.eq.s32.totalorder %s30, 0
      %p72 = por %p70, %p71
      %p73 = scmp.ne.s32.totalorder %s61, %s62
      %p74 = scmp.eq.s32.totalorder %s31, 1
      %p75 = por %p73, %p74
      %p77 = scmp.ne.s32.totalorder %s62, %s76
      %p78 = scmp.eq.s32.totalorder %s31, 0
      %p79 = por %p77, %p78
      %s81 = sadd.s32 %s80, 1
      %p84 = scmp.eq.s32.totalorder %s25, 1
      %p85 = scmp.ne.s32.totalorder %s80, %s82
      %p86 = scmp.eq.s32.totalorder %s25, 0
      %p87 = por %p85, %p86
      %p88 = scmp.ne.s32.totalorder %s80, %s82
      %p89 = scmp.eq.s32.totalorder %s30, 1
      %p90 = por %p88, %p89
      %p91 = scmp.ne.s32.totalorder %s82, %s83
      %p92 = scmp.eq.s32.totalorder %s30, 0
      %p93 = por %p91, %p92
      %p94 = scmp.ne.s32.totalorder %s82, %s83
      %p95 = scmp.eq.s32.totalorder %s31, 1
      %p96 = por %p94, %p95
      %p98 = scmp.ne.s32.totalorder %s83, %s97
      %p99 = scmp.eq.s32.totalorder %s31, 0
      %p100 = por %p98, %p99
      %s102 = sadd.s32 %s101, 1
      %p105 = scmp.eq.s32.totalorder %s25, 1
      %p106 = scmp.ne.s32.totalorder %s101, %s103
      %p107 = scmp.eq.s32.totalorder %s25, 0
      %p108 = por %p106, %p107
      %p109 = scmp.ne.s32.totalorder %s101, %s103
      %p110 = scmp.eq.s32.totalorder %s30, 1
      %p111 = por %p109, %p110
      %p112 = scmp.ne.s32.totalorder %s103, %s104
      %p113 = scmp.eq.s32.totalorder %s30, 0
      %p114 = por %p112, %p113
      %p115 = scmp.ne.s32.totalorder %s103, %s104
      %p116 = scmp.eq.s32.totalorder %s31, 1
      %p117 = por %p115, %p116
      %p119 = scmp.ne.s32.totalorder %s104, %s118
      %p120 = scmp.eq.s32.totalorder %s31, 0
      %p121 = por %p119, %p120
      %s123 = sadd.s32 %s122, 1
      %p126 = scmp.eq.s32.totalorder %s25, 1
      %p127 = scmp.ne.s32.totalorder %s122, %s124
      %p128 = scmp.eq.s32.totalorder %s25, 0
      %p129 = por %p127, %p128
      %p130 = scmp.ne.s32.totalorder %s122, %s124
      %p131 = scmp.eq.s32.totalorder %s30, 1
      %p132 = por %p130, %p131
      %p133 = scmp.ne.s32.totalorder %s124, %s125
      %p134 = scmp.eq.s32.totalorder %s30, 0
      %p135 = por %p133, %p134
      %p136 = scmp.ne.s32.totalorder %s124, %s125
      %p137 = scmp.eq.s32.totalorder %s31, 1
      %p138 = por %p136, %p137
      %p140 = scmp.ne.s32.totalorder %s125, %s139
      %p141 = scmp.eq.s32.totalorder %s31, 0
      %p142 = por %p140, %p141
      %s144 = sadd.s32 %s143, 1
      %p147 = scmp.eq.s32.totalorder %s25, 1
      %p148 = scmp.ne.s32.totalorder %s143, %s145
      %p149 = scmp.eq.s32.totalorder %s25, 0
      %p150 = por %p148, %p149
      %p151 = scmp.ne.s32.totalorder %s143, %s145
      %p152 = scmp.eq.s32.totalorder %s30, 1
      %p153 = por %p151, %p152
      %p154 = scmp.ne.s32.totalorder %s145, %s146
      %p155 = scmp.eq.s32.totalorder %s30, 0
      %p156 = por %p154, %p155
      %p157 = scmp.ne.s32.totalorder %s145, %s146
      %p158 = scmp.eq.s32.totalorder %s31, 1
      %p159 = por %p157, %p158
      %p161 = scmp.ne.s32.totalorder %s146, %s160
      %p162 = scmp.eq.s32.totalorder %s31, 0
      %p163 = por %p161, %p162
      %s165 = sadd.s32 %s164, 1
      %p168 = scmp.eq.s32.totalorder %s25, 1
      %p169 = scmp.ne.s32.totalorder %s164, %s166
      %p170 = scmp.eq.s32.totalorder %s25, 0
      %p171 = por %p169, %p170
      %p172 = scmp.ne.s32.totalorder %s164, %s166
      %p173 = scmp.eq.s32.totalorder %s30, 1
      %p174 = por %p172, %p173
      %p175 = scmp.ne.s32.totalorder %s166, %s167
      %p176 = scmp.eq.s32.totalorder %s30, 0
      %p177 = por %p175, %p176
      %p178 = scmp.ne.s32.totalorder %s166, %s167
      %p179 = scmp.eq.s32.totalorder %s31, 1
      %p180 = por %p178, %p179
      %p182 = scmp.ne.s32.totalorder %s167, %s181
      %p183 = scmp.eq.s32.totalorder %s31, 0
      %p184 = por %p182, %p183
      %s186 = sadd.s32 %s185, 1
      %p189 = scmp.eq.s32.totalorder %s25, 1
      %p190 = scmp.ne.s32.totalorder %s185, %s187
      %p191 = scmp.eq.s32.totalorder %s25, 0
      %p192 = por %p190, %p191
      %p193 = scmp.ne.s32.totalorder %s185, %s187
      %p194 = scmp.eq.s32.totalorder %s30, 1
      %p195 = por %p193, %p194
      %p196 = scmp.ne.s32.totalorder %s187, %s188
      %p197 = scmp.eq.s32.totalorder %s30, 0
      %p198 = por %p196, %p197
      %p199 = scmp.ne.s32.totalorder %s187, %s188
      %p200 = scmp.eq.s32.totalorder %s31, 1
      %p201 = por %p199, %p200
      %p203 = scmp.ne.s32.totalorder %s188, %s202
      %p204 = scmp.eq.s32.totalorder %s31, 0
      %p205 = por %p203, %p204
      %s207 = sadd.s32 %s206, 1
      %p210 = scmp.eq.s32.totalorder %s25, 1
      %p211 = scmp.ne.s32.totalorder %s206, %s208
      %p212 = scmp.eq.s32.totalorder %s25, 0
      %p213 = por %p211, %p212
      %p214 = scmp.ne.s32.totalorder %s206, %s208
      %p215 = scmp.eq.s32.totalorder %s30, 1
      %p216 = por %p214, %p215
      %p217 = scmp.ne.s32.totalorder %s208, %s209
      %p218 = scmp.eq.s32.totalorder %s30, 0
      %p219 = por %p217, %p218
      %p220 = scmp.ne.s32.totalorder %s208, %s209
      %p221 = scmp.eq.s32.totalorder %s31, 1
      %p222 = por %p220, %p221
      %p224 = scmp.ne.s32.totalorder %s209, %s223
      %p225 = scmp.eq.s32.totalorder %s31, 0
      %p226 = por %p224, %p225
      %s228 = sadd.s32 %s227, 1
      %p231 = scmp.eq.s32.totalorder %s25, 1
      %p232 = scmp.ne.s32.totalorder %s227, %s229
      %p233 = scmp.eq.s32.totalorder %s25, 0
      %p234 = por %p232, %p233
      %p235 = scmp.ne.s32.totalorder %s227, %s229
      %p236 = scmp.eq.s32.totalorder %s30, 1
      %p237 = por %p235, %p236
      %p238 = scmp.ne.s32.totalorder %s229, %s230
      %p239 = scmp.eq.s32.totalorder %s30, 0
      %p240 = por %p238, %p239
      %p241 = scmp.ne.s32.totalorder %s229, %s230
      %p242 = scmp.eq.s32.totalorder %s31, 1
      %p243 = por %p241, %p242
      %p245 = scmp.ne.s32.totalorder %s230, %s244
      %p246 = scmp.eq.s32.totalorder %s31, 0
      %p247 = por %p245, %p246
      %s249 = sadd.s32 %s248, 1
      %p252 = scmp.eq.s32.totalorder %s25, 1
      %p253 = scmp.ne.s32.totalorder %s248, %s250
      %p254 = scmp.eq.s32.totalorder %s25, 0
      %p255 = por %p253, %p254
      %p256 = scmp.ne.s32.totalorder %s248, %s250
      %p257 = scmp.eq.s32.totalorder %s30, 1
      %p258 = por %p256, %p257
      %p259 = scmp.ne.s32.totalorder %s250, %s251
      %p260 = scmp.eq.s32.totalorder %s30, 0
      %p261 = por %p259, %p260
      %p262 = scmp.ne.s32.totalorder %s250, %s251
      %p263 = scmp.eq.s32.totalorder %s31, 1
      %p264 = por %p262, %p263
      %p266 = scmp.ne.s32.totalorder %s251, %s265
      %p267 = scmp.eq.s32.totalorder %s31, 0
      %p268 = por %p266, %p267
      %s270 = sadd.s32 %s269, 1
      %p273 = scmp.eq.s32.totalorder %s25, 1
      %p274 = scmp.ne.s32.totalorder %s269, %s271
      %p275 = scmp.eq.s32.totalorder %s25, 0
      %p276 = por %p274, %p275
      %p277 = scmp.ne.s32.totalorder %s269, %s271
      %p278 = scmp.eq.s32.totalorder %s30, 1
      %p279 = por %p277, %p278
      %p280 = scmp.ne.s32.totalorder %s271, %s272
      %p281 = scmp.eq.s32.totalorder %s30, 0
      %p282 = por %p280, %p281
      %p283 = scmp.ne.s32.totalorder %s271, %s272
      %p284 = scmp.eq.s32.totalorder %s31, 1
      %p285 = por %p283, %p284
      %p287 = scmp.ne.s32.totalorder %s272, %s286
      %p288 = scmp.eq.s32.totalorder %s31, 0
      %p289 = por %p287, %p288
      %s291 = sadd.s32 %s290, 1
      %p294 = scmp.eq.s32.totalorder %s25, 1
      %p295 = scmp.ne.s32.totalorder %s290, %s292
      %p296 = scmp.eq.s32.totalorder %s25, 0
      %p297 = por %p295, %p296
      %p298 = scmp.ne.s32.totalorder %s290, %s292
      %p299 = scmp.eq.s32.totalorder %s30, 1
      %p300 = por %p298, %p299
      %p301 = scmp.ne.s32.totalorder %s292, %s293
      %p302 = scmp.eq.s32.totalorder %s30, 0
      %p303 = por %p301, %p302
      %p304 = scmp.ne.s32.totalorder %s292, %s293
      %p305 = scmp.eq.s32.totalorder %s31, 1
      %p306 = por %p304, %p305
      %p308 = scmp.ne.s32.totalorder %s293, %s307
      %p309 = scmp.eq.s32.totalorder %s31, 0
      %p310 = por %p308, %p309
      %s311 = ssub.s32 %s25, %s32
      %p312 = scmp.eq.s32.totalorder %s311, 0
      %s314 = sadd.s32 %s313, 1
      %s315 = scalar_select %p312, %s313, %s314
      %p318 = pneg %p312
      %p319 = scmp.eq.s32.totalorder %s25, 1
      %p320 = por %p318, %p319
      %p321 = scmp.ne.s32.totalorder %s313, %s316
      %p322 = scmp.eq.s32.totalorder %s25, 0
      %p323 = por %p321, %p322
      %p324 = scmp.ne.s32.totalorder %s313, %s316
      %p325 = scmp.eq.s32.totalorder %s30, 1
      %p326 = por %p324, %p325
      %p327 = scmp.ne.s32.totalorder %s316, %s317
      %p328 = scmp.eq.s32.totalorder %s30, 0
      %p329 = por %p327, %p328
      %p330 = scmp.ne.s32.totalorder %s316, %s317
      %p331 = scmp.eq.s32.totalorder %s31, 1
      %p332 = por %p330, %p331
      %p334 = scmp.ne.s32.totalorder %s317, %s333
      %p335 = scmp.eq.s32.totalorder %s31, 0
      %p336 = por %p334, %p335
      %p337 = scmp.le.s32.totalorder 1, %s25
      %p338 = scmp.lt.s32.totalorder %s25, 3
      %p339 = pnand %p337, %p338
      %p340 = pneg %p339
      // Predicated region
      $region9: #{tpu_custom_call.1} parent=5 // pred_check
        _
      $region10: #{tpu_custom_call.1} parent=5 // pred_check_branch
        %342 = sbr.rel (%p339) target = $region12
      $region11: #{tpu_custom_call.1} parent=5 // pred_region
        %s343 = ssub.s32 %s25, 1
        // Predicated region
        $region13: #{tpu_custom_call.1} parent=11 // pred_check
          %p344 = pneg %p72
        $region14: #{tpu_custom_call.1} parent=11 // pred_check_branch
          %346 = sbr.rel (%p344) target = $region16
        $region15: #{tpu_custom_call.1} parent=11 // pred_region
          _
        $region16: #{tpu_custom_call.1} parent=11 // pred_fallthru
          _
        // Predicated region
        $region17: #{tpu_custom_call.1} parent=11 // pred_check
          %p347 = pneg %p93
        $region18: #{tpu_custom_call.1} parent=11 // pred_check_branch
          %349 = sbr.rel (%p347) target = $region20
        $region19: #{tpu_custom_call.1} parent=11 // pred_region
          _
        $region20: #{tpu_custom_call.1} parent=11 // pred_fallthru
          _
        // Predicated region
        $region21: #{tpu_custom_call.1} parent=11 // pred_check
          %p350 = pneg %p114
        $region22: #{tpu_custom_call.1} parent=11 // pred_check_branch
          %352 = sbr.rel (%p350) target = $region24
        $region23: #{tpu_custom_call.1} parent=11 // pred_region
          _
        $region24: #{tpu_custom_call.1} parent=11 // pred_fallthru
          _
        // Predicated region
        $region25: #{tpu_custom_call.1} parent=11 // pred_check
          %p353 = pneg %p135
        $region26: #{tpu_custom_call.1} parent=11 // pred_check_branch
          %355 = sbr.rel (%p353) target = $region28
        $region27: #{tpu_custom_call.1} parent=11 // pred_region
          _
        $region28: #{tpu_custom_call.1} parent=11 // pred_fallthru
          _
        // Predicated region
        $region29: #{tpu_custom_call.1} parent=11 // pred_check
          %p356 = pneg %p156
        $region30: #{tpu_custom_call.1} parent=11 // pred_check_branch
          %358 = sbr.rel (%p356) target = $region32
        $region31: #{tpu_custom_call.1} parent=11 // pred_region
          _
        $region32: #{tpu_custom_call.1} parent=11 // pred_fallthru
          _
        // Predicated region
        $region33: #{tpu_custom_call.1} parent=11 // pred_check
          %p359 = pneg %p177
        $region34: #{tpu_custom_call.1} parent=11 // pred_check_branch
          %361 = sbr.rel (%p359) target = $region36
        $region35: #{tpu_custom_call.1} parent=11 // pred_region
          _
        $region36: #{tpu_custom_call.1} parent=11 // pred_fallthru
          _
        // Predicated region
        $region37: #{tpu_custom_call.1} parent=11 // pred_check
          %p362 = pneg %p198
        $region38: #{tpu_custom_call.1} parent=11 // pred_check_branch
          %364 = sbr.rel (%p362) target = $region40
        $region39: #{tpu_custom_call.1} parent=11 // pred_region
          _
        $region40: #{tpu_custom_call.1} parent=11 // pred_fallthru
          _
        // Predicated region
        $region41: #{tpu_custom_call.1} parent=11 // pred_check
          %p365 = pneg %p219
        $region42: #{tpu_custom_call.1} parent=11 // pred_check_branch
          %367 = sbr.rel (%p365) target = $region44
        $region43: #{tpu_custom_call.1} parent=11 // pred_region
          _
        $region44: #{tpu_custom_call.1} parent=11 // pred_fallthru
          _
        // Predicated region
        $region45: #{tpu_custom_call.1} parent=11 // pred_check
          %p368 = pneg %p240
        $region46: #{tpu_custom_call.1} parent=11 // pred_check_branch
          %370 = sbr.rel (%p368) target = $region48
        $region47: #{tpu_custom_call.1} parent=11 // pred_region
          _
        $region48: #{tpu_custom_call.1} parent=11 // pred_fallthru
          _
        // Predicated region
        $region49: #{tpu_custom_call.1} parent=11 // pred_check
          %p371 = pneg %p261
        $region50: #{tpu_custom_call.1} parent=11 // pred_check_branch
          %373 = sbr.rel (%p371) target = $region52
        $region51: #{tpu_custom_call.1} parent=11 // pred_region
          _
        $region52: #{tpu_custom_call.1} parent=11 // pred_fallthru
          _
        // Predicated region
        $region53: #{tpu_custom_call.1} parent=11 // pred_check
          %p374 = pneg %p282
        $region54: #{tpu_custom_call.1} parent=11 // pred_check_branch
          %376 = sbr.rel (%p374) target = $region56
        $region55: #{tpu_custom_call.1} parent=11 // pred_region
          _
        $region56: #{tpu_custom_call.1} parent=11 // pred_fallthru
          _
        // Predicated region
        $region57: #{tpu_custom_call.1} parent=11 // pred_check
          %p377 = pneg %p303
        $region58: #{tpu_custom_call.1} parent=11 // pred_check_branch
          %379 = sbr.rel (%p377) target = $region60
        $region59: #{tpu_custom_call.1} parent=11 // pred_region
          _
        $region60: #{tpu_custom_call.1} parent=11 // pred_fallthru
          _
      $region12: #{tpu_custom_call.1} parent=5 // pred_fallthru
        _
      %p380 = scmp.lt.s32.totalorder %s25, 2
      // Predicated region
      $region61: #{tpu_custom_call.1} parent=5 // pred_check
        %p381 = pneg %p380
      $region62: #{tpu_custom_call.1} parent=5 // pred_check_branch
        %383 = sbr.rel (%p381) target = $region64
      $region63: #{tpu_custom_call.1} parent=5 // pred_region
        // Predicated region
        $region65: #{tpu_custom_call.1} parent=63 // pred_check
          %p384 = pneg %p45
        $region66: #{tpu_custom_call.1} parent=63 // pred_check_branch
          %386 = sbr.rel (%p384) target = $region68
        $region67: #{tpu_custom_call.1} parent=63 // pred_region
          %s387 = sand.u32 %s35, 1
          %s388 = scalar_lea.sflag [#allocation5], %s387
          %s389 = sand.u32 %s35, 1
          %s390 = smul.addr %s389, 8
          %s391 = scalar_lea.vmem [#allocation4], %s390
          %s393 = ssub.s32 128, 128
          %394 = vsyncadd %s388, %s393
          %s395 = smul.addr %s25, 128
          %s396 = scalar_lea.hbm %s0, %s395
          %s398 = sshll.u32 %s391, 4
          %s399 = int_to_ptr.vmem [resolvable:$true] %s398
          %401 = dma.hbm_to_vmem [thread:$0]  %s396, 128, %s399, %s388
        $region68: #{tpu_custom_call.1} parent=63 // pred_fallthru
          _
      $region64: #{tpu_custom_call.1} parent=5 // pred_fallthru
        _
      %p402 = scmp.le.s32.totalorder 1, %s25
      %p403 = scmp.lt.s32.totalorder %s25, 3
      %p404 = pnand %p402, %p403
      %p405 = pneg %p404
      // Predicated region
      $region69: #{tpu_custom_call.1} parent=5 // pred_check
        _
      $region70: #{tpu_custom_call.1} parent=5 // pred_check_branch
        %407 = sbr.rel (%p404) target = $region72
      $region71: #{tpu_custom_call.1} parent=5 // pred_region
        %s408 = ssub.s32 %s25, 1
        %s409 = sand.u32 %s38, 1
        %s410 = scalar_lea.sflag [#allocation5], %s409
        %s411 = sand.u32 %s38, 1
        %s412 = smul.addr %s411, 8
        %s413 = scalar_lea.vmem [#allocation4], %s412
        // Predicated region
        $region73: #{tpu_custom_call.1} parent=71 // pred_check
          %p414 = pneg %p51
        $region74: #{tpu_custom_call.1} parent=71 // pred_check_branch
          %416 = sbr.rel (%p414) target = $region76
        $region75: #{tpu_custom_call.1} parent=71 // pred_region
          %417 = dma.done %s410, 128
        $region76: #{tpu_custom_call.1} parent=71 // pred_fallthru
          _
        %s418 = sand.u32 %s38, 1
        %s419 = scalar_lea.sflag [#allocation5], %s418
        %s420 = sand.u32 %s38, 1
        %s421 = smul.addr %s420, 8
        %s422 = scalar_lea.vmem [#allocation4], %s421
        %p423 = pneg %p51
        %p424 = pneg %p48
        %p425 = pneg %p72
        %p426 = pneg %p69
        %p427 = pneg %p93
        %p428 = pneg %p90
        %p429 = pneg %p114
        %p430 = pneg %p111
        %p431 = pneg %p135
        %p432 = pneg %p132
        %p433 = pneg %p156
        %p434 = pneg %p153
        %p435 = pneg %p177
        %p436 = pneg %p174
        %p437 = pneg %p198
        %p438 = pneg %p195
        %p439 = pneg %p219
        %p440 = pneg %p216
        %p441 = pneg %p240
        %p442 = pneg %p237
        %p443 = pneg %p261
        %p444 = pneg %p258
        %p445 = pneg %p282
        %p446 = pneg %p279
        %p447 = pneg %p303
        %p448 = pneg %p300
        %p449 = pneg %p329
        %p450 = pneg %p326
        %s451 = sand.u32 %s316, 1
        %s452 = scalar_lea.sflag [#allocation6], %s451
        %s453 = sand.u32 %s316, 1
        %s454 = smul.addr %s453, 8
        %s455 = scalar_lea.vmem [#allocation7], %s454
        %v457 = vld [vmem:[%s413] sm:$0xff]
        %v458 = vld [vmem:[%s1] sm:$0x1]
        %v459 = vld [vmem:[%s2] sm:$0x1]
        %vm460 = vcmask 261120
        %v461 = vsel %vm460, %v457, 0.0
        %462 = vadd.xlane.f32.xlu0 %v461
        %v463 = vpop.xlane.xlu0 %462
        %v464 = vmul.f32 %v457, %v457
        %v465 = vsel %vm460, %v464, 0.0
        %466 = vadd.xlane.f32.xlu0 %v465
        %v467 = vpop.xlane.xlu0 %466
        %v468 = vmul.f32 %v463, 0.03125
        %v469 = vmul.f32 %v467, 0.03125
        %v470 = vmul.f32 %v468, %v468
        %v471 = vsub.f32 %v469, %v470
        %v472 = vsub.f32 %v457, %v468
        %v473 = vadd.f32 %v471, 1e-05
        %v474 = vrsqrt.pop %v473
        %v475 = vmul.f32 %v472, %v474
        %v477 = vlaneseq
        %v478 = vshrl.u32 %v477, 7
        %v479 = vsub.s32 0, %v478
        %v480 = vrot.slane %v458, %v479
        %v482 = vmul.f32 %v475, %v480
        %v484 = vlaneseq
        %v485 = vshrl.u32 %v484, 7
        %v486 = vsub.s32 0, %v485
        %v487 = vrot.slane %v459, %v486
        %v489 = vadd.f32 %v482, %v487
        %v490 = vpack.c.bf16 %v489, %v489
        %v491 = vld [vmem:[%s3] sm:$0xf]
        %v492 = vld [vmem:[%s3 + $0x4] sm:$0xf]
        %v493 = vld [vmem:[%s3 + $0x8] sm:$0xf]
        %v494 = vld [vmem:[%s3 + $0xc] sm:$0xf]
        %v495 = vld [vmem:[%s4] sm:$0x1]
        %v497 = vlaneseq
        %v498 = vshrl.u32 %v497, 7
        %v499 = vsub.s32 0, %v498
        %v500 = vrot.slane %v495, %v499
        %v506 = vunpack.c.l.b16 %v491
        %v507 = vunpack.c.l.b16 %v492
        %v508 = vunpack.c.l.b16 %v493
        %v509 = vunpack.c.l.b16 %v494
        %v510 = vpack.c.b16 %v507, %v506
        %v511 = vpack.c.b16 %v509, %v508
        %v515 = vsel %vm460, %v490, 0
        %517 = vmatprep.subr.bf16.mxu0 0
        %518 = vmatpush1.bf16.msra.mxu0 0
        %519 = vmatprep.subr.bf16.mxu0 0
        %520 = vmatpush1.bf16.msra.mxu0 0
        %521 = vmatprep.subr.bf16.mxu0 0
        %522 = vmatpush1.bf16.msra.mxu0 0
        %523 = vmatprep.subr.bf16.mxu0 0
        %524 = vmatpush1.bf16.msra.mxu0 0
        %525 = vmatprep.subr.bf16.mxu0 0
        %526 = vmatpush1.bf16.msra.mxu0 0
        %527 = vmatprep.subr.bf16.mxu0 0
        %528 = vmatpush1.bf16.msra.mxu0 0
        %529 = vmatprep.subr.bf16.mxu0 0
        %530 = vmatpush1.bf16.msra.mxu0 %v511
        %531 = vmatprep.subr.bf16.mxu0 0
        %532 = vmatpush1.bf16.msra.mxu0 %v510
        %533 = vmatprep.subr.bf16.mxu0 0
        %534 = vmatpush2.bf16.msra.mxu0 0
        %535 = vmatprep.subr.bf16.mxu0 0
        %536 = vmatpush2.bf16.msra.mxu0 0
        %537 = vmatprep.subr.bf16.mxu0 0
        %538 = vmatpush2.bf16.msra.mxu0 0
        %539 = vmatprep.subr.bf16.mxu0 0
        %540 = vmatpush2.bf16.msra.mxu0 0
        %541 = vmatprep.subr.bf16.mxu0 0
        %542 = vmatpush2.bf16.msra.mxu0 0
        %543 = vmatprep.subr.bf16.mxu0 0
        %544 = vmatpush2.bf16.msra.mxu0 0
        %545 = vmatprep.subr.bf16.mxu0 0
        %546 = vmatpush2.bf16.msra.mxu0 0
        %547 = vmatprep.subr.bf16.mxu0 0
        %548 = vmatpush2.bf16.msra.mxu0 0
        %549 = vmatprep.mubr.bf16.mxu0 0
        %550 = vmatmul.mubr.bf16.gmra.mxu0 %v515
        %v551 = vpop.f32.mrf.mxu0
        %v552 = vadd.f32 %v500, %v551
        %v553 = vpop.f32.mrf.mxu0
        %v554 = vpop.f32.mrf.mxu0
        %v555 = vpop.f32.mrf.mxu0
        %556 = vdwg.mxu0
        %v557 = vpack.c.bf16 %v552, %v552
        %vm558 = vcmask 781312
        %559 = vst.msk [vmem:[#allocation2] sm:$0xf] %vm558, %v557
        %v560 = vlaneseq
        %v561 = vshrl.u32 %v560, 7
        %v562 = vlaneseq
        %v563 = vand.u32 %v562, 127
        %v564 = vld [vmem:[#allocation2] sm:$0xf]
        %vm565 = vcmp.le.s32.totalorder %v563, %v561
        %v567 = vunpack.c.l.b16 %v564
        %v568 = vpack.c.b16 %v567, %v567
        %569 = vrot.lane.b32.xlu0 %v568, 96
        %v570 = vpop.permute.xlu0 %569
        %vm571 = vcmask 64512
        %v573 = vsel %vm571, %v564, 0
        %v576 = vsel %vm571, %v570, 0
        %578 = vmatprep.subr.bf16.mxu0 0
        %579 = vmatpush1.bf16.xpose.msra.mxu0 0
        %580 = vmatprep.subr.bf16.mxu0 0
        %581 = vmatpush1.bf16.xpose.msra.mxu0 0
        %582 = vmatprep.subr.bf16.mxu0 0
        %583 = vmatpush1.bf16.xpose.msra.mxu0 0
        %584 = vmatprep.subr.bf16.mxu0 0
        %585 = vmatpush1.bf16.xpose.msra.mxu0 0
        %586 = vmatprep.subr.bf16.mxu0 0
        %587 = vmatpush1.bf16.xpose.msra.mxu0 0
        %588 = vmatprep.subr.bf16.mxu0 0
        %589 = vmatpush1.bf16.xpose.msra.mxu0 0
        %590 = vmatprep.subr.bf16.mxu0 0
        %591 = vmatpush1.bf16.xpose.msra.mxu0 0
        %592 = vmatprep.subr.bf16.mxu0 0
        %593 = vmatpush1.bf16.xpose.msra.mxu0 %v576
        %594 = vmatprep.subr.bf16.mxu0 0
        %595 = vmatpush2.bf16.xpose.msra.mxu0 0
        %596 = vmatprep.subr.bf16.mxu0 0
        %597 = vmatpush2.bf16.xpose.msra.mxu0 0
        %598 = vmatprep.subr.bf16.mxu0 0
        %599 = vmatpush2.bf16.xpose.msra.mxu0 0
        %600 = vmatprep.subr.bf16.mxu0 0
        %601 = vmatpush2.bf16.xpose.msra.mxu0 0
        %602 = vmatprep.subr.bf16.mxu0 0
        %603 = vmatpush2.bf16.xpose.msra.mxu0 0
        %604 = vmatprep.subr.bf16.mxu0 0
        %605 = vmatpush2.bf16.xpose.msra.mxu0 0
        %606 = vmatprep.subr.bf16.mxu0 0
        %607 = vmatpush2.bf16.xpose.msra.mxu0 0
        %608 = vmatprep.subr.bf16.mxu0 0
        %609 = vmatpush2.bf16.xpose.msra.mxu0 0
        %610 = vmatprep.mubr.bf16.mxu0 0
        %611 = vmatmul.mubr.bf16.gmra.mxu0 %v573
        %v612 = vpop.f32.mrf.mxu0
        %v613 = vadd.f32 0.0, %v612
        %v614 = vpop.f32.mrf.mxu0
        %v615 = vpop.f32.mrf.mxu0
        %v616 = vpop.f32.mrf.mxu0
        %617 = vdwg.mxu0
        %v618 = vmul.f32 %v613, 0.35355338
        %v619 = vsel %vm565, %v618, -inf
        %v620 = vsel %vm571, %v619, -inf
        %621 = vmax.xlane.f32.xlu0 %v620
        %v622 = vpop.xlane.xlu0 %621
        %v623 = vsub.f32 %v619, %v622
        %v624 = vmul.f32 %v623, 1.442695
        %v625 = vpow.pop %v624
        %v626 = vsel %vm571, %v625, 0.0
        %627 = vadd.xlane.f32.xlu0 %v626
        %v628 = vpop.xlane.xlu0 %627
        %v629 = vrcp.pop %v628
        %v630 = vmul.f32 %v625, %v629
        %v631 = vpack.c.bf16 %v630, %v630
        %632 = vrot.lane.b32.xlu0 %v568, 64
        %v633 = vpop.permute.xlu0 %632
        %v635 = vsel %vm571, %v631, 0
        %vm637 = vcmask 1043456
        %v639 = vsel %vm637, %v633, 0
        %641 = vmatprep.subr.bf16.mxu0 0
        %642 = vmatpush1.bf16.msra.mxu0 0
        %643 = vmatprep.subr.bf16.mxu0 0
        %644 = vmatpush1.bf16.msra.mxu0 0
        %645 = vmatprep.subr.bf16.mxu0 0
        %646 = vmatpush1.bf16.msra.mxu0 0
        %647 = vmatprep.subr.bf16.mxu0 0
        %648 = vmatpush1.bf16.msra.mxu0 0
        %649 = vmatprep.subr.bf16.mxu0 0
        %650 = vmatpush1.bf16.msra.mxu0 0
        %651 = vmatprep.subr.bf16.mxu0 0
        %652 = vmatpush1.bf16.msra.mxu0 0
        %653 = vmatprep.subr.bf16.mxu0 0
        %654 = vmatpush1.bf16.msra.mxu0 0
        %655 = vmatprep.subr.bf16.mxu0 0
        %656 = vmatpush1.bf16.msra.mxu0 %v639
        %657 = vmatprep.subr.bf16.mxu0 0
        %658 = vmatpush2.bf16.msra.mxu0 0
        %659 = vmatprep.subr.bf16.mxu0 0
        %660 = vmatpush2.bf16.msra.mxu0 0
        %661 = vmatprep.subr.bf16.mxu0 0
        %662 = vmatpush2.bf16.msra.mxu0 0
        %663 = vmatprep.subr.bf16.mxu0 0
        %664 = vmatpush2.bf16.msra.mxu0 0
        %665 = vmatprep.subr.bf16.mxu0 0
        %666 = vmatpush2.bf16.msra.mxu0 0
        %667 = vmatprep.subr.bf16.mxu0 0
        %668 = vmatpush2.bf16.msra.mxu0 0
        %669 = vmatprep.subr.bf16.mxu0 0
        %670 = vmatpush2.bf16.msra.mxu0 0
        %671 = vmatprep.subr.bf16.mxu0 0
        %672 = vmatpush2.bf16.msra.mxu0 0
        %673 = vmatprep.mubr.bf16.mxu0 0
        %674 = vmatmul.mubr.bf16.gmra.mxu0 %v635
        %v675 = vpop.f32.mrf.mxu0
        %v676 = vadd.f32 0.0, %v675
        %v677 = vpop.f32.mrf.mxu0
        %v678 = vpop.f32.mrf.mxu0
        %v679 = vpop.f32.mrf.mxu0
        %680 = vdwg.mxu0
        %681 = vrot.lane.b32.xlu0 %v568, 120
        %v682 = vpop.permute.xlu0 %681
        %683 = vrot.lane.b32.xlu0 %v568, 88
        %v684 = vpop.permute.xlu0 %683
        %v686 = vsel %vm571, %v682, 0
        %v689 = vsel %vm571, %v684, 0
        %691 = vmatprep.subr.bf16.mxu0 0
        %692 = vmatpush1.bf16.xpose.msra.mxu0 0
        %693 = vmatprep.subr.bf16.mxu0 0
        %694 = vmatpush1.bf16.xpose.msra.mxu0 0
        %695 = vmatprep.subr.bf16.mxu0 0
        %696 = vmatpush1.bf16.xpose.msra.mxu0 0
        %697 = vmatprep.subr.bf16.mxu0 0
        %698 = vmatpush1.bf16.xpose.msra.mxu0 0
        %699 = vmatprep.subr.bf16.mxu0 0
        %700 = vmatpush1.bf16.xpose.msra.mxu0 0
        %701 = vmatprep.subr.bf16.mxu0 0
        %702 = vmatpush1.bf16.xpose.msra.mxu0 0
        %703 = vmatprep.subr.bf16.mxu0 0
        %704 = vmatpush1.bf16.xpose.msra.mxu0 0
        %705 = vmatprep.subr.bf16.mxu0 0
        %706 = vmatpush1.bf16.xpose.msra.mxu0 %v689
        %707 = vmatprep.subr.bf16.mxu0 0
        %708 = vmatpush2.bf16.xpose.msra.mxu0 0
        %709 = vmatprep.subr.bf16.mxu0 0
        %710 = vmatpush2.bf16.xpose.msra.mxu0 0
        %711 = vmatprep.subr.bf16.mxu0 0
        %712 = vmatpush2.bf16.xpose.msra.mxu0 0
        %713 = vmatprep.subr.bf16.mxu0 0
        %714 = vmatpush2.bf16.xpose.msra.mxu0 0
        %715 = vmatprep.subr.bf16.mxu0 0
        %716 = vmatpush2.bf16.xpose.msra.mxu0 0
        %717 = vmatprep.subr.bf16.mxu0 0
        %718 = vmatpush2.bf16.xpose.msra.mxu0 0
        %719 = vmatprep.subr.bf16.mxu0 0
        %720 = vmatpush2.bf16.xpose.msra.mxu0 0
        %721 = vmatprep.subr.bf16.mxu0 0
        %722 = vmatpush2.bf16.xpose.msra.mxu0 0
        %723 = vmatprep.mubr.bf16.mxu0 0
        %724 = vmatmul.mubr.bf16.gmra.mxu0 %v686
        %v725 = vpop.f32.mrf.mxu0
        %v726 = vadd.f32 0.0, %v725
        %v727 = vpop.f32.mrf.mxu0
        %v728 = vpop.f32.mrf.mxu0
        %v729 = vpop.f32.mrf.mxu0
        %730 = vdwg.mxu0
        %v731 = vmul.f32 %v726, 0.35355338
        %v732 = vsel %vm565, %v731, -inf
        %v733 = vsel %vm571, %v732, -inf
        %734 = vmax.xlane.f32.xlu0 %v733
        %v735 = vpop.xlane.xlu0 %734
        %v736 = vsub.f32 %v732, %v735
        %v737 = vmul.f32 %v736, 1.442695
        %v738 = vpow.pop %v737
        %v739 = vsel %vm571, %v738, 0.0
        %740 = vadd.xlane.f32.xlu0 %v739
        %v741 = vpop.xlane.xlu0 %740
        %v742 = vrcp.pop %v741
        %v743 = vmul.f32 %v738, %v742
        %v744 = vpack.c.bf16 %v743, %v743
        %745 = vrot.lane.b32.xlu0 %v568, 56
        %v746 = vpop.permute.xlu0 %745
        %v748 = vsel %vm571, %v744, 0
        %v751 = vsel %vm637, %v746, 0
        %753 = vmatprep.subr.bf16.mxu0 0
        %754 = vmatpush1.bf16.msra.mxu0 0
        %755 = vmatprep.subr.bf16.mxu0 0
        %756 = vmatpush1.bf16.msra.mxu0 0
        %757 = vmatprep.subr.bf16.mxu0 0
        %758 = vmatpush1.bf16.msra.mxu0 0
        %759 = vmatprep.subr.bf16.mxu0 0
        %760 = vmatpush1.bf16.msra.mxu0 0
        %761 = vmatprep.subr.bf16.mxu0 0
        %762 = vmatpush1.bf16.msra.mxu0 0
        %763 = vmatprep.subr.bf16.mxu0 0
        %764 = vmatpush1.bf16.msra.mxu0 0
        %765 = vmatprep.subr.bf16.mxu0 0
        %766 = vmatpush1.bf16.msra.mxu0 0
        %767 = vmatprep.subr.bf16.mxu0 0
        %768 = vmatpush1.bf16.msra.mxu0 %v751
        %769 = vmatprep.subr.bf16.mxu0 0
        %770 = vmatpush2.bf16.msra.mxu0 0
        %771 = vmatprep.subr.bf16.mxu0 0
        %772 = vmatpush2.bf16.msra.mxu0 0
        %773 = vmatprep.subr.bf16.mxu0 0
        %774 = vmatpush2.bf16.msra.mxu0 0
        %775 = vmatprep.subr.bf16.mxu0 0
        %776 = vmatpush2.bf16.msra.mxu0 0
        %777 = vmatprep.subr.bf16.mxu0 0
        %778 = vmatpush2.bf16.msra.mxu0 0
        %779 = vmatprep.subr.bf16.mxu0 0
        %780 = vmatpush2.bf16.msra.mxu0 0
        %781 = vmatprep.subr.bf16.mxu0 0
        %782 = vmatpush2.bf16.msra.mxu0 0
        %783 = vmatprep.subr.bf16.mxu0 0
        %784 = vmatpush2.bf16.msra.mxu0 0
        %785 = vmatprep.mubr.bf16.mxu0 0
        %786 = vmatmul.mubr.bf16.gmra.mxu0 %v748
        %v787 = vpop.f32.mrf.mxu0
        %v788 = vadd.f32 0.0, %v787
        %v789 = vpop.f32.mrf.mxu0
        %v790 = vpop.f32.mrf.mxu0
        %v791 = vpop.f32.mrf.mxu0
        %792 = vdwg.mxu0
        %793 = vrot.lane.b32.xlu0 %v568, 112
        %v794 = vpop.permute.xlu0 %793
        %795 = vrot.lane.b32.xlu0 %v568, 80
        %v796 = vpop.permute.xlu0 %795
        %v798 = vsel %vm571, %v794, 0
        %v801 = vsel %vm571, %v796, 0
        %803 = vmatprep.subr.bf16.mxu0 0
        %804 = vmatpush1.bf16.xpose.msra.mxu0 0
        %805 = vmatprep.subr.bf16.mxu0 0
        %806 = vmatpush1.bf16.xpose.msra.mxu0 0
        %807 = vmatprep.subr.bf16.mxu0 0
        %808 = vmatpush1.bf16.xpose.msra.mxu0 0
        %809 = vmatprep.subr.bf16.mxu0 0
        %810 = vmatpush1.bf16.xpose.msra.mxu0 0
        %811 = vmatprep.subr.bf16.mxu0 0
        %812 = vmatpush1.bf16.xpose.msra.mxu0 0
        %813 = vmatprep.subr.bf16.mxu0 0
        %814 = vmatpush1.bf16.xpose.msra.mxu0 0
        %815 = vmatprep.subr.bf16.mxu0 0
        %816 = vmatpush1.bf16.xpose.msra.mxu0 0
        %817 = vmatprep.subr.bf16.mxu0 0
        %818 = vmatpush1.bf16.xpose.msra.mxu0 %v801
        %819 = vmatprep.subr.bf16.mxu0 0
        %820 = vmatpush2.bf16.xpose.msra.mxu0 0
        %821 = vmatprep.subr.bf16.mxu0 0
        %822 = vmatpush2.bf16.xpose.msra.mxu0 0
        %823 = vmatprep.subr.bf16.mxu0 0
        %824 = vmatpush2.bf16.xpose.msra.mxu0 0
        %825 = vmatprep.subr.bf16.mxu0 0
        %826 = vmatpush2.bf16.xpose.msra.mxu0 0
        %827 = vmatprep.subr.bf16.mxu0 0
        %828 = vmatpush2.bf16.xpose.msra.mxu0 0
        %829 = vmatprep.subr.bf16.mxu0 0
        %830 = vmatpush2.bf16.xpose.msra.mxu0 0
        %831 = vmatprep.subr.bf16.mxu0 0
        %832 = vmatpush2.bf16.xpose.msra.mxu0 0
        %833 = vmatprep.subr.bf16.mxu0 0
        %834 = vmatpush2.bf16.xpose.msra.mxu0 0
        %835 = vmatprep.mubr.bf16.mxu0 0
        %836 = vmatmul.mubr.bf16.gmra.mxu0 %v798
        %v837 = vpop.f32.mrf.mxu0
        %v838 = vadd.f32 0.0, %v837
        %v839 = vpop.f32.mrf.mxu0
        %v840 = vpop.f32.mrf.mxu0
        %v841 = vpop.f32.mrf.mxu0
        %842 = vdwg.mxu0
        %v843 = vmul.f32 %v838, 0.35355338
        %v844 = vsel %vm565, %v843, -inf
        %v845 = vsel %vm571, %v844, -inf
        %846 = vmax.xlane.f32.xlu0 %v845
        %v847 = vpop.xlane.xlu0 %846
        %v848 = vsub.f32 %v844, %v847
        %v849 = vmul.f32 %v848, 1.442695
        %v850 = vpow.pop %v849
        %v851 = vsel %vm571, %v850, 0.0
        %852 = vadd.xlane.f32.xlu0 %v851
        %v853 = vpop.xlane.xlu0 %852
        %v854 = vrcp.pop %v853
        %v855 = vmul.f32 %v850, %v854
        %v856 = vpack.c.bf16 %v855, %v855
        %857 = vrot.lane.b32.xlu0 %v568, 48
        %v858 = vpop.permute.xlu0 %857
        %v860 = vsel %vm571, %v856, 0
        %v863 = vsel %vm637, %v858, 0
        %865 = vmatprep.subr.bf16.mxu0 0
        %866 = vmatpush1.bf16.msra.mxu0 0
        %867 = vmatprep.subr.bf16.mxu0 0
        %868 = vmatpush1.bf16.msra.mxu0 0
        %869 = vmatprep.subr.bf16.mxu0 0
        %870 = vmatpush1.bf16.msra.mxu0 0
        %871 = vmatprep.subr.bf16.mxu0 0
        %872 = vmatpush1.bf16.msra.mxu0 0
        %873 = vmatprep.subr.bf16.mxu0 0
        %874 = vmatpush1.bf16.msra.mxu0 0
        %875 = vmatprep.subr.bf16.mxu0 0
        %876 = vmatpush1.bf16.msra.mxu0 0
        %877 = vmatprep.subr.bf16.mxu0 0
        %878 = vmatpush1.bf16.msra.mxu0 0
        %879 = vmatprep.subr.bf16.mxu0 0
        %880 = vmatpush1.bf16.msra.mxu0 %v863
        %881 = vmatprep.subr.bf16.mxu0 0
        %882 = vmatpush2.bf16.msra.mxu0 0
        %883 = vmatprep.subr.bf16.mxu0 0
        %884 = vmatpush2.bf16.msra.mxu0 0
        %885 = vmatprep.subr.bf16.mxu0 0
        %886 = vmatpush2.bf16.msra.mxu0 0
        %887 = vmatprep.subr.bf16.mxu0 0
        %888 = vmatpush2.bf16.msra.mxu0 0
        %889 = vmatprep.subr.bf16.mxu0 0
        %890 = vmatpush2.bf16.msra.mxu0 0
        %891 = vmatprep.subr.bf16.mxu0 0
        %892 = vmatpush2.bf16.msra.mxu0 0
        %893 = vmatprep.subr.bf16.mxu0 0
        %894 = vmatpush2.bf16.msra.mxu0 0
        %895 = vmatprep.subr.bf16.mxu0 0
        %896 = vmatpush2.bf16.msra.mxu0 0
        %897 = vmatprep.mubr.bf16.mxu0 0
        %898 = vmatmul.mubr.bf16.gmra.mxu0 %v860
        %v899 = vpop.f32.mrf.mxu0
        %v900 = vadd.f32 0.0, %v899
        %v901 = vpop.f32.mrf.mxu0
        %v902 = vpop.f32.mrf.mxu0
        %v903 = vpop.f32.mrf.mxu0
        %904 = vdwg.mxu0
        %905 = vrot.lane.b32.xlu0 %v568, 104
        %v906 = vpop.permute.xlu0 %905
        %907 = vrot.lane.b32.xlu0 %v568, 72
        %v908 = vpop.permute.xlu0 %907
        %v910 = vsel %vm571, %v906, 0
        %v913 = vsel %vm571, %v908, 0
        %915 = vmatprep.subr.bf16.mxu0 0
        %916 = vmatpush1.bf16.xpose.msra.mxu0 0
        %917 = vmatprep.subr.bf16.mxu0 0
        %918 = vmatpush1.bf16.xpose.msra.mxu0 0
        %919 = vmatprep.subr.bf16.mxu0 0
        %920 = vmatpush1.bf16.xpose.msra.mxu0 0
        %921 = vmatprep.subr.bf16.mxu0 0
        %922 = vmatpush1.bf16.xpose.msra.mxu0 0
        %923 = vmatprep.subr.bf16.mxu0 0
        %924 = vmatpush1.bf16.xpose.msra.mxu0 0
        %925 = vmatprep.subr.bf16.mxu0 0
        %926 = vmatpush1.bf16.xpose.msra.mxu0 0
        %927 = vmatprep.subr.bf16.mxu0 0
        %928 = vmatpush1.bf16.xpose.msra.mxu0 0
        %929 = vmatprep.subr.bf16.mxu0 0
        %930 = vmatpush1.bf16.xpose.msra.mxu0 %v913
        %931 = vmatprep.subr.bf16.mxu0 0
        %932 = vmatpush2.bf16.xpose.msra.mxu0 0
        %933 = vmatprep.subr.bf16.mxu0 0
        %934 = vmatpush2.bf16.xpose.msra.mxu0 0
        %935 = vmatprep.subr.bf16.mxu0 0
        %936 = vmatpush2.bf16.xpose.msra.mxu0 0
        %937 = vmatprep.subr.bf16.mxu0 0
        %938 = vmatpush2.bf16.xpose.msra.mxu0 0
        %939 = vmatprep.subr.bf16.mxu0 0
        %940 = vmatpush2.bf16.xpose.msra.mxu0 0
        %941 = vmatprep.subr.bf16.mxu0 0
        %942 = vmatpush2.bf16.xpose.msra.mxu0 0
        %943 = vmatprep.subr.bf16.mxu0 0
        %944 = vmatpush2.bf16.xpose.msra.mxu0 0
        %945 = vmatprep.subr.bf16.mxu0 0
        %946 = vmatpush2.bf16.xpose.msra.mxu0 0
        %947 = vmatprep.mubr.bf16.mxu0 0
        %948 = vmatmul.mubr.bf16.gmra.mxu0 %v910
        %v949 = vpop.f32.mrf.mxu0
        %v950 = vadd.f32 0.0, %v949
        %v951 = vpop.f32.mrf.mxu0
        %v952 = vpop.f32.mrf.mxu0
        %v953 = vpop.f32.mrf.mxu0
        %954 = vdwg.mxu0
        %v955 = vmul.f32 %v950, 0.35355338
        %v956 = vsel %vm565, %v955, -inf
        %v957 = vsel %vm571, %v956, -inf
        %958 = vmax.xlane.f32.xlu0 %v957
        %v959 = vpop.xlane.xlu0 %958
        %v960 = vsub.f32 %v956, %v959
        %v961 = vmul.f32 %v960, 1.442695
        %v962 = vpow.pop %v961
        %v963 = vsel %vm571, %v962, 0.0
        %964 = vadd.xlane.f32.xlu0 %v963
        %v965 = vpop.xlane.xlu0 %964
        %v966 = vrcp.pop %v965
        %v967 = vmul.f32 %v962, %v966
        %v968 = vpack.c.bf16 %v967, %v967
        %969 = vrot.lane.b32.xlu0 %v568, 40
        %v970 = vpop.permute.xlu0 %969
        %v972 = vsel %vm571, %v968, 0
        %v975 = vsel %vm637, %v970, 0
        %977 = vmatprep.subr.bf16.mxu0 0
        %978 = vmatpush1.bf16.msra.mxu0 0
        %979 = vmatprep.subr.bf16.mxu0 0
        %980 = vmatpush1.bf16.msra.mxu0 0
        %981 = vmatprep.subr.bf16.mxu0 0
        %982 = vmatpush1.bf16.msra.mxu0 0
        %983 = vmatprep.subr.bf16.mxu0 0
        %984 = vmatpush1.bf16.msra.mxu0 0
        %985 = vmatprep.subr.bf16.mxu0 0
        %986 = vmatpush1.bf16.msra.mxu0 0
        %987 = vmatprep.subr.bf16.mxu0 0
        %988 = vmatpush1.bf16.msra.mxu0 0
        %989 = vmatprep.subr.bf16.mxu0 0
        %990 = vmatpush1.bf16.msra.mxu0 0
        %991 = vmatprep.subr.bf16.mxu0 0
        %992 = vmatpush1.bf16.msra.mxu0 %v975
        %993 = vmatprep.subr.bf16.mxu0 0
        %994 = vmatpush2.bf16.msra.mxu0 0
        %995 = vmatprep.subr.bf16.mxu0 0
        %996 = vmatpush2.bf16.msra.mxu0 0
        %997 = vmatprep.subr.bf16.mxu0 0
        %998 = vmatpush2.bf16.msra.mxu0 0
        %999 = vmatprep.subr.bf16.mxu0 0
        %1000 = vmatpush2.bf16.msra.mxu0 0
        %1001 = vmatprep.subr.bf16.mxu0 0
        %1002 = vmatpush2.bf16.msra.mxu0 0
        %1003 = vmatprep.subr.bf16.mxu0 0
        %1004 = vmatpush2.bf16.msra.mxu0 0
        %1005 = vmatprep.subr.bf16.mxu0 0
        %1006 = vmatpush2.bf16.msra.mxu0 0
        %1007 = vmatprep.subr.bf16.mxu0 0
        %1008 = vmatpush2.bf16.msra.mxu0 0
        %1009 = vmatprep.mubr.bf16.mxu0 0
        %1010 = vmatmul.mubr.bf16.gmra.mxu0 %v972
        %v1011 = vpop.f32.mrf.mxu0
        %v1012 = vadd.f32 0.0, %v1011
        %v1013 = vpop.f32.mrf.mxu0
        %v1014 = vpop.f32.mrf.mxu0
        %v1015 = vpop.f32.mrf.mxu0
        %1016 = vdwg.mxu0
        %1018 = vrot.lane.b32.xlu0 %v788, 8
        %v1019 = vpop.permute.xlu0 %1018
        %1022 = vrot.lane.b32.xlu0 %v900, 16
        %v1023 = vpop.permute.xlu0 %1022
        %1026 = vrot.lane.b32.xlu0 %v1012, 24
        %v1027 = vpop.permute.xlu0 %1026
        %v1029 = vsel %vm571, %v676, %v1019
        %vm1030 = vcmask 130048
        %v1031 = vsel %vm1030, %v1029, %v1023
        %vm1032 = vcmask 195584
        %v1033 = vsel %vm1032, %v1031, %v1027
        %v1034 = vpack.c.bf16 %v1033, %v1033
        %vm1035 = vcmask 257024
        %1036 = vst.msk [vmem:[#allocation3] sm:$0xf] %vm1035, %v1034
        %v1037 = vld [vmem:[#allocation3] sm:$0xf]
        %v1038 = vld [vmem:[%s5] sm:$0xf]
        %v1039 = vld [vmem:[%s5 + $0x4] sm:$0xf]
        %v1040 = vld [vmem:[%s5 + $0x8] sm:$0xf]
        %v1041 = vld [vmem:[%s5 + $0xc] sm:$0xf]
        %v1042 = vld [vmem:[%s6] sm:$0x1]
        %v1044 = vlaneseq
        %v1045 = vshrl.u32 %v1044, 7
        %v1046 = vsub.s32 0, %v1045
        %v1047 = vrot.slane %v1042, %v1046
        %v1053 = vunpack.c.l.b16 %v1038
        %v1054 = vunpack.c.l.b16 %v1039
        %v1055 = vunpack.c.l.b16 %v1040
        %v1056 = vunpack.c.l.b16 %v1041
        %v1057 = vpack.c.b16 %v1054, %v1053
        %v1058 = vpack.c.b16 %v1056, %v1055
        %v1062 = vsel %vm460, %v1037, 0
        %1064 = vmatprep.subr.bf16.mxu0 0
        %1065 = vmatpush1.bf16.msra.mxu0 0
        %1066 = vmatprep.subr.bf16.mxu0 0
        %1067 = vmatpush1.bf16.msra.mxu0 0
        %1068 = vmatprep.subr.bf16.mxu0 0
        %1069 = vmatpush1.bf16.msra.mxu0 0
        %1070 = vmatprep.subr.bf16.mxu0 0
        %1071 = vmatpush1.bf16.msra.mxu0 0
        %1072 = vmatprep.subr.bf16.mxu0 0
        %1073 = vmatpush1.bf16.msra.mxu0 0
        %1074 = vmatprep.subr.bf16.mxu0 0
        %1075 = vmatpush1.bf16.msra.mxu0 0
        %1076 = vmatprep.subr.bf16.mxu0 0
        %1077 = vmatpush1.bf16.msra.mxu0 %v1058
        %1078 = vmatprep.subr.bf16.mxu0 0
        %1079 = vmatpush1.bf16.msra.mxu0 %v1057
        %1080 = vmatprep.subr.bf16.mxu0 0
        %1081 = vmatpush2.bf16.msra.mxu0 0
        %1082 = vmatprep.subr.bf16.mxu0 0
        %1083 = vmatpush2.bf16.msra.mxu0 0
        %1084 = vmatprep.subr.bf16.mxu0 0
        %1085 = vmatpush2.bf16.msra.mxu0 0
        %1086 = vmatprep.subr.bf16.mxu0 0
        %1087 = vmatpush2.bf16.msra.mxu0 0
        %1088 = vmatprep.subr.bf16.mxu0 0
        %1089 = vmatpush2.bf16.msra.mxu0 0
        %1090 = vmatprep.subr.bf16.mxu0 0
        %1091 = vmatpush2.bf16.msra.mxu0 0
        %1092 = vmatprep.subr.bf16.mxu0 0
        %1093 = vmatpush2.bf16.msra.mxu0 0
        %1094 = vmatprep.subr.bf16.mxu0 0
        %1095 = vmatpush2.bf16.msra.mxu0 0
        %1096 = vmatprep.mubr.bf16.mxu0 0
        %1097 = vmatmul.mubr.bf16.gmra.mxu0 %v1062
        %v1098 = vpop.f32.mrf.mxu0
        %v1099 = vadd.f32 %v1047, %v1098
        %v1100 = vpop.f32.mrf.mxu0
        %v1101 = vpop.f32.mrf.mxu0
        %v1102 = vpop.f32.mrf.mxu0
        %1103 = vdwg.mxu0
        %v1104 = vadd.f32 %v457, %v1099
        %v1105 = vld [vmem:[%s7] sm:$0x1]
        %v1106 = vld [vmem:[%s8] sm:$0x1]
        %v1107 = vsel %vm460, %v1104, 0.0
        %1108 = vadd.xlane.f32.xlu0 %v1107
        %v1109 = vpop.xlane.xlu0 %1108
        %v1110 = vmul.f32 %v1104, %v1104
        %v1111 = vsel %vm460, %v1110, 0.0
        %1112 = vadd.xlane.f32.xlu0 %v1111
        %v1113 = vpop.xlane.xlu0 %1112
        %v1114 = vmul.f32 %v1109, 0.03125
        %v1115 = vmul.f32 %v1113, 0.03125
        %v1116 = vmul.f32 %v1114, %v1114
        %v1117 = vsub.f32 %v1115, %v1116
        %v1118 = vsub.f32 %v1104, %v1114
        %v1119 = vadd.f32 %v1117, 1e-05
        %v1120 = vrsqrt.pop %v1119
        %v1121 = vmul.f32 %v1118, %v1120
        %v1123 = vlaneseq
        %v1124 = vshrl.u32 %v1123, 7
        %v1125 = vsub.s32 0, %v1124
        %v1126 = vrot.slane %v1105, %v1125
        %v1128 = vmul.f32 %v1121, %v1126
        %v1130 = vlaneseq
        %v1131 = vshrl.u32 %v1130, 7
        %v1132 = vsub.s32 0, %v1131
        %v1133 = vrot.slane %v1106, %v1132
        %v1135 = vadd.f32 %v1128, %v1133
        %v1136 = vpack.c.bf16 %v1135, %v1135
        %v1137 = vld [vmem:[%s9] sm:$0xf]
        %v1138 = vld [vmem:[%s9 + $0x4] sm:$0xf]
        %v1139 = vld [vmem:[%s9 + $0x8] sm:$0xf]
        %v1140 = vld [vmem:[%s9 + $0xc] sm:$0xf]
        %v1141 = vld [vmem:[%s10] sm:$0x1]
        %v1143 = vlaneseq
        %v1144 = vshrl.u32 %v1143, 7
        %v1145 = vsub.s32 0, %v1144
        %v1146 = vrot.slane %v1141, %v1145
        %v1152 = vunpack.c.l.b16 %v1137
        %v1153 = vunpack.c.l.b16 %v1138
        %v1154 = vunpack.c.l.b16 %v1139
        %v1155 = vunpack.c.l.b16 %v1140
        %v1156 = vpack.c.b16 %v1153, %v1152
        %v1157 = vpack.c.b16 %v1155, %v1154
        %v1161 = vsel %vm460, %v1136, 0
        %1163 = vmatprep.subr.bf16.mxu0 0
        %1164 = vmatpush1.bf16.msra.mxu0 0
        %1165 = vmatprep.subr.bf16.mxu0 0
        %1166 = vmatpush1.bf16.msra.mxu0 0
        %1167 = vmatprep.subr.bf16.mxu0 0
        %1168 = vmatpush1.bf16.msra.mxu0 0
        %1169 = vmatprep.subr.bf16.mxu0 0
        %1170 = vmatpush1.bf16.msra.mxu0 0
        %1171 = vmatprep.subr.bf16.mxu0 0
        %1172 = vmatpush1.bf16.msra.mxu0 0
        %1173 = vmatprep.subr.bf16.mxu0 0
        %1174 = vmatpush1.bf16.msra.mxu0 0
        %1175 = vmatprep.subr.bf16.mxu0 0
        %1176 = vmatpush1.bf16.msra.mxu0 %v1157
        %1177 = vmatprep.subr.bf16.mxu0 0
        %1178 = vmatpush1.bf16.msra.mxu0 %v1156
        %1179 = vmatprep.subr.bf16.mxu0 0
        %1180 = vmatpush2.bf16.msra.mxu0 0
        %1181 = vmatprep.subr.bf16.mxu0 0
        %1182 = vmatpush2.bf16.msra.mxu0 0
        %1183 = vmatprep.subr.bf16.mxu0 0
        %1184 = vmatpush2.bf16.msra.mxu0 0
        %1185 = vmatprep.subr.bf16.mxu0 0
        %1186 = vmatpush2.bf16.msra.mxu0 0
        %1187 = vmatprep.subr.bf16.mxu0 0
        %1188 = vmatpush2.bf16.msra.mxu0 0
        %1189 = vmatprep.subr.bf16.mxu0 0
        %1190 = vmatpush2.bf16.msra.mxu0 0
        %1191 = vmatprep.subr.bf16.mxu0 0
        %1192 = vmatpush2.bf16.msra.mxu0 0
        %1193 = vmatprep.subr.bf16.mxu0 0
        %1194 = vmatpush2.bf16.msra.mxu0 0
        %1195 = vmatprep.mubr.bf16.mxu0 0
        %1196 = vmatmul.mubr.bf16.gmra.mxu0 %v1161
        %v1197 = vpop.f32.mrf.mxu0
        %v1198 = vadd.f32 %v1146, %v1197
        %v1199 = vpop.f32.mrf.mxu0
        %v1200 = vpop.f32.mrf.mxu0
        %v1201 = vpop.f32.mrf.mxu0
        %1202 = vdwg.mxu0
        %v1203 = vmul.f32 %v1198, 0.5
        %v1204 = vmul.f32 %v1198, 0.044715
        %v1205 = vmul.f32 %v1204, %v1198
        %v1206 = vmul.f32 %v1205, %v1198
        %v1207 = vadd.f32 %v1198, %v1206
        %v1208 = vmul.f32 %v1207, 0.7978846
        %v1209 = vtanh.pop %v1208
        %v1210 = vadd.f32 %v1209, 1.0
        %v1211 = vmul.f32 %v1203, %v1210
        %v1212 = vpack.c.bf16 %v1211, %v1211
        %v1213 = vld [vmem:[%s11] sm:$0xf]
        %v1214 = vld [vmem:[%s11 + $0x4] sm:$0xf]
        %v1215 = vld [vmem:[%s11 + $0x8] sm:$0xf]
        %v1216 = vld [vmem:[%s11 + $0xc] sm:$0xf]
        %v1217 = vld [vmem:[%s11 + $0x10] sm:$0xf]
        %v1218 = vld [vmem:[%s11 + $0x14] sm:$0xf]
        %v1219 = vld [vmem:[%s11 + $0x18] sm:$0xf]
        %v1220 = vld [vmem:[%s11 + $0x1c] sm:$0xf]
        %v1221 = vld [vmem:[%s11 + $0x20] sm:$0xf]
        %v1222 = vld [vmem:[%s11 + $0x24] sm:$0xf]
        %v1223 = vld [vmem:[%s11 + $0x28] sm:$0xf]
        %v1224 = vld [vmem:[%s11 + $0x2c] sm:$0xf]
        %v1225 = vld [vmem:[%s11 + $0x30] sm:$0xf]
        %v1226 = vld [vmem:[%s11 + $0x34] sm:$0xf]
        %v1227 = vld [vmem:[%s11 + $0x38] sm:$0xf]
        %v1228 = vld [vmem:[%s11 + $0x3c] sm:$0xf]
        %v1245 = vunpack.c.l.b16 %v1213
        %v1246 = vunpack.c.l.b16 %v1214
        %v1247 = vunpack.c.l.b16 %v1215
        %v1248 = vunpack.c.l.b16 %v1216
        %v1249 = vunpack.c.l.b16 %v1217
        %v1250 = vunpack.c.l.b16 %v1218
        %v1251 = vunpack.c.l.b16 %v1219
        %v1252 = vunpack.c.l.b16 %v1220
        %v1253 = vunpack.c.l.b16 %v1221
        %v1254 = vunpack.c.l.b16 %v1222
        %v1255 = vunpack.c.l.b16 %v1223
        %v1256 = vunpack.c.l.b16 %v1224
        %v1257 = vunpack.c.l.b16 %v1225
        %v1258 = vunpack.c.l.b16 %v1226
        %v1259 = vunpack.c.l.b16 %v1227
        %v1260 = vunpack.c.l.b16 %v1228
        %v1261 = vpack.c.b16 %v1246, %v1245
        %v1262 = vpack.c.b16 %v1248, %v1247
        %v1263 = vpack.c.b16 %v1250, %v1249
        %v1264 = vpack.c.b16 %v1252, %v1251
        %v1265 = vpack.c.b16 %v1254, %v1253
        %v1266 = vpack.c.b16 %v1256, %v1255
        %v1267 = vpack.c.b16 %v1258, %v1257
        %v1268 = vpack.c.b16 %v1260, %v1259
        %1277 = vmatprep.subr.bf16.mxu0 0
        %1278 = vmatpush1.bf16.msra.mxu0 %v1268
        %1279 = vmatprep.subr.bf16.mxu0 0
        %1280 = vmatpush1.bf16.msra.mxu0 %v1267
        %1281 = vmatprep.subr.bf16.mxu0 0
        %1282 = vmatpush1.bf16.msra.mxu0 %v1266
        %1283 = vmatprep.subr.bf16.mxu0 0
        %1284 = vmatpush1.bf16.msra.mxu0 %v1265
        %1285 = vmatprep.subr.bf16.mxu0 0
        %1286 = vmatpush1.bf16.msra.mxu0 %v1264
        %1287 = vmatprep.subr.bf16.mxu0 0
        %1288 = vmatpush1.bf16.msra.mxu0 %v1263
        %1289 = vmatprep.subr.bf16.mxu0 0
        %1290 = vmatpush1.bf16.msra.mxu0 %v1262
        %1291 = vmatprep.subr.bf16.mxu0 0
        %1292 = vmatpush1.bf16.msra.mxu0 %v1261
        %1293 = vmatprep.subr.bf16.mxu0 0
        %1294 = vmatpush2.bf16.msra.mxu0 0
        %1295 = vmatprep.subr.bf16.mxu0 0
        %1296 = vmatpush2.bf16.msra.mxu0 0
        %1297 = vmatprep.subr.bf16.mxu0 0
        %1298 = vmatpush2.bf16.msra.mxu0 0
        %1299 = vmatprep.subr.bf16.mxu0 0
        %1300 = vmatpush2.bf16.msra.mxu0 0
        %1301 = vmatprep.subr.bf16.mxu0 0
        %1302 = vmatpush2.bf16.msra.mxu0 0
        %1303 = vmatprep.subr.bf16.mxu0 0
        %1304 = vmatpush2.bf16.msra.mxu0 0
        %1305 = vmatprep.subr.bf16.mxu0 0
        %1306 = vmatpush2.bf16.msra.mxu0 0
        %1307 = vmatprep.subr.bf16.mxu0 0
        %1308 = vmatpush2.bf16.msra.mxu0 0
        %1309 = vmatprep.mubr.bf16.mxu0 0
        %1310 = vmatmul.mubr.bf16.gmra.mxu0 %v1212
        %v1311 = vpop.f32.mrf.mxu0
        %v1312 = vadd.f32 0.0, %v1311
        %v1313 = vpop.f32.mrf.mxu0
        %v1314 = vpop.f32.mrf.mxu0
        %v1315 = vpop.f32.mrf.mxu0
        %1316 = vdwg.mxu0
        %v1317 = vadd.f32 %v1104, %v1312
        %v1318 = vld [vmem:[%s12] sm:$0x1]
        %v1320 = vlaneseq
        %v1321 = vshrl.u32 %v1320, 7
        %v1322 = vsub.s32 0, %v1321
        %v1323 = vrot.slane %v1318, %v1322
        %v1325 = vadd.f32 %v1317, %v1323
        %1326 = vst.msk [vmem:[%s455] sm:$0xff] %vm460, %v1325
        %s1327 = sand.u32 %s316, 1
        %s1328 = scalar_lea.sflag [#allocation6], %s1327
        %s1329 = sand.u32 %s316, 1
        %s1330 = smul.addr %s1329, 8
        %s1331 = scalar_lea.vmem [#allocation7], %s1330
        // Predicated region
        $region77: #{tpu_custom_call.1} parent=71 // pred_check
          %p1332 = pneg %p326
        $region78: #{tpu_custom_call.1} parent=71 // pred_check_branch
          %1334 = sbr.rel (%p1332) target = $region80
        $region79: #{tpu_custom_call.1} parent=71 // pred_region
          %s1336 = ssub.s32 128, 128
          %1337 = vsyncadd %s1328, %s1336
          %s1338 = smul.addr %s30, 128
          %s1339 = scalar_lea.hbm %s13, %s1338
          %s1341 = sshll.u32 %s1331, 4
          %s1342 = int_to_ptr.vmem [resolvable:$true] %s1341
          %1344 = dma.vmem_to_hbm [thread:$0]  %s1342, 128, %s1339, %s1328
        $region80: #{tpu_custom_call.1} parent=71 // pred_fallthru
          _
      $region72: #{tpu_custom_call.1} parent=5 // pred_fallthru
        _
      %p1345 = scmp.le.s32.totalorder 2, %s25
      // Predicated region
      $region81: #{tpu_custom_call.1} parent=5 // pred_check
        %p1346 = pneg %p1345
      $region82: #{tpu_custom_call.1} parent=5 // pred_check_branch
        %1348 = sbr.rel (%p1346) target = $region84
      $region83: #{tpu_custom_call.1} parent=5 // pred_region
        %s1349 = ssub.s32 %s25, 2
        // Predicated region
        $region85: #{tpu_custom_call.1} parent=83 // pred_check
          %p1350 = pneg %p332
        $region86: #{tpu_custom_call.1} parent=83 // pred_check_branch
          %1352 = sbr.rel (%p1350) target = $region88
        $region87: #{tpu_custom_call.1} parent=83 // pred_region
          %s1353 = sand.u32 %s317, 1
          %s1354 = scalar_lea.sflag [#allocation6], %s1353
          %s1355 = sand.u32 %s317, 1
          %s1356 = smul.addr %s1355, 8
          %s1357 = scalar_lea.vmem [#allocation7], %s1356
          %1358 = dma.done %s1354, 128
        $region88: #{tpu_custom_call.1} parent=83 // pred_fallthru
          _
      $region84: #{tpu_custom_call.1} parent=5 // pred_fallthru
        _
    $region6: #{tpu_custom_call.1} parent=1 // loop_footer
      %s29 = sadd.s32 1, %s25
    $region7: #{tpu_custom_call.1} parent=1 // loop_footer_branch
      %24 = sbr.rel target = $region3
    $region8: #{tpu_custom_call.1} parent=1 // loop_exit
      _
    %1359 = vsyncpa [#allocation5], 1
    %s1360 = scalar_lea.sflag [#allocation5], 1
    %1361 = vsyncpa %s1360, 1
    %1362 = vsyncpa [#allocation6], 1
    %s1363 = scalar_lea.sflag [#allocation6], 1
    %1364 = vsyncpa %s1363, 1

</llo_original>
